<compile_context>
chip_gen: v7x
topology: tpu7x:2x2x1
jax: 0.10.0
libtpu: 0.0.40
codegen_flags: <defaults>
</compile_context>

<pallas_src>
import functools
import math

import jax
import jax.numpy as jnp
import numpy as np
from jax import lax
from jax.experimental import pallas as pl
from jax.experimental.pallas import tpu as pltpu

_LN_EPS = 1e-5


def _layer_norm(h, w, b):
    mean = jnp.mean(h, axis=-1, keepdims=True)
    var = jnp.mean(jnp.square(h - mean), axis=-1, keepdims=True)
    return (h - mean) * lax.rsqrt(var + _LN_EPS) * w + b


# --------------------- kernel 1: LN1 + Q/K/V projections ------------------- #
def _ln_qkv_kernel(x_ref, ln_w_ref, ln_b_ref,
                   wq_ref, wk_ref, wv_ref, bq_ref, bk_ref, bv_ref,
                   q_ref, k_ref, v_ref):
    x = x_ref[0]                                               # (tq, C) f32
    h = _layer_norm(x, ln_w_ref[0], ln_b_ref[0]).astype(wq_ref.dtype)
    q = jnp.dot(h, wq_ref[...], preferred_element_type=jnp.float32) + bq_ref[0]
    k = jnp.dot(h, wk_ref[...], preferred_element_type=jnp.float32) + bk_ref[0]
    v = jnp.dot(h, wv_ref[...], preferred_element_type=jnp.float32) + bv_ref[0]
    q_ref[0] = q.astype(q_ref.dtype)                           # Q pre-scaled via w_q
    k_ref[0] = k.astype(k_ref.dtype)
    v_ref[0] = v.astype(v_ref.dtype)


# ---------- kernel 2: causal flash attention (heads as lane slices) -------- #
def _flash_attn_kernel(q_ref, k_ref, v_ref, o_ref, m_sc, l_sc, acc_sc,
                       *, n_head, head_dim, tq, tkv):
    qi = pl.program_id(1)
    ki = pl.program_id(2)

    @pl.when(ki == 0)
    def _init():
        m_sc[...] = jnp.full_like(m_sc, -jnp.inf)
        l_sc[...] = jnp.zeros_like(l_sc)
        acc_sc[...] = jnp.zeros_like(acc_sc)

    def _update_head(h, bias):
        sl = slice(h * head_dim, (h + 1) * head_dim)
        q_h = q_ref[0, :, sl]                                  # (tq, hd) bf16, pre-scaled
        k_h = k_ref[0, :, sl]                                  # (tkv, hd) bf16
        # QK^T: contract last dims of both (no explicit transpose)
        s = lax.dot_general(q_h, k_h, (((1,), (1,)), ((), ())),
                            preferred_element_type=jnp.float32)   # (tq, tkv) f32
        if bias is not None:
            s = s + bias
        m_prev = m_sc[h]                                       # (tq, 1)
        m_new = jnp.maximum(m_prev, jnp.max(s, axis=-1, keepdims=True))
        alpha = jnp.exp(m_prev - m_new)
        p = jnp.exp(s - m_new)
        l_sc[h] = alpha * l_sc[h] + jnp.sum(p, axis=-1, keepdims=True)
        v_h = v_ref[0, :, sl]                                  # (tkv, hd) bf16
        pv = lax.dot_general(p.astype(v_h.dtype), v_h, (((1,), (0,)), ((), ())),
                             preferred_element_type=jnp.float32)  # (tq, hd) f32
        acc_sc[:, sl] = alpha * acc_sc[:, sl] + pv
        m_sc[h] = m_new

    # tkv == tq, so kv tiles with ki < qi are fully unmasked and ki > qi are
    # fully masked (skipped; their DMA is also elided by the clamped index_map).
    @pl.when(ki < qi)
    def _compute_full():
        for h in range(n_head):
            _update_head(h, None)

    @pl.when(ki == qi)
    def _compute_diag():
        # causal bias built once per diagonal tile, shared across all heads
        rows = lax.broadcasted_iota(jnp.int32, (tq, tkv), 0)
        cols = lax.broadcasted_iota(jnp.int32, (tq, tkv), 1)
        bias = jnp.where(cols <= rows, 0.0, -1e30).astype(jnp.float32)
        for h in range(n_head):
            _update_head(h, bias)

    @pl.when(ki == pl.num_programs(2) - 1)
    def _finalize():
        for h in range(n_head):
            sl = slice(h * head_dim, (h + 1) * head_dim)
            acc_sc[:, sl] = acc_sc[:, sl] * pl.reciprocal(l_sc[h], approx=True)
        o_ref[0] = acc_sc[...].astype(o_ref.dtype)             # lane-dense (tq, C) store


# -------- kernel 3: attn out-proj + residual + LN2 + MLP + residual -------- #
def _proj_mlp_kernel(x_ref, y_ref, w_ao_ref, b_ao_ref,
                     ln2_w_ref, ln2_b_ref,
                     w_fc_ref, b_fc_ref, w_pr_ref, b_pr_ref, o_ref):
    x = x_ref[0]                                               # (tq, C) f32
    y = y_ref[0]                                               # (tq, C) bf16
    att = jnp.dot(y, w_ao_ref[...],
                  preferred_element_type=jnp.float32) + b_ao_ref[0]
    x1 = x + att                                               # residual 1
    h = _layer_norm(x1, ln2_w_ref[0], ln2_b_ref[0])
    hfc = jnp.dot(h.astype(w_fc_ref.dtype), w_fc_ref[...],
                  preferred_element_type=jnp.float32) + b_fc_ref[0]
    # exact (erf-based) GELU, matching torch.nn.GELU() default
    hfc = 0.5 * hfc * (1.0 + lax.erf(hfc * (1.0 / math.sqrt(2.0))))
    hpr = jnp.dot(hfc.astype(w_pr_ref.dtype), w_pr_ref[...],
                  preferred_element_type=jnp.float32) + b_pr_ref[0]
    o_ref[0] = (x1 + hpr).astype(o_ref.dtype)                  # residual 2


# ------------------------------ VMEM sizing helper ----------------------------- #
def _nbytes(shape, dtype):
    n = 1
    for d in shape:
        n *= int(d)
    return n * np.dtype(dtype).itemsize


def _vmem_cap_bytes():
    try:
        return int(pltpu.get_tpu_info().vmem_capacity_bytes)
    except Exception:
        return 64 << 20        # conservative fallback: v7x physical VMEM


def _vmem_limit(blocks, scratch=()):
    """blocks/scratch: iterable of (shape, dtype).  Double-buffered pipeline
    blocks + resident scratch + headroom, clamped to 85% of this chip's VMEM
    (~108 MiB on v5e/v6e, ~54 MiB on v7x)."""
    pipelined = sum(_nbytes(s, d) for s, d in blocks)
    resident = sum(_nbytes(s, d) for s, d in scratch)
    est = 2 * pipelined + resident + (8 << 20)
    cap = int(_vmem_cap_bytes() * 0.85)
    return int(min(max(est, 16 << 20), cap))


# ----------------------------------- wrapper ----------------------------------- #
def block_forward(x, params, n_head, *, q_tile=256, compute_dtype=jnp.bfloat16):
    """x: (B, T, C) float32.  params: dict of weights (see init_params).
    q_tile: sequence tile; 256 suits v6e/v7x MXUs, pass 128 on v5e."""
    B, T, C = x.shape
    assert C % n_head == 0, "n_embd must be divisible by n_head"
    hd = C // n_head
    tq = min(q_tile, T)
    assert T % tq == 0, "T must be divisible by the sequence tile"
    nq = T // tq
    tkv, nkv = tq, nq
    f32 = jnp.float32

    # Fold the softmax 1/sqrt(hd) scale into the Q projection weights + bias,
    # split the fused QKV weight into per-output matrices (one-time, tiny).
    scale = 1.0 / math.sqrt(hd)
    w_qkv, b_qkv = params["w_qkv"], params["b_qkv"]
    w_q = (w_qkv[:, :C] * scale).astype(compute_dtype)
    w_k = w_qkv[:, C:2 * C].astype(compute_dtype)
    w_v = w_qkv[:, 2 * C:].astype(compute_dtype)
    b_q = b_qkv[:, :C] * scale
    b_k = b_qkv[:, C:2 * C]
    b_v = b_qkv[:, 2 * C:]

    w_ao = params["w_ao"].astype(compute_dtype)
    w_fc = params["w_fc"].astype(compute_dtype)
    w_pr = params["w_pr"].astype(compute_dtype)
    ln1_w, ln1_b = params["ln1_w"], params["ln1_b"]
    ln2_w, ln2_b = params["ln2_w"], params["ln2_b"]
    b_ao, b_fc, b_pr = params["b_ao"], params["b_fc"], params["b_pr"]

    # ---------------- pass 1: LN1 + Q/K/V projections ----------------
    blocks1 = ([((1, tq, C), f32), ((1, C), f32), ((1, C), f32)]
               + [((C, C), compute_dtype)] * 3 + [((1, C), f32)] * 3
               + [((1, tq, C), compute_dtype)] * 3)
    q, k, v = pl.pallas_call(
        _ln_qkv_kernel,
        out_shape=(jax.ShapeDtypeStruct((B, T, C), compute_dtype),) * 3,
        grid_spec=pltpu.PrefetchScalarGridSpec(
            num_scalar_prefetch=0,
            grid=(B, nq),
            in_specs=[
                pl.BlockSpec((1, tq, C), lambda b, i: (b, i, 0)),   # x
                pl.BlockSpec((1, C), lambda b, i: (0, 0)),          # ln1_w
                pl.BlockSpec((1, C), lambda b, i: (0, 0)),          # ln1_b
                pl.BlockSpec((C, C), lambda b, i: (0, 0)),          # w_q (pre-scaled)
                pl.BlockSpec((C, C), lambda b, i: (0, 0)),          # w_k
                pl.BlockSpec((C, C), lambda b, i: (0, 0)),          # w_v
                pl.BlockSpec((1, C), lambda b, i: (0, 0)),          # b_q (pre-scaled)
                pl.BlockSpec((1, C), lambda b, i: (0, 0)),          # b_k
                pl.BlockSpec((1, C), lambda b, i: (0, 0)),          # b_v
            ],
            out_specs=(pl.BlockSpec((1, tq, C), lambda b, i: (b, i, 0)),) * 3,
        ),
        compiler_params=pltpu.CompilerParams(
            dimension_semantics=("parallel", "parallel"),
            vmem_limit_bytes=_vmem_limit(blocks1)),
    )(x, ln1_w, ln1_b, w_q, w_k, w_v, b_q, b_k, b_v)

    # ---------------- pass 2: causal flash attention ----------------
    blocks2 = [((1, tq, C), compute_dtype)] * 4
    scratch2 = [((n_head, tq, 1), f32), ((n_head, tq, 1), f32), ((tq, C), f32)]
    y = pl.pallas_call(
        functools.partial(_flash_attn_kernel, n_head=n_head, head_dim=hd,
                          tq=tq, tkv=tkv),
        out_shape=jax.ShapeDtypeStruct((B, T, C), compute_dtype),
        grid_spec=pltpu.PrefetchScalarGridSpec(
            num_scalar_prefetch=0,
            grid=(B, nq, nkv),
            in_specs=[
                pl.BlockSpec((1, tq, C), lambda b, qi, ki: (b, qi, 0)),
                # clamp the kv block index: causally-masked tiles (ki > qi)
                # repeat the previous block index, so their DMA is elided.
                pl.BlockSpec((1, tkv, C),
                             lambda b, qi, ki: (b, jnp.minimum(ki, qi), 0)),
                pl.BlockSpec((1, tkv, C),
                             lambda b, qi, ki: (b, jnp.minimum(ki, qi), 0)),
            ],
            out_specs=pl.BlockSpec((1, tq, C), lambda b, qi, ki: (b, qi, 0)),
            scratch_shapes=[
                pltpu.VMEM((n_head, tq, 1), f32),      # running max (per head)
                pltpu.VMEM((n_head, tq, 1), f32),      # running denom (per head)
                pltpu.VMEM((tq, C), f32),              # lane-dense accumulator
            ],
        ),
        compiler_params=pltpu.CompilerParams(
            dimension_semantics=("parallel", "parallel", "arbitrary"),
            vmem_limit_bytes=_vmem_limit(blocks2, scratch2)),
    )(q, k, v)

    # ---------------- pass 3: out-proj + residual + LN2 + MLP + residual ----------------
    blocks3 = [((1, tq, C), f32), ((1, tq, C), compute_dtype),
               ((C, C), compute_dtype), ((1, C), f32),
               ((1, C), f32), ((1, C), f32),
               ((C, 4 * C), compute_dtype), ((1, 4 * C), f32),
               ((4 * C, C), compute_dtype), ((1, C), f32),
               ((1, tq, C), f32)]
    out = pl.pallas_call(
        _proj_mlp_kernel,
        out_shape=jax.ShapeDtypeStruct((B, T, C), x.dtype),
        grid_spec=pltpu.PrefetchScalarGridSpec(
            num_scalar_prefetch=0,
            grid=(B, nq),
            in_specs=[
                pl.BlockSpec((1, tq, C), lambda b, i: (b, i, 0)),   # x
                pl.BlockSpec((1, tq, C), lambda b, i: (b, i, 0)),   # attn out
                pl.BlockSpec((C, C), lambda b, i: (0, 0)),          # w_ao
                pl.BlockSpec((1, C), lambda b, i: (0, 0)),          # b_ao
                pl.BlockSpec((1, C), lambda b, i: (0, 0)),          # ln2_w
                pl.BlockSpec((1, C), lambda b, i: (0, 0)),          # ln2_b
                pl.BlockSpec((C, 4 * C), lambda b, i: (0, 0)),      # w_fc
                pl.BlockSpec((1, 4 * C), lambda b, i: (0, 0)),      # b_fc
                pl.BlockSpec((4 * C, C), lambda b, i: (0, 0)),      # w_pr
                pl.BlockSpec((1, C), lambda b, i: (0, 0)),          # b_pr
            ],
            out_specs=pl.BlockSpec((1, tq, C), lambda b, i: (b, i, 0)),
        ),
        compiler_params=pltpu.CompilerParams(
            dimension_semantics=("parallel", "parallel"),
            vmem_limit_bytes=_vmem_limit(blocks3)),
    )(x, y, w_ao, b_ao, ln2_w, ln2_b, w_fc, b_fc, w_pr, b_pr)

    return out
    # TODO(synk): dropout (attn/resid/mlp) is inference-mode identity (p=0).


# ----------------------- deterministic parameter init ----------------------- #
def init_params(key, C):
    ks = jax.random.split(key, 6)
    s = 0.02
    return {
        "ln1_w": jnp.ones((1, C), jnp.float32),
        "ln1_b": jnp.zeros((1, C), jnp.float32),
        "w_qkv": s * jax.random.normal(ks[0], (C, 3 * C), jnp.float32),
        "b_qkv": s * jax.random.normal(ks[1], (1, 3 * C), jnp.float32),
        "w_ao":  s * jax.random.normal(ks[2], (C, C), jnp.float32),
        "b_ao":  s * jax.random.normal(ks[3], (1, C), jnp.float32),
        "ln2_w": jnp.ones((1, C), jnp.float32),
        "ln2_b": jnp.zeros((1, C), jnp.float32),
        "w_fc":  s * jax.random.normal(ks[4], (C, 4 * C), jnp.float32),
        "b_fc":  jnp.zeros((1, 4 * C), jnp.float32),
        "w_pr":  s * jax.random.normal(ks[5], (4 * C, C), jnp.float32),
        "b_pr":  jnp.zeros((1, C), jnp.float32),
    }


# --------------------------- pure-JAX f32 reference ------------------------------ #
def block_reference(x, p, n_head):
    B, T, C = x.shape
    hd = C // n_head

    def ln(h, w, b):
        m = jnp.mean(h, axis=-1, keepdims=True)
        v = jnp.mean((h - m) ** 2, axis=-1, keepdims=True)
        return (h - m) / jnp.sqrt(v + 1e-5) * w[0] + b[0]

    h1 = ln(x, p["ln1_w"], p["ln1_b"])
    qkv = h1 @ p["w_qkv"] + p["b_qkv"][0]
    q, k, v = jnp.split(qkv, 3, axis=-1)
    q = q.reshape(B, T, n_head, hd).transpose(0, 2, 1, 3)
    k = k.reshape(B, T, n_head, hd).transpose(0, 2, 1, 3)
    v = v.reshape(B, T, n_head, hd).transpose(0, 2, 1, 3)
    att = jnp.einsum("bhqd,bhkd->bhqk", q, k) / math.sqrt(hd)
    mask = jnp.tril(jnp.ones((T, T), bool))
    att = jnp.where(mask, att, -1e30)
    att = jax.nn.softmax(att, axis=-1)
    y = jnp.einsum("bhqk,bhkd->bhqd", att, v).transpose(0, 2, 1, 3).reshape(B, T, C)
    x = x + (y @ p["w_ao"] + p["b_ao"][0])

    h2 = ln(x, p["ln2_w"], p["ln2_b"])
    hfc = h2 @ p["w_fc"] + p["b_fc"][0]
    hfc = 0.5 * hfc * (1.0 + lax.erf(hfc / math.sqrt(2.0)))
    x = x + (hfc @ p["w_pr"] + p["b_pr"][0])
    return x


# ----------------------------------- main ------------------------------------ #
if __name__ == "__main__":
    B, T, C, n_head = 2, 8, 32, 4   # seq_len=8, n_embd=32, head_dim=8, bias=True, dropout=0

    key = jax.random.PRNGKey(0)
    kx, kp = jax.random.split(key)
    x = jax.random.normal(kx, (B, T, C), jnp.float32)
    params = init_params(kp, C)

    fwd = jax.jit(functools.partial(block_forward, n_head=n_head))
    out = fwd(x, params)
    out = jax.block_until_ready(out)

    ref = block_reference(x, params, n_head)
    # bf16 MXU operands + approx reciprocal -> compare with loosened tolerance
    np.testing.assert_allclose(np.asarray(out), np.asarray(ref), rtol=1e-2, atol=1e-2)

    print("KERNEL_OK")
</pallas_src>

<mosaic_0001>
module attributes {stable_mosaic.version = 11 : i64} {
  func.func @_proj_mlp_kernel(%arg0: i32, %arg1: i32, %arg2: memref<1x8x32xf32, #tpu.memory_space<vmem>>, %arg3: memref<1x8x32xbf16, #tpu.memory_space<vmem>>, %arg4: memref<32x32xbf16, #tpu.memory_space<vmem>>, %arg5: memref<1x32xf32, #tpu.memory_space<vmem>>, %arg6: memref<1x32xf32, #tpu.memory_space<vmem>>, %arg7: memref<1x32xf32, #tpu.memory_space<vmem>>, %arg8: memref<32x128xbf16, #tpu.memory_space<vmem>>, %arg9: memref<1x128xf32, #tpu.memory_space<vmem>>, %arg10: memref<128x32xbf16, #tpu.memory_space<vmem>>, %arg11: memref<1x32xf32, #tpu.memory_space<vmem>>, %arg12: memref<1x8x32xf32, #tpu.memory_space<vmem>>) attributes {dimension_semantics = [#tpu.dimension_semantics<parallel>, #tpu.dimension_semantics<parallel>], iteration_bounds = array<i64: 2, 1>, scalar_prefetch = 0 : i64, scratch_operands = 0 : i64, tpu.core_type = #tpu.core_type<tc>, window_params = [{transform_indices = @transform_0, window_bounds = array<i64: 1, 8, 32>}, {transform_indices = @transform_1, window_bounds = array<i64: 1, 8, 32>}, {pipeline_mode = #tpu.pipeline_mode<synchronous>, transform_indices = @transform_2, window_bounds = array<i64: 32, 32>}, {pipeline_mode = #tpu.pipeline_mode<synchronous>, transform_indices = @transform_3, window_bounds = array<i64: 1, 32>}, {pipeline_mode = #tpu.pipeline_mode<synchronous>, transform_indices = @transform_4, window_bounds = array<i64: 1, 32>}, {pipeline_mode = #tpu.pipeline_mode<synchronous>, transform_indices = @transform_5, window_bounds = array<i64: 1, 32>}, {pipeline_mode = #tpu.pipeline_mode<synchronous>, transform_indices = @transform_6, window_bounds = array<i64: 32, 128>}, {pipeline_mode = #tpu.pipeline_mode<synchronous>, transform_indices = @transform_7, window_bounds = array<i64: 1, 128>}, {pipeline_mode = #tpu.pipeline_mode<synchronous>, transform_indices = @transform_8, window_bounds = array<i64: 128, 32>}, {pipeline_mode = #tpu.pipeline_mode<synchronous>, transform_indices = @transform_9, window_bounds = array<i64: 1, 32>}, {transform_indices = @transform_10, window_bounds = array<i64: 1, 8, 32>}]} {
    %c0 = arith.constant 0 : index
    %c0_0 = arith.constant 0 : index
    %c0_1 = arith.constant 0 : index
    %0 = vector.load %arg2[%c0, %c0_0, %c0_1] : memref<1x8x32xf32, #tpu.memory_space<vmem>>, vector<1x8x32xf32>
    %1 = vector.shape_cast %0 : vector<1x8x32xf32> to vector<8x32xf32>
    %c0_2 = arith.constant 0 : index
    %c0_3 = arith.constant 0 : index
    %c0_4 = arith.constant 0 : index
    %2 = vector.load %arg3[%c0_2, %c0_3, %c0_4] : memref<1x8x32xbf16, #tpu.memory_space<vmem>>, vector<1x8x32xbf16>
    %3 = vector.shape_cast %2 : vector<1x8x32xbf16> to vector<8x32xbf16>
    %c0_5 = arith.constant 0 : index
    %c0_6 = arith.constant 0 : index
    %4 = vector.load %arg4[%c0_5, %c0_6] : memref<32x32xbf16, #tpu.memory_space<vmem>>, vector<32x32xbf16>
    %cst = arith.constant dense<0.000000e+00> : vector<8x32xf32>
    %5 = tpu.matmul %3, %4, %cst {dimension_numbers = #tpu.dot_dimension_numbers<[1], [0], [0], [1], [0, 0, 1, 1], [], []>} : vector<8x32xbf16>, vector<32x32xbf16>, vector<8x32xf32> -> vector<8x32xf32>
    %c0_7 = arith.constant 0 : index
    %c0_8 = arith.constant 0 : index
    %6 = vector.load %arg5[%c0_7, %c0_8] : memref<1x32xf32, #tpu.memory_space<vmem>>, vector<1x32xf32>
    %7 = vector.shape_cast %6 : vector<1x32xf32> to vector<32xf32>
    %8 = vector.shape_cast %7 : vector<32xf32> to vector<1x32xf32>
    %9 = vector.broadcast %8 : vector<1x32xf32> to vector<8x32xf32>
    %10 = arith.addf %5, %9 : vector<8x32xf32>
    %11 = arith.addf %1, %10 : vector<8x32xf32>
    %c0_9 = arith.constant 0 : index
    %c0_10 = arith.constant 0 : index
    %12 = vector.load %arg6[%c0_9, %c0_10] : memref<1x32xf32, #tpu.memory_space<vmem>>, vector<1x32xf32>
    %13 = vector.shape_cast %12 : vector<1x32xf32> to vector<32xf32>
    %c0_11 = arith.constant 0 : index
    %c0_12 = arith.constant 0 : index
    %14 = vector.load %arg7[%c0_11, %c0_12] : memref<1x32xf32, #tpu.memory_space<vmem>>, vector<1x32xf32>
    %15 = vector.shape_cast %14 : vector<1x32xf32> to vector<32xf32>
    %cst_13 = arith.constant dense<0.000000e+00> : vector<8xf32>
    %16 = vector.multi_reduction <add>, %11, %cst_13 [1] : vector<8x32xf32> to vector<8xf32>
    %17 = vector.shape_cast %16 : vector<8xf32> to vector<8x1xf32>
    %cst_14 = arith.constant 3.200000e+01 : f32
    %18 = vector.broadcast %cst_14 : f32 to vector<8x1xf32>
    %19 = arith.divf %17, %18 : vector<8x1xf32>
    %20 = vector.broadcast %19 : vector<8x1xf32> to vector<8x32xf32>
    %21 = arith.subf %11, %20 : vector<8x32xf32>
    %22 = arith.mulf %21, %21 : vector<8x32xf32>
    %cst_15 = arith.constant dense<0.000000e+00> : vector<8xf32>
    %23 = vector.multi_reduction <add>, %22, %cst_15 [1] : vector<8x32xf32> to vector<8xf32>
    %24 = vector.shape_cast %23 : vector<8xf32> to vector<8x1xf32>
    %cst_16 = arith.constant 3.200000e+01 : f32
    %25 = vector.broadcast %cst_16 : f32 to vector<8x1xf32>
    %26 = arith.divf %24, %25 : vector<8x1xf32>
    %27 = vector.broadcast %19 : vector<8x1xf32> to vector<8x32xf32>
    %28 = arith.subf %11, %27 : vector<8x32xf32>
    %cst_17 = arith.constant 9.99999974E-6 : f32
    %29 = vector.broadcast %cst_17 : f32 to vector<8x1xf32>
    %30 = arith.addf %26, %29 : vector<8x1xf32>
    %31 = math.rsqrt %30 : vector<8x1xf32>
    %32 = vector.broadcast %31 : vector<8x1xf32> to vector<8x32xf32>
    %33 = arith.mulf %28, %32 : vector<8x32xf32>
    %34 = vector.shape_cast %13 : vector<32xf32> to vector<1x32xf32>
    %35 = vector.broadcast %34 : vector<1x32xf32> to vector<8x32xf32>
    %36 = arith.mulf %33, %35 : vector<8x32xf32>
    %37 = vector.shape_cast %15 : vector<32xf32> to vector<1x32xf32>
    %38 = vector.broadcast %37 : vector<1x32xf32> to vector<8x32xf32>
    %39 = arith.addf %36, %38 : vector<8x32xf32>
    %40 = arith.truncf %39 : vector<8x32xf32> to vector<8x32xbf16>
    %c0_18 = arith.constant 0 : index
    %c0_19 = arith.constant 0 : index
    %41 = vector.load %arg8[%c0_18, %c0_19] : memref<32x128xbf16, #tpu.memory_space<vmem>>, vector<32x128xbf16>
    %cst_20 = arith.constant dense<0.000000e+00> : vector<8x128xf32>
    %42 = tpu.matmul %40, %41, %cst_20 {dimension_numbers = #tpu.dot_dimension_numbers<[1], [0], [0], [1], [0, 0, 1, 1], [], []>} : vector<8x32xbf16>, vector<32x128xbf16>, vector<8x128xf32> -> vector<8x128xf32>
    %c0_21 = arith.constant 0 : index
    %c0_22 = arith.constant 0 : index
    %43 = vector.load %arg9[%c0_21, %c0_22] : memref<1x128xf32, #tpu.memory_space<vmem>>, vector<1x128xf32>
    %44 = vector.shape_cast %43 : vector<1x128xf32> to vector<128xf32>
    %45 = vector.shape_cast %44 : vector<128xf32> to vector<1x128xf32>
    %46 = vector.broadcast %45 : vector<1x128xf32> to vector<8x128xf32>
    %47 = arith.addf %42, %46 : vector<8x128xf32>
    %cst_23 = arith.constant 5.000000e-01 : f32
    %48 = vector.broadcast %cst_23 : f32 to vector<8x128xf32>
    %49 = arith.mulf %48, %47 : vector<8x128xf32>
    %cst_24 = arith.constant 0.707106769 : f32
    %50 = vector.broadcast %cst_24 : f32 to vector<8x128xf32>
    %51 = arith.mulf %47, %50 : vector<8x128xf32>
    %52 = math.erf %51 : vector<8x128xf32>
    %cst_25 = arith.constant 1.000000e+00 : f32
    %53 = vector.broadcast %cst_25 : f32 to vector<8x128xf32>
    %54 = arith.addf %53, %52 : vector<8x128xf32>
    %55 = arith.mulf %49, %54 : vector<8x128xf32>
    %56 = arith.truncf %55 : vector<8x128xf32> to vector<8x128xbf16>
    %c0_26 = arith.constant 0 : index
    %c0_27 = arith.constant 0 : index
    %57 = vector.load %arg10[%c0_26, %c0_27] : memref<128x32xbf16, #tpu.memory_space<vmem>>, vector<128x32xbf16>
    %cst_28 = arith.constant dense<0.000000e+00> : vector<8x32xf32>
    %58 = tpu.matmul %56, %57, %cst_28 {dimension_numbers = #tpu.dot_dimension_numbers<[1], [0], [0], [1], [0, 0, 1, 1], [], []>} : vector<8x128xbf16>, vector<128x32xbf16>, vector<8x32xf32> -> vector<8x32xf32>
    %c0_29 = arith.constant 0 : index
    %c0_30 = arith.constant 0 : index
    %59 = vector.load %arg11[%c0_29, %c0_30] : memref<1x32xf32, #tpu.memory_space<vmem>>, vector<1x32xf32>
    %60 = vector.shape_cast %59 : vector<1x32xf32> to vector<32xf32>
    %61 = vector.shape_cast %60 : vector<32xf32> to vector<1x32xf32>
    %62 = vector.broadcast %61 : vector<1x32xf32> to vector<8x32xf32>
    %63 = arith.addf %58, %62 : vector<8x32xf32>
    %64 = arith.addf %11, %63 : vector<8x32xf32>
    %c0_31 = arith.constant 0 : index
    %c0_32 = arith.constant 0 : index
    %c0_33 = arith.constant 0 : index
    %65 = vector.load %arg12[%c0_31, %c0_32, %c0_33] : memref<1x8x32xf32, #tpu.memory_space<vmem>>, vector<1x8x32xf32>
    %66 = vector.shape_cast %65 : vector<1x8x32xf32> to vector<8x32xf32>
    %67 = vector.shape_cast %64 : vector<8x32xf32> to vector<1x8x32xf32>
    tpu.vector_store %arg12[%c0_31, %c0_32, %c0_33], %67 {strides = array<i32>} : memref<1x8x32xf32, #tpu.memory_space<vmem>>, vector<1x8x32xf32>,
    return
  }
  func.func @transform_0(%arg0: i32, %arg1: i32) -> (i32, i32, i32) {
    %c0_i32 = arith.constant 0 : i32
    %c0_i32_0 = arith.constant 0 : i32
    return %arg0, %arg1, %c0_i32 : i32, i32, i32
  }
  func.func @transform_1(%arg0: i32, %arg1: i32) -> (i32, i32, i32) {
    %c0_i32 = arith.constant 0 : i32
    %c0_i32_0 = arith.constant 0 : i32
    return %arg0, %arg1, %c0_i32 : i32, i32, i32
  }
  func.func @transform_2(%arg0: i32, %arg1: i32) -> (i32, i32) {
    %c0_i32 = arith.constant 0 : i32
    %c0_i32_0 = arith.constant 0 : i32
    %c0_i32_1 = arith.constant 0 : i32
    return %c0_i32, %c0_i32_0 : i32, i32
  }
  func.func @transform_3(%arg0: i32, %arg1: i32) -> (i32, i32) {
    %c0_i32 = arith.constant 0 : i32
    %c0_i32_0 = arith.constant 0 : i32
    %c0_i32_1 = arith.constant 0 : i32
    return %c0_i32, %c0_i32_0 : i32, i32
  }
  func.func @transform_4(%arg0: i32, %arg1: i32) -> (i32, i32) {
    %c0_i32 = arith.constant 0 : i32
    %c0_i32_0 = arith.constant 0 : i32
    %c0_i32_1 = arith.constant 0 : i32
    return %c0_i32, %c0_i32_0 : i32, i32
  }
  func.func @transform_5(%arg0: i32, %arg1: i32) -> (i32, i32) {
    %c0_i32 = arith.constant 0 : i32
    %c0_i32_0 = arith.constant 0 : i32
    %c0_i32_1 = arith.constant 0 : i32
    return %c0_i32, %c0_i32_0 : i32, i32
  }
  func.func @transform_6(%arg0: i32, %arg1: i32) -> (i32, i32) {
    %c0_i32 = arith.constant 0 : i32
    %c0_i32_0 = arith.constant 0 : i32
    %c0_i32_1 = arith.constant 0 : i32
    return %c0_i32, %c0_i32_0 : i32, i32
  }
  func.func @transform_7(%arg0: i32, %arg1: i32) -> (i32, i32) {
    %c0_i32 = arith.constant 0 : i32
    %c0_i32_0 = arith.constant 0 : i32
    %c0_i32_1 = arith.constant 0 : i32
    return %c0_i32, %c0_i32_0 : i32, i32
  }
  func.func @transform_8(%arg0: i32, %arg1: i32) -> (i32, i32) {
    %c0_i32 = arith.constant 0 : i32
    %c0_i32_0 = arith.constant 0 : i32
    %c0_i32_1 = arith.constant 0 : i32
    return %c0_i32, %c0_i32_0 : i32, i32
  }
  func.func @transform_9(%arg0: i32, %arg1: i32) -> (i32, i32) {
    %c0_i32 = arith.constant 0 : i32
    %c0_i32_0 = arith.constant 0 : i32
    %c0_i32_1 = arith.constant 0 : i32
    return %c0_i32, %c0_i32_0 : i32, i32
  }
  func.func @transform_10(%arg0: i32, %arg1: i32) -> (i32, i32, i32) {
    %c0_i32 = arith.constant 0 : i32
    %c0_i32_0 = arith.constant 0 : i32
    return %arg0, %arg1, %c0_i32 : i32, i32, i32
  }
}

module attributes {stable_mosaic.version = 11 : i64} {
  func.func @_ln_qkv_kernel(%arg0: i32, %arg1: i32, %arg2: memref<1x8x32xf32, #tpu.memory_space<vmem>>, %arg3: memref<1x32xf32, #tpu.memory_space<vmem>>, %arg4: memref<1x32xf32, #tpu.memory_space<vmem>>, %arg5: memref<32x32xbf16, #tpu.memory_space<vmem>>, %arg6: memref<32x32xbf16, #tpu.memory_space<vmem>>, %arg7: memref<32x32xbf16, #tpu.memory_space<vmem>>, %arg8: memref<1x32xf32, #tpu.memory_space<vmem>>, %arg9: memref<1x32xf32, #tpu.memory_space<vmem>>, %arg10: memref<1x32xf32, #tpu.memory_space<vmem>>, %arg11: memref<1x8x32xbf16, #tpu.memory_space<vmem>>, %arg12: memref<1x8x32xbf16, #tpu.memory_space<vmem>>, %arg13: memref<1x8x32xbf16, #tpu.memory_space<vmem>>) attributes {dimension_semantics = [#tpu.dimension_semantics<parallel>, #tpu.dimension_semantics<parallel>], iteration_bounds = array<i64: 2, 1>, scalar_prefetch = 0 : i64, scratch_operands = 0 : i64, tpu.core_type = #tpu.core_type<tc>, window_params = [{transform_indices = @transform_0, window_bounds = array<i64: 1, 8, 32>}, {pipeline_mode = #tpu.pipeline_mode<synchronous>, transform_indices = @transform_1, window_bounds = array<i64: 1, 32>}, {pipeline_mode = #tpu.pipeline_mode<synchronous>, transform_indices = @transform_2, window_bounds = array<i64: 1, 32>}, {pipeline_mode = #tpu.pipeline_mode<synchronous>, transform_indices = @transform_3, window_bounds = array<i64: 32, 32>}, {pipeline_mode = #tpu.pipeline_mode<synchronous>, transform_indices = @transform_4, window_bounds = array<i64: 32, 32>}, {pipeline_mode = #tpu.pipeline_mode<synchronous>, transform_indices = @transform_5, window_bounds = array<i64: 32, 32>}, {pipeline_mode = #tpu.pipeline_mode<synchronous>, transform_indices = @transform_6, window_bounds = array<i64: 1, 32>}, {pipeline_mode = #tpu.pipeline_mode<synchronous>, transform_indices = @transform_7, window_bounds = array<i64: 1, 32>}, {pipeline_mode = #tpu.pipeline_mode<synchronous>, transform_indices = @transform_8, window_bounds = array<i64: 1, 32>}, {transform_indices = @transform_9, window_bounds = array<i64: 1, 8, 32>}, {transform_indices = @transform_10, window_bounds = array<i64: 1, 8, 32>}, {transform_indices = @transform_11, window_bounds = array<i64: 1, 8, 32>}]} {
    %c0 = arith.constant 0 : index
    %c0_0 = arith.constant 0 : index
    %c0_1 = arith.constant 0 : index
    %0 = vector.load %arg2[%c0, %c0_0, %c0_1] : memref<1x8x32xf32, #tpu.memory_space<vmem>>, vector<1x8x32xf32>
    %1 = vector.shape_cast %0 : vector<1x8x32xf32> to vector<8x32xf32>
    %c0_2 = arith.constant 0 : index
    %c0_3 = arith.constant 0 : index
    %2 = vector.load %arg3[%c0_2, %c0_3] : memref<1x32xf32, #tpu.memory_space<vmem>>, vector<1x32xf32>
    %3 = vector.shape_cast %2 : vector<1x32xf32> to vector<32xf32>
    %c0_4 = arith.constant 0 : index
    %c0_5 = arith.constant 0 : index
    %4 = vector.load %arg4[%c0_4, %c0_5] : memref<1x32xf32, #tpu.memory_space<vmem>>, vector<1x32xf32>
    %5 = vector.shape_cast %4 : vector<1x32xf32> to vector<32xf32>
    %cst = arith.constant dense<0.000000e+00> : vector<8xf32>
    %6 = vector.multi_reduction <add>, %1, %cst [1] : vector<8x32xf32> to vector<8xf32>
    %7 = vector.shape_cast %6 : vector<8xf32> to vector<8x1xf32>
    %cst_6 = arith.constant 3.200000e+01 : f32
    %8 = vector.broadcast %cst_6 : f32 to vector<8x1xf32>
    %9 = arith.divf %7, %8 : vector<8x1xf32>
    %10 = vector.broadcast %9 : vector<8x1xf32> to vector<8x32xf32>
    %11 = arith.subf %1, %10 : vector<8x32xf32>
    %12 = arith.mulf %11, %11 : vector<8x32xf32>
    %cst_7 = arith.constant dense<0.000000e+00> : vector<8xf32>
    %13 = vector.multi_reduction <add>, %12, %cst_7 [1] : vector<8x32xf32> to vector<8xf32>
    %14 = vector.shape_cast %13 : vector<8xf32> to vector<8x1xf32>
    %cst_8 = arith.constant 3.200000e+01 : f32
    %15 = vector.broadcast %cst_8 : f32 to vector<8x1xf32>
    %16 = arith.divf %14, %15 : vector<8x1xf32>
    %17 = vector.broadcast %9 : vector<8x1xf32> to vector<8x32xf32>
    %18 = arith.subf %1, %17 : vector<8x32xf32>
    %cst_9 = arith.constant 9.99999974E-6 : f32
    %19 = vector.broadcast %cst_9 : f32 to vector<8x1xf32>
    %20 = arith.addf %16, %19 : vector<8x1xf32>
    %21 = math.rsqrt %20 : vector<8x1xf32>
    %22 = vector.broadcast %21 : vector<8x1xf32> to vector<8x32xf32>
    %23 = arith.mulf %18, %22 : vector<8x32xf32>
    %24 = vector.shape_cast %3 : vector<32xf32> to vector<1x32xf32>
    %25 = vector.broadcast %24 : vector<1x32xf32> to vector<8x32xf32>
    %26 = arith.mulf %23, %25 : vector<8x32xf32>
    %27 = vector.shape_cast %5 : vector<32xf32> to vector<1x32xf32>
    %28 = vector.broadcast %27 : vector<1x32xf32> to vector<8x32xf32>
    %29 = arith.addf %26, %28 : vector<8x32xf32>
    %30 = arith.truncf %29 : vector<8x32xf32> to vector<8x32xbf16>
    %c0_10 = arith.constant 0 : index
    %c0_11 = arith.constant 0 : index
    %31 = vector.load %arg5[%c0_10, %c0_11] : memref<32x32xbf16, #tpu.memory_space<vmem>>, vector<32x32xbf16>
    %cst_12 = arith.constant dense<0.000000e+00> : vector<8x32xf32>
    %32 = tpu.matmul %30, %31, %cst_12 {dimension_numbers = #tpu.dot_dimension_numbers<[1], [0], [0], [1], [0, 0, 1, 1], [], []>} : vector<8x32xbf16>, vector<32x32xbf16>, vector<8x32xf32> -> vector<8x32xf32>
    %c0_13 = arith.constant 0 : index
    %c0_14 = arith.constant 0 : index
    %33 = vector.load %arg8[%c0_13, %c0_14] : memref<1x32xf32, #tpu.memory_space<vmem>>, vector<1x32xf32>
    %34 = vector.shape_cast %33 : vector<1x32xf32> to vector<32xf32>
    %35 = vector.shape_cast %34 : vector<32xf32> to vector<1x32xf32>
    %36 = vector.broadcast %35 : vector<1x32xf32> to vector<8x32xf32>
    %37 = arith.addf %32, %36 : vector<8x32xf32>
    %c0_15 = arith.constant 0 : index
    %c0_16 = arith.constant 0 : index
    %38 = vector.load %arg6[%c0_15, %c0_16] : memref<32x32xbf16, #tpu.memory_space<vmem>>, vector<32x32xbf16>
    %cst_17 = arith.constant dense<0.000000e+00> : vector<8x32xf32>
    %39 = tpu.matmul %30, %38, %cst_17 {dimension_numbers = #tpu.dot_dimension_numbers<[1], [0], [0], [1], [0, 0, 1, 1], [], []>} : vector<8x32xbf16>, vector<32x32xbf16>, vector<8x32xf32> -> vector<8x32xf32>
    %c0_18 = arith.constant 0 : index
    %c0_19 = arith.constant 0 : index
    %40 = vector.load %arg9[%c0_18, %c0_19] : memref<1x32xf32, #tpu.memory_space<vmem>>, vector<1x32xf32>
    %41 = vector.shape_cast %40 : vector<1x32xf32> to vector<32xf32>
    %42 = vector.shape_cast %41 : vector<32xf32> to vector<1x32xf32>
    %43 = vector.broadcast %42 : vector<1x32xf32> to vector<8x32xf32>
    %44 = arith.addf %39, %43 : vector<8x32xf32>
    %c0_20 = arith.constant 0 : index
    %c0_21 = arith.constant 0 : index
    %45 = vector.load %arg7[%c0_20, %c0_21] : memref<32x32xbf16, #tpu.memory_space<vmem>>, vector<32x32xbf16>
    %cst_22 = arith.constant dense<0.000000e+00> : vector<8x32xf32>
    %46 = tpu.matmul %30, %45, %cst_22 {dimension_numbers = #tpu.dot_dimension_numbers<[1], [0], [0], [1], [0, 0, 1, 1], [], []>} : vector<8x32xbf16>, vector<32x32xbf16>, vector<8x32xf32> -> vector<8x32xf32>
    %c0_23 = arith.constant 0 : index
    %c0_24 = arith.constant 0 : index
    %47 = vector.load %arg10[%c0_23, %c0_24] : memref<1x32xf32, #tpu.memory_space<vmem>>, vector<1x32xf32>
    %48 = vector.shape_cast %47 : vector<1x32xf32> to vector<32xf32>
    %49 = vector.shape_cast %48 : vector<32xf32> to vector<1x32xf32>
    %50 = vector.broadcast %49 : vector<1x32xf32> to vector<8x32xf32>
    %51 = arith.addf %46, %50 : vector<8x32xf32>
    %52 = arith.truncf %37 : vector<8x32xf32> to vector<8x32xbf16>
    %c0_25 = arith.constant 0 : index
    %c0_26 = arith.constant 0 : index
    %c0_27 = arith.constant 0 : index
    %53 = vector.load %arg11[%c0_25, %c0_26, %c0_27] : memref<1x8x32xbf16, #tpu.memory_space<vmem>>, vector<1x8x32xbf16>
    %54 = vector.shape_cast %53 : vector<1x8x32xbf16> to vector<8x32xbf16>
    %55 = vector.shape_cast %52 : vector<8x32xbf16> to vector<1x8x32xbf16>
    tpu.vector_store %arg11[%c0_25, %c0_26, %c0_27], %55 {strides = array<i32>} : memref<1x8x32xbf16, #tpu.memory_space<vmem>>, vector<1x8x32xbf16>,
    %56 = arith.truncf %44 : vector<8x32xf32> to vector<8x32xbf16>
    %c0_28 = arith.constant 0 : index
    %c0_29 = arith.constant 0 : index
    %c0_30 = arith.constant 0 : index
    %57 = vector.load %arg12[%c0_28, %c0_29, %c0_30] : memref<1x8x32xbf16, #tpu.memory_space<vmem>>, vector<1x8x32xbf16>
    %58 = vector.shape_cast %57 : vector<1x8x32xbf16> to vector<8x32xbf16>
    %59 = vector.shape_cast %56 : vector<8x32xbf16> to vector<1x8x32xbf16>
    tpu.vector_store %arg12[%c0_28, %c0_29, %c0_30], %59 {strides = array<i32>} : memref<1x8x32xbf16, #tpu.memory_space<vmem>>, vector<1x8x32xbf16>,
    %60 = arith.truncf %51 : vector<8x32xf32> to vector<8x32xbf16>
    %c0_31 = arith.constant 0 : index
    %c0_32 = arith.constant 0 : index
    %c0_33 = arith.constant 0 : index
    %61 = vector.load %arg13[%c0_31, %c0_32, %c0_33] : memref<1x8x32xbf16, #tpu.memory_space<vmem>>, vector<1x8x32xbf16>
    %62 = vector.shape_cast %61 : vector<1x8x32xbf16> to vector<8x32xbf16>
    %63 = vector.shape_cast %60 : vector<8x32xbf16> to vector<1x8x32xbf16>
    tpu.vector_store %arg13[%c0_31, %c0_32, %c0_33], %63 {strides = array<i32>} : memref<1x8x32xbf16, #tpu.memory_space<vmem>>, vector<1x8x32xbf16>,
    return
  }
  func.func @transform_0(%arg0: i32, %arg1: i32) -> (i32, i32, i32) {
    %c0_i32 = arith.constant 0 : i32
    %c0_i32_0 = arith.constant 0 : i32
    return %arg0, %arg1, %c0_i32 : i32, i32, i32
  }
  func.func @transform_1(%arg0: i32, %arg1: i32) -> (i32, i32) {
    %c0_i32 = arith.constant 0 : i32
    %c0_i32_0 = arith.constant 0 : i32
    %c0_i32_1 = arith.constant 0 : i32
    return %c0_i32, %c0_i32_0 : i32, i32
  }
  func.func @transform_2(%arg0: i32, %arg1: i32) -> (i32, i32) {
    %c0_i32 = arith.constant 0 : i32
    %c0_i32_0 = arith.constant 0 : i32
    %c0_i32_1 = arith.constant 0 : i32
    return %c0_i32, %c0_i32_0 : i32, i32
  }
  func.func @transform_3(%arg0: i32, %arg1: i32) -> (i32, i32) {
    %c0_i32 = arith.constant 0 : i32
    %c0_i32_0 = arith.constant 0 : i32
    %c0_i32_1 = arith.constant 0 : i32
    return %c0_i32, %c0_i32_0 : i32, i32
  }
  func.func @transform_4(%arg0: i32, %arg1: i32) -> (i32, i32) {
    %c0_i32 = arith.constant 0 : i32
    %c0_i32_0 = arith.constant 0 : i32
    %c0_i32_1 = arith.constant 0 : i32
    return %c0_i32, %c0_i32_0 : i32, i32
  }
  func.func @transform_5(%arg0: i32, %arg1: i32) -> (i32, i32) {
    %c0_i32 = arith.constant 0 : i32
    %c0_i32_0 = arith.constant 0 : i32
    %c0_i32_1 = arith.constant 0 : i32
    return %c0_i32, %c0_i32_0 : i32, i32
  }
  func.func @transform_6(%arg0: i32, %arg1: i32) -> (i32, i32) {
    %c0_i32 = arith.constant 0 : i32
    %c0_i32_0 = arith.constant 0 : i32
    %c0_i32_1 = arith.constant 0 : i32
    return %c0_i32, %c0_i32_0 : i32, i32
  }
  func.func @transform_7(%arg0: i32, %arg1: i32) -> (i32, i32) {
    %c0_i32 = arith.constant 0 : i32
    %c0_i32_0 = arith.constant 0 : i32
    %c0_i32_1 = arith.constant 0 : i32
    return %c0_i32, %c0_i32_0 : i32, i32
  }
  func.func @transform_8(%arg0: i32, %arg1: i32) -> (i32, i32) {
    %c0_i32 = arith.constant 0 : i32
    %c0_i32_0 = arith.constant 0 : i32
    %c0_i32_1 = arith.constant 0 : i32
    return %c0_i32, %c0_i32_0 : i32, i32
  }
  func.func @transform_9(%arg0: i32, %arg1: i32) -> (i32, i32, i32) {
    %c0_i32 = arith.constant 0 : i32
    %c0_i32_0 = arith.constant 0 : i32
    return %arg0, %arg1, %c0_i32 : i32, i32, i32
  }
  func.func @transform_10(%arg0: i32, %arg1: i32) -> (i32, i32, i32) {
    %c0_i32 = arith.constant 0 : i32
    %c0_i32_0 = arith.constant 0 : i32
    return %arg0, %arg1, %c0_i32 : i32, i32, i32
  }
  func.func @transform_11(%arg0: i32, %arg1: i32) -> (i32, i32, i32) {
    %c0_i32 = arith.constant 0 : i32
    %c0_i32_0 = arith.constant 0 : i32
    return %arg0, %arg1, %c0_i32 : i32, i32, i32
  }
}

module attributes {stable_mosaic.version = 11 : i64} {
  func.func @_flash_attn_kernel(%arg0: i32, %arg1: i32, %arg2: i32, %arg3: memref<1x8x32xbf16, #tpu.memory_space<vmem>>, %arg4: memref<1x8x32xbf16, #tpu.memory_space<vmem>>, %arg5: memref<1x8x32xbf16, #tpu.memory_space<vmem>>, %arg6: memref<1x8x32xbf16, #tpu.memory_space<vmem>>, %arg7: memref<4x8x1xf32, #tpu.memory_space<vmem>>, %arg8: memref<4x8x1xf32, #tpu.memory_space<vmem>>, %arg9: memref<8x32xf32, #tpu.memory_space<vmem>>) attributes {dimension_semantics = [#tpu.dimension_semantics<parallel>, #tpu.dimension_semantics<parallel>, #tpu.dimension_semantics<arbitrary>], iteration_bounds = array<i64: 2, 1, 1>, scalar_prefetch = 0 : i64, scratch_operands = 3 : i64, tpu.core_type = #tpu.core_type<tc>, window_params = [{transform_indices = @transform_0, window_bounds = array<i64: 1, 8, 32>}, {transform_indices = @transform_1, window_bounds = array<i64: 1, 8, 32>}, {transform_indices = @transform_2, window_bounds = array<i64: 1, 8, 32>}, {transform_indices = @transform_3, window_bounds = array<i64: 1, 8, 32>}]} {
    %c0_i32 = arith.constant 0 : i32
    %0 = arith.cmpi eq, %arg2, %c0_i32 : i32
    %1 = arith.extui %0 : i1 to i32
    %c0_i32_0 = arith.constant 0 : i32
    %2 = arith.cmpi ne, %1, %c0_i32_0 : i32
    scf.if %2 {
      %cst = arith.constant 0xFF800000 : f32
      %12 = vector.broadcast %cst : f32 to vector<4x8x1xf32>
      %c0 = arith.constant 0 : index
      %c0_5 = arith.constant 0 : index
      %c0_6 = arith.constant 0 : index
      %13 = vector.load %arg7[%c0, %c0_5, %c0_6] : memref<4x8x1xf32, #tpu.memory_space<vmem>>, vector<4x8x1xf32>
      tpu.vector_store %arg7[%c0, %c0_5, %c0_6], %12 {strides = array<i32>} : memref<4x8x1xf32, #tpu.memory_space<vmem>>, vector<4x8x1xf32>,
      %cst_7 = arith.constant 0.000000e+00 : f32
      %14 = vector.broadcast %cst_7 : f32 to vector<4x8x1xf32>
      %c0_8 = arith.constant 0 : index
      %c0_9 = arith.constant 0 : index
      %c0_10 = arith.constant 0 : index
      %15 = vector.load %arg8[%c0_8, %c0_9, %c0_10] : memref<4x8x1xf32, #tpu.memory_space<vmem>>, vector<4x8x1xf32>
      tpu.vector_store %arg8[%c0_8, %c0_9, %c0_10], %14 {strides = array<i32>} : memref<4x8x1xf32, #tpu.memory_space<vmem>>, vector<4x8x1xf32>,
      %cst_11 = arith.constant 0.000000e+00 : f32
      %16 = vector.broadcast %cst_11 : f32 to vector<8x32xf32>
      %c0_12 = arith.constant 0 : index
      %c0_13 = arith.constant 0 : index
      %17 = vector.load %arg9[%c0_12, %c0_13] : memref<8x32xf32, #tpu.memory_space<vmem>>, vector<8x32xf32>
      tpu.vector_store %arg9[%c0_12, %c0_13], %16 {strides = array<i32>} : memref<8x32xf32, #tpu.memory_space<vmem>>, vector<8x32xf32>,
    } else {
    }
    %3 = arith.cmpi slt, %arg2, %arg1 : i32
    %4 = arith.extui %3 : i1 to i32
    %c0_i32_1 = arith.constant 0 : i32
    %5 = arith.cmpi ne, %4, %c0_i32_1 : i32
    scf.if %5 {
      %c0 = arith.constant 0 : index
      %c0_5 = arith.constant 0 : index
      %c0_6 = arith.constant 0 : index
      %12 = vector.load %arg3[%c0, %c0_5, %c0_6] : memref<1x8x32xbf16, #tpu.memory_space<vmem>>, vector<1x8x8xbf16>
      %13 = vector.shape_cast %12 : vector<1x8x8xbf16> to vector<8x8xbf16>
      %c0_7 = arith.constant 0 : index
      %c0_8 = arith.constant 0 : index
      %c0_9 = arith.constant 0 : index
      %14 = vector.load %arg4[%c0_7, %c0_8, %c0_9] : memref<1x8x32xbf16, #tpu.memory_space<vmem>>, vector<1x8x8xbf16>
      %15 = vector.shape_cast %14 : vector<1x8x8xbf16> to vector<8x8xbf16>
      %cst = arith.constant dense<0.000000e+00> : vector<8x8xf32>
      %16 = tpu.matmul %13, %15, %cst {dimension_numbers = #tpu.dot_dimension_numbers<[1], [1], [0], [0], [0, 0, 1, 0], [], []>} : vector<8x8xbf16>, vector<8x8xbf16>, vector<8x8xf32> -> vector<8x8xf32>
      %c0_10 = arith.constant 0 : index
      %c0_11 = arith.constant 0 : index
      %c0_12 = arith.constant 0 : index
      %17 = vector.load %arg7[%c0_10, %c0_11, %c0_12] : memref<4x8x1xf32, #tpu.memory_space<vmem>>, vector<1x8x1xf32>
      %18 = vector.shape_cast %17 : vector<1x8x1xf32> to vector<8x1xf32>
      %cst_13 = arith.constant dense<0xFF800000> : vector<8xf32>
      %19 = vector.multi_reduction <maximumf>, %16, %cst_13 [1] : vector<8x8xf32> to vector<8xf32>
      %20 = vector.shape_cast %19 : vector<8xf32> to vector<8x1xf32>
      %21 = arith.maximumf %18, %20 : vector<8x1xf32>
      %22 = arith.subf %18, %21 : vector<8x1xf32>
      %23 = math.exp %22 : vector<8x1xf32>
      %24 = vector.broadcast %21 : vector<8x1xf32> to vector<8x8xf32>
      %25 = arith.subf %16, %24 : vector<8x8xf32>
      %26 = math.exp %25 : vector<8x8xf32>
      %c0_14 = arith.constant 0 : index
      %c0_15 = arith.constant 0 : index
      %c0_16 = arith.constant 0 : index
      %27 = vector.load %arg8[%c0_14, %c0_15, %c0_16] : memref<4x8x1xf32, #tpu.memory_space<vmem>>, vector<1x8x1xf32>
      %28 = vector.shape_cast %27 : vector<1x8x1xf32> to vector<8x1xf32>
      %29 = arith.mulf %23, %28 : vector<8x1xf32>
      %cst_17 = arith.constant dense<0.000000e+00> : vector<8xf32>
      %30 = vector.multi_reduction <add>, %26, %cst_17 [1] : vector<8x8xf32> to vector<8xf32>
      %31 = vector.shape_cast %30 : vector<8xf32> to vector<8x1xf32>
      %32 = arith.addf %29, %31 : vector<8x1xf32>
      %c0_18 = arith.constant 0 : index
      %c0_19 = arith.constant 0 : index
      %c0_20 = arith.constant 0 : index
      %33 = vector.load %arg8[%c0_18, %c0_19, %c0_20] : memref<4x8x1xf32, #tpu.memory_space<vmem>>, vector<1x8x1xf32>
      %34 = vector.shape_cast %33 : vector<1x8x1xf32> to vector<8x1xf32>
      %35 = vector.shape_cast %32 : vector<8x1xf32> to vector<1x8x1xf32>
      tpu.vector_store %arg8[%c0_18, %c0_19, %c0_20], %35 {strides = array<i32>} : memref<4x8x1xf32, #tpu.memory_space<vmem>>, vector<1x8x1xf32>,
      %c0_21 = arith.constant 0 : index
      %c0_22 = arith.constant 0 : index
      %c0_23 = arith.constant 0 : index
      %36 = vector.load %arg5[%c0_21, %c0_22, %c0_23] : memref<1x8x32xbf16, #tpu.memory_space<vmem>>, vector<1x8x8xbf16>
      %37 = vector.shape_cast %36 : vector<1x8x8xbf16> to vector<8x8xbf16>
      %38 = arith.truncf %26 : vector<8x8xf32> to vector<8x8xbf16>
      %cst_24 = arith.constant dense<0.000000e+00> : vector<8x8xf32>
      %39 = tpu.matmul %38, %37, %cst_24 {dimension_numbers = #tpu.dot_dimension_numbers<[1], [0], [0], [1], [0, 0, 1, 1], [], []>} : vector<8x8xbf16>, vector<8x8xbf16>, vector<8x8xf32> -> vector<8x8xf32>
      %c0_25 = arith.constant 0 : index
      %c0_26 = arith.constant 0 : index
      %40 = vector.load %arg9[%c0_25, %c0_26] : memref<8x32xf32, #tpu.memory_space<vmem>>, vector<8x8xf32>
      %41 = vector.broadcast %23 : vector<8x1xf32> to vector<8x8xf32>
      %42 = arith.mulf %41, %40 : vector<8x8xf32>
      %43 = arith.addf %42, %39 : vector<8x8xf32>
      %c0_27 = arith.constant 0 : index
      %c0_28 = arith.constant 0 : index
      %44 = vector.load %arg9[%c0_27, %c0_28] : memref<8x32xf32, #tpu.memory_space<vmem>>, vector<8x8xf32>
      tpu.vector_store %arg9[%c0_27, %c0_28], %43 {strides = array<i32>} : memref<8x32xf32, #tpu.memory_space<vmem>>, vector<8x8xf32>,
      %c0_29 = arith.constant 0 : index
      %c0_30 = arith.constant 0 : index
      %c0_31 = arith.constant 0 : index
      %45 = vector.load %arg7[%c0_29, %c0_30, %c0_31] : memref<4x8x1xf32, #tpu.memory_space<vmem>>, vector<1x8x1xf32>
      %46 = vector.shape_cast %45 : vector<1x8x1xf32> to vector<8x1xf32>
      %47 = vector.shape_cast %21 : vector<8x1xf32> to vector<1x8x1xf32>
      tpu.vector_store %arg7[%c0_29, %c0_30, %c0_31], %47 {strides = array<i32>} : memref<4x8x1xf32, #tpu.memory_space<vmem>>, vector<1x8x1xf32>,
      %c0_32 = arith.constant 0 : index
      %c0_33 = arith.constant 0 : index
      %c8 = arith.constant 8 : index
      %48 = vector.load %arg3[%c0_32, %c0_33, %c8] : memref<1x8x32xbf16, #tpu.memory_space<vmem>>, vector<1x8x8xbf16>
      %49 = vector.shape_cast %48 : vector<1x8x8xbf16> to vector<8x8xbf16>
      %c0_34 = arith.constant 0 : index
      %c0_35 = arith.constant 0 : index
      %c8_36 = arith.constant 8 : index
      %50 = vector.load %arg4[%c0_34, %c0_35, %c8_36] : memref<1x8x32xbf16, #tpu.memory_space<vmem>>, vector<1x8x8xbf16>
      %51 = vector.shape_cast %50 : vector<1x8x8xbf16> to vector<8x8xbf16>
      %cst_37 = arith.constant dense<0.000000e+00> : vector<8x8xf32>
      %52 = tpu.matmul %49, %51, %cst_37 {dimension_numbers = #tpu.dot_dimension_numbers<[1], [1], [0], [0], [0, 0, 1, 0], [], []>} : vector<8x8xbf16>, vector<8x8xbf16>, vector<8x8xf32> -> vector<8x8xf32>
      %c1 = arith.constant 1 : index
      %c0_38 = arith.constant 0 : index
      %c0_39 = arith.constant 0 : index
      %53 = vector.load %arg7[%c1, %c0_38, %c0_39] : memref<4x8x1xf32, #tpu.memory_space<vmem>>, vector<1x8x1xf32>
      %54 = vector.shape_cast %53 : vector<1x8x1xf32> to vector<8x1xf32>
      %cst_40 = arith.constant dense<0xFF800000> : vector<8xf32>
      %55 = vector.multi_reduction <maximumf>, %52, %cst_40 [1] : vector<8x8xf32> to vector<8xf32>
      %56 = vector.shape_cast %55 : vector<8xf32> to vector<8x1xf32>
      %57 = arith.maximumf %54, %56 : vector<8x1xf32>
      %58 = arith.subf %54, %57 : vector<8x1xf32>
      %59 = math.exp %58 : vector<8x1xf32>
      %60 = vector.broadcast %57 : vector<8x1xf32> to vector<8x8xf32>
      %61 = arith.subf %52, %60 : vector<8x8xf32>
      %62 = math.exp %61 : vector<8x8xf32>
      %c1_41 = arith.constant 1 : index
      %c0_42 = arith.constant 0 : index
      %c0_43 = arith.constant 0 : index
      %63 = vector.load %arg8[%c1_41, %c0_42, %c0_43] : memref<4x8x1xf32, #tpu.memory_space<vmem>>, vector<1x8x1xf32>
      %64 = vector.shape_cast %63 : vector<1x8x1xf32> to vector<8x1xf32>
      %65 = arith.mulf %59, %64 : vector<8x1xf32>
      %cst_44 = arith.constant dense<0.000000e+00> : vector<8xf32>
      %66 = vector.multi_reduction <add>, %62, %cst_44 [1] : vector<8x8xf32> to vector<8xf32>
      %67 = vector.shape_cast %66 : vector<8xf32> to vector<8x1xf32>
      %68 = arith.addf %65, %67 : vector<8x1xf32>
      %c1_45 = arith.constant 1 : index
      %c0_46 = arith.constant 0 : index
      %c0_47 = arith.constant 0 : index
      %69 = vector.load %arg8[%c1_45, %c0_46, %c0_47] : memref<4x8x1xf32, #tpu.memory_space<vmem>>, vector<1x8x1xf32>
      %70 = vector.shape_cast %69 : vector<1x8x1xf32> to vector<8x1xf32>
      %71 = vector.shape_cast %68 : vector<8x1xf32> to vector<1x8x1xf32>
      tpu.vector_store %arg8[%c1_45, %c0_46, %c0_47], %71 {strides = array<i32>} : memref<4x8x1xf32, #tpu.memory_space<vmem>>, vector<1x8x1xf32>,
      %c0_48 = arith.constant 0 : index
      %c0_49 = arith.constant 0 : index
      %c8_50 = arith.constant 8 : index
      %72 = vector.load %arg5[%c0_48, %c0_49, %c8_50] : memref<1x8x32xbf16, #tpu.memory_space<vmem>>, vector<1x8x8xbf16>
      %73 = vector.shape_cast %72 : vector<1x8x8xbf16> to vector<8x8xbf16>
      %74 = arith.truncf %62 : vector<8x8xf32> to vector<8x8xbf16>
      %cst_51 = arith.constant dense<0.000000e+00> : vector<8x8xf32>
      %75 = tpu.matmul %74, %73, %cst_51 {dimension_numbers = #tpu.dot_dimension_numbers<[1], [0], [0], [1], [0, 0, 1, 1], [], []>} : vector<8x8xbf16>, vector<8x8xbf16>, vector<8x8xf32> -> vector<8x8xf32>
      %c0_52 = arith.constant 0 : index
      %c8_53 = arith.constant 8 : index
      %76 = vector.load %arg9[%c0_52, %c8_53] : memref<8x32xf32, #tpu.memory_space<vmem>>, vector<8x8xf32>
      %77 = vector.broadcast %59 : vector<8x1xf32> to vector<8x8xf32>
      %78 = arith.mulf %77, %76 : vector<8x8xf32>
      %79 = arith.addf %78, %75 : vector<8x8xf32>
      %c0_54 = arith.constant 0 : index
      %c8_55 = arith.constant 8 : index
      %80 = vector.load %arg9[%c0_54, %c8_55] : memref<8x32xf32, #tpu.memory_space<vmem>>, vector<8x8xf32>
      tpu.vector_store %arg9[%c0_54, %c8_55], %79 {strides = array<i32>} : memref<8x32xf32, #tpu.memory_space<vmem>>, vector<8x8xf32>,
      %c1_56 = arith.constant 1 : index
      %c0_57 = arith.constant 0 : index
      %c0_58 = arith.constant 0 : index
      %81 = vector.load %arg7[%c1_56, %c0_57, %c0_58] : memref<4x8x1xf32, #tpu.memory_space<vmem>>, vector<1x8x1xf32>
      %82 = vector.shape_cast %81 : vector<1x8x1xf32> to vector<8x1xf32>
      %83 = vector.shape_cast %57 : vector<8x1xf32> to vector<1x8x1xf32>
      tpu.vector_store %arg7[%c1_56, %c0_57, %c0_58], %83 {strides = array<i32>} : memref<4x8x1xf32, #tpu.memory_space<vmem>>, vector<1x8x1xf32>,
      %c0_59 = arith.constant 0 : index
      %c0_60 = arith.constant 0 : index
      %c16 = arith.constant 16 : index
      %84 = vector.load %arg3[%c0_59, %c0_60, %c16] : memref<1x8x32xbf16, #tpu.memory_space<vmem>>, vector<1x8x8xbf16>
      %85 = vector.shape_cast %84 : vector<1x8x8xbf16> to vector<8x8xbf16>
      %c0_61 = arith.constant 0 : index
      %c0_62 = arith.constant 0 : index
      %c16_63 = arith.constant 16 : index
      %86 = vector.load %arg4[%c0_61, %c0_62, %c16_63] : memref<1x8x32xbf16, #tpu.memory_space<vmem>>, vector<1x8x8xbf16>
      %87 = vector.shape_cast %86 : vector<1x8x8xbf16> to vector<8x8xbf16>
      %cst_64 = arith.constant dense<0.000000e+00> : vector<8x8xf32>
      %88 = tpu.matmul %85, %87, %cst_64 {dimension_numbers = #tpu.dot_dimension_numbers<[1], [1], [0], [0], [0, 0, 1, 0], [], []>} : vector<8x8xbf16>, vector<8x8xbf16>, vector<8x8xf32> -> vector<8x8xf32>
      %c2 = arith.constant 2 : index
      %c0_65 = arith.constant 0 : index
      %c0_66 = arith.constant 0 : index
      %89 = vector.load %arg7[%c2, %c0_65, %c0_66] : memref<4x8x1xf32, #tpu.memory_space<vmem>>, vector<1x8x1xf32>
      %90 = vector.shape_cast %89 : vector<1x8x1xf32> to vector<8x1xf32>
      %cst_67 = arith.constant dense<0xFF800000> : vector<8xf32>
      %91 = vector.multi_reduction <maximumf>, %88, %cst_67 [1] : vector<8x8xf32> to vector<8xf32>
      %92 = vector.shape_cast %91 : vector<8xf32> to vector<8x1xf32>
      %93 = arith.maximumf %90, %92 : vector<8x1xf32>
      %94 = arith.subf %90, %93 : vector<8x1xf32>
      %95 = math.exp %94 : vector<8x1xf32>
      %96 = vector.broadcast %93 : vector<8x1xf32> to vector<8x8xf32>
      %97 = arith.subf %88, %96 : vector<8x8xf32>
      %98 = math.exp %97 : vector<8x8xf32>
      %c2_68 = arith.constant 2 : index
      %c0_69 = arith.constant 0 : index
      %c0_70 = arith.constant 0 : index
      %99 = vector.load %arg8[%c2_68, %c0_69, %c0_70] : memref<4x8x1xf32, #tpu.memory_space<vmem>>, vector<1x8x1xf32>
      %100 = vector.shape_cast %99 : vector<1x8x1xf32> to vector<8x1xf32>
      %101 = arith.mulf %95, %100 : vector<8x1xf32>
      %cst_71 = arith.constant dense<0.000000e+00> : vector<8xf32>
      %102 = vector.multi_reduction <add>, %98, %cst_71 [1] : vector<8x8xf32> to vector<8xf32>
      %103 = vector.shape_cast %102 : vector<8xf32> to vector<8x1xf32>
      %104 = arith.addf %101, %103 : vector<8x1xf32>
      %c2_72 = arith.constant 2 : index
      %c0_73 = arith.constant 0 : index
      %c0_74 = arith.constant 0 : index
      %105 = vector.load %arg8[%c2_72, %c0_73, %c0_74] : memref<4x8x1xf32, #tpu.memory_space<vmem>>, vector<1x8x1xf32>
      %106 = vector.shape_cast %105 : vector<1x8x1xf32> to vector<8x1xf32>
      %107 = vector.shape_cast %104 : vector<8x1xf32> to vector<1x8x1xf32>
      tpu.vector_store %arg8[%c2_72, %c0_73, %c0_74], %107 {strides = array<i32>} : memref<4x8x1xf32, #tpu.memory_space<vmem>>, vector<1x8x1xf32>,
      %c0_75 = arith.constant 0 : index
      %c0_76 = arith.constant 0 : index
      %c16_77 = arith.constant 16 : index
      %108 = vector.load %arg5[%c0_75, %c0_76, %c16_77] : memref<1x8x32xbf16, #tpu.memory_space<vmem>>, vector<1x8x8xbf16>
      %109 = vector.shape_cast %108 : vector<1x8x8xbf16> to vector<8x8xbf16>
      %110 = arith.truncf %98 : vector<8x8xf32> to vector<8x8xbf16>
      %cst_78 = arith.constant dense<0.000000e+00> : vector<8x8xf32>
      %111 = tpu.matmul %110, %109, %cst_78 {dimension_numbers = #tpu.dot_dimension_numbers<[1], [0], [0], [1], [0, 0, 1, 1], [], []>} : vector<8x8xbf16>, vector<8x8xbf16>, vector<8x8xf32> -> vector<8x8xf32>
      %c0_79 = arith.constant 0 : index
      %c16_80 = arith.constant 16 : index
      %112 = vector.load %arg9[%c0_79, %c16_80] : memref<8x32xf32, #tpu.memory_space<vmem>>, vector<8x8xf32>
      %113 = vector.broadcast %95 : vector<8x1xf32> to vector<8x8xf32>
      %114 = arith.mulf %113, %112 : vector<8x8xf32>
      %115 = arith.addf %114, %111 : vector<8x8xf32>
      %c0_81 = arith.constant 0 : index
      %c16_82 = arith.constant 16 : index
      %116 = vector.load %arg9[%c0_81, %c16_82] : memref<8x32xf32, #tpu.memory_space<vmem>>, vector<8x8xf32>
      tpu.vector_store %arg9[%c0_81, %c16_82], %115 {strides = array<i32>} : memref<8x32xf32, #tpu.memory_space<vmem>>, vector<8x8xf32>,
      %c2_83 = arith.constant 2 : index
      %c0_84 = arith.constant 0 : index
      %c0_85 = arith.constant 0 : index
      %117 = vector.load %arg7[%c2_83, %c0_84, %c0_85] : memref<4x8x1xf32, #tpu.memory_space<vmem>>, vector<1x8x1xf32>
      %118 = vector.shape_cast %117 : vector<1x8x1xf32> to vector<8x1xf32>
      %119 = vector.shape_cast %93 : vector<8x1xf32> to vector<1x8x1xf32>
      tpu.vector_store %arg7[%c2_83, %c0_84, %c0_85], %119 {strides = array<i32>} : memref<4x8x1xf32, #tpu.memory_space<vmem>>, vector<1x8x1xf32>,
      %c0_86 = arith.constant 0 : index
      %c0_87 = arith.constant 0 : index
      %c24 = arith.constant 24 : index
      %120 = vector.load %arg3[%c0_86, %c0_87, %c24] : memref<1x8x32xbf16, #tpu.memory_space<vmem>>, vector<1x8x8xbf16>
      %121 = vector.shape_cast %120 : vector<1x8x8xbf16> to vector<8x8xbf16>
      %c0_88 = arith.constant 0 : index
      %c0_89 = arith.constant 0 : index
      %c24_90 = arith.constant 24 : index
      %122 = vector.load %arg4[%c0_88, %c0_89, %c24_90] : memref<1x8x32xbf16, #tpu.memory_space<vmem>>, vector<1x8x8xbf16>
      %123 = vector.shape_cast %122 : vector<1x8x8xbf16> to vector<8x8xbf16>
      %cst_91 = arith.constant dense<0.000000e+00> : vector<8x8xf32>
      %124 = tpu.matmul %121, %123, %cst_91 {dimension_numbers = #tpu.dot_dimension_numbers<[1], [1], [0], [0], [0, 0, 1, 0], [], []>} : vector<8x8xbf16>, vector<8x8xbf16>, vector<8x8xf32> -> vector<8x8xf32>
      %c3 = arith.constant 3 : index
      %c0_92 = arith.constant 0 : index
      %c0_93 = arith.constant 0 : index
      %125 = vector.load %arg7[%c3, %c0_92, %c0_93] : memref<4x8x1xf32, #tpu.memory_space<vmem>>, vector<1x8x1xf32>
      %126 = vector.shape_cast %125 : vector<1x8x1xf32> to vector<8x1xf32>
      %cst_94 = arith.constant dense<0xFF800000> : vector<8xf32>
      %127 = vector.multi_reduction <maximumf>, %124, %cst_94 [1] : vector<8x8xf32> to vector<8xf32>
      %128 = vector.shape_cast %127 : vector<8xf32> to vector<8x1xf32>
      %129 = arith.maximumf %126, %128 : vector<8x1xf32>
      %130 = arith.subf %126, %129 : vector<8x1xf32>
      %131 = math.exp %130 : vector<8x1xf32>
      %132 = vector.broadcast %129 : vector<8x1xf32> to vector<8x8xf32>
      %133 = arith.subf %124, %132 : vector<8x8xf32>
      %134 = math.exp %133 : vector<8x8xf32>
      %c3_95 = arith.constant 3 : index
      %c0_96 = arith.constant 0 : index
      %c0_97 = arith.constant 0 : index
      %135 = vector.load %arg8[%c3_95, %c0_96, %c0_97] : memref<4x8x1xf32, #tpu.memory_space<vmem>>, vector<1x8x1xf32>
      %136 = vector.shape_cast %135 : vector<1x8x1xf32> to vector<8x1xf32>
      %137 = arith.mulf %131, %136 : vector<8x1xf32>
      %cst_98 = arith.constant dense<0.000000e+00> : vector<8xf32>
      %138 = vector.multi_reduction <add>, %134, %cst_98 [1] : vector<8x8xf32> to vector<8xf32>
      %139 = vector.shape_cast %138 : vector<8xf32> to vector<8x1xf32>
      %140 = arith.addf %137, %139 : vector<8x1xf32>
      %c3_99 = arith.constant 3 : index
      %c0_100 = arith.constant 0 : index
      %c0_101 = arith.constant 0 : index
      %141 = vector.load %arg8[%c3_99, %c0_100, %c0_101] : memref<4x8x1xf32, #tpu.memory_space<vmem>>, vector<1x8x1xf32>
      %142 = vector.shape_cast %141 : vector<1x8x1xf32> to vector<8x1xf32>
      %143 = vector.shape_cast %140 : vector<8x1xf32> to vector<1x8x1xf32>
      tpu.vector_store %arg8[%c3_99, %c0_100, %c0_101], %143 {strides = array<i32>} : memref<4x8x1xf32, #tpu.memory_space<vmem>>, vector<1x8x1xf32>,
      %c0_102 = arith.constant 0 : index
      %c0_103 = arith.constant 0 : index
      %c24_104 = arith.constant 24 : index
      %144 = vector.load %arg5[%c0_102, %c0_103, %c24_104] : memref<1x8x32xbf16, #tpu.memory_space<vmem>>, vector<1x8x8xbf16>
      %145 = vector.shape_cast %144 : vector<1x8x8xbf16> to vector<8x8xbf16>
      %146 = arith.truncf %134 : vector<8x8xf32> to vector<8x8xbf16>
      %cst_105 = arith.constant dense<0.000000e+00> : vector<8x8xf32>
      %147 = tpu.matmul %146, %145, %cst_105 {dimension_numbers = #tpu.dot_dimension_numbers<[1], [0], [0], [1], [0, 0, 1, 1], [], []>} : vector<8x8xbf16>, vector<8x8xbf16>, vector<8x8xf32> -> vector<8x8xf32>
      %c0_106 = arith.constant 0 : index
      %c24_107 = arith.constant 24 : index
      %148 = vector.load %arg9[%c0_106, %c24_107] : memref<8x32xf32, #tpu.memory_space<vmem>>, vector<8x8xf32>
      %149 = vector.broadcast %131 : vector<8x1xf32> to vector<8x8xf32>
      %150 = arith.mulf %149, %148 : vector<8x8xf32>
      %151 = arith.addf %150, %147 : vector<8x8xf32>
      %c0_108 = arith.constant 0 : index
      %c24_109 = arith.constant 24 : index
      %152 = vector.load %arg9[%c0_108, %c24_109] : memref<8x32xf32, #tpu.memory_space<vmem>>, vector<8x8xf32>
      tpu.vector_store %arg9[%c0_108, %c24_109], %151 {strides = array<i32>} : memref<8x32xf32, #tpu.memory_space<vmem>>, vector<8x8xf32>,
      %c3_110 = arith.constant 3 : index
      %c0_111 = arith.constant 0 : index
      %c0_112 = arith.constant 0 : index
      %153 = vector.load %arg7[%c3_110, %c0_111, %c0_112] : memref<4x8x1xf32, #tpu.memory_space<vmem>>, vector<1x8x1xf32>
      %154 = vector.shape_cast %153 : vector<1x8x1xf32> to vector<8x1xf32>
      %155 = vector.shape_cast %129 : vector<8x1xf32> to vector<1x8x1xf32>
      tpu.vector_store %arg7[%c3_110, %c0_111, %c0_112], %155 {strides = array<i32>} : memref<4x8x1xf32, #tpu.memory_space<vmem>>, vector<1x8x1xf32>,
    } else {
    }
    %6 = arith.cmpi eq, %arg2, %arg1 : i32
    %7 = arith.extui %6 : i1 to i32
    %c0_i32_2 = arith.constant 0 : i32
    %8 = arith.cmpi ne, %7, %c0_i32_2 : i32
    scf.if %8 {
      %12 = tpu.iota {dimensions = array<i32: 0>} : vector<8x8xi32>
      %13 = tpu.iota {dimensions = array<i32: 1>} : vector<8x8xi32>
      %14 = arith.cmpi sle, %13, %12 : vector<8x8xi32>
      %cst = arith.constant 0.000000e+00 : f32
      %cst_5 = arith.constant -1.000000e+30 : f32
      %15 = vector.broadcast %cst : f32 to vector<8x8xf32>
      %16 = vector.broadcast %cst_5 : f32 to vector<8x8xf32>
      %17 = arith.select %14, %15, %16 : vector<8x8xi1>, vector<8x8xf32>
      %c0 = arith.constant 0 : index
      %c0_6 = arith.constant 0 : index
      %c0_7 = arith.constant 0 : index
      %18 = vector.load %arg3[%c0, %c0_6, %c0_7] : memref<1x8x32xbf16, #tpu.memory_space<vmem>>, vector<1x8x8xbf16>
      %19 = vector.shape_cast %18 : vector<1x8x8xbf16> to vector<8x8xbf16>
      %c0_8 = arith.constant 0 : index
      %c0_9 = arith.constant 0 : index
      %c0_10 = arith.constant 0 : index
      %20 = vector.load %arg4[%c0_8, %c0_9, %c0_10] : memref<1x8x32xbf16, #tpu.memory_space<vmem>>, vector<1x8x8xbf16>
      %21 = vector.shape_cast %20 : vector<1x8x8xbf16> to vector<8x8xbf16>
      %cst_11 = arith.constant dense<0.000000e+00> : vector<8x8xf32>
      %22 = tpu.matmul %19, %21, %cst_11 {dimension_numbers = #tpu.dot_dimension_numbers<[1], [1], [0], [0], [0, 0, 1, 0], [], []>} : vector<8x8xbf16>, vector<8x8xbf16>, vector<8x8xf32> -> vector<8x8xf32>
      %23 = arith.addf %22, %17 : vector<8x8xf32>
      %c0_12 = arith.constant 0 : index
      %c0_13 = arith.constant 0 : index
      %c0_14 = arith.constant 0 : index
      %24 = vector.load %arg7[%c0_12, %c0_13, %c0_14] : memref<4x8x1xf32, #tpu.memory_space<vmem>>, vector<1x8x1xf32>
      %25 = vector.shape_cast %24 : vector<1x8x1xf32> to vector<8x1xf32>
      %cst_15 = arith.constant dense<0xFF800000> : vector<8xf32>
      %26 = vector.multi_reduction <maximumf>, %23, %cst_15 [1] : vector<8x8xf32> to vector<8xf32>
      %27 = vector.shape_cast %26 : vector<8xf32> to vector<8x1xf32>
      %28 = arith.maximumf %25, %27 : vector<8x1xf32>
      %29 = arith.subf %25, %28 : vector<8x1xf32>
      %30 = math.exp %29 : vector<8x1xf32>
      %31 = vector.broadcast %28 : vector<8x1xf32> to vector<8x8xf32>
      %32 = arith.subf %23, %31 : vector<8x8xf32>
      %33 = math.exp %32 : vector<8x8xf32>
      %c0_16 = arith.constant 0 : index
      %c0_17 = arith.constant 0 : index
      %c0_18 = arith.constant 0 : index
      %34 = vector.load %arg8[%c0_16, %c0_17, %c0_18] : memref<4x8x1xf32, #tpu.memory_space<vmem>>, vector<1x8x1xf32>
      %35 = vector.shape_cast %34 : vector<1x8x1xf32> to vector<8x1xf32>
      %36 = arith.mulf %30, %35 : vector<8x1xf32>
      %cst_19 = arith.constant dense<0.000000e+00> : vector<8xf32>
      %37 = vector.multi_reduction <add>, %33, %cst_19 [1] : vector<8x8xf32> to vector<8xf32>
      %38 = vector.shape_cast %37 : vector<8xf32> to vector<8x1xf32>
      %39 = arith.addf %36, %38 : vector<8x1xf32>
      %c0_20 = arith.constant 0 : index
      %c0_21 = arith.constant 0 : index
      %c0_22 = arith.constant 0 : index
      %40 = vector.load %arg8[%c0_20, %c0_21, %c0_22] : memref<4x8x1xf32, #tpu.memory_space<vmem>>, vector<1x8x1xf32>
      %41 = vector.shape_cast %40 : vector<1x8x1xf32> to vector<8x1xf32>
      %42 = vector.shape_cast %39 : vector<8x1xf32> to vector<1x8x1xf32>
      tpu.vector_store %arg8[%c0_20, %c0_21, %c0_22], %42 {strides = array<i32>} : memref<4x8x1xf32, #tpu.memory_space<vmem>>, vector<1x8x1xf32>,
      %c0_23 = arith.constant 0 : index
      %c0_24 = arith.constant 0 : index
      %c0_25 = arith.constant 0 : index
      %43 = vector.load %arg5[%c0_23, %c0_24, %c0_25] : memref<1x8x32xbf16, #tpu.memory_space<vmem>>, vector<1x8x8xbf16>
      %44 = vector.shape_cast %43 : vector<1x8x8xbf16> to vector<8x8xbf16>
      %45 = arith.truncf %33 : vector<8x8xf32> to vector<8x8xbf16>
      %cst_26 = arith.constant dense<0.000000e+00> : vector<8x8xf32>
      %46 = tpu.matmul %45, %44, %cst_26 {dimension_numbers = #tpu.dot_dimension_numbers<[1], [0], [0], [1], [0, 0, 1, 1], [], []>} : vector<8x8xbf16>, vector<8x8xbf16>, vector<8x8xf32> -> vector<8x8xf32>
      %c0_27 = arith.constant 0 : index
      %c0_28 = arith.constant 0 : index
      %47 = vector.load %arg9[%c0_27, %c0_28] : memref<8x32xf32, #tpu.memory_space<vmem>>, vector<8x8xf32>
      %48 = vector.broadcast %30 : vector<8x1xf32> to vector<8x8xf32>
      %49 = arith.mulf %48, %47 : vector<8x8xf32>
      %50 = arith.addf %49, %46 : vector<8x8xf32>
      %c0_29 = arith.constant 0 : index
      %c0_30 = arith.constant 0 : index
      %51 = vector.load %arg9[%c0_29, %c0_30] : memref<8x32xf32, #tpu.memory_space<vmem>>, vector<8x8xf32>
      tpu.vector_store %arg9[%c0_29, %c0_30], %50 {strides = array<i32>} : memref<8x32xf32, #tpu.memory_space<vmem>>, vector<8x8xf32>,
      %c0_31 = arith.constant 0 : index
      %c0_32 = arith.constant 0 : index
      %c0_33 = arith.constant 0 : index
      %52 = vector.load %arg7[%c0_31, %c0_32, %c0_33] : memref<4x8x1xf32, #tpu.memory_space<vmem>>, vector<1x8x1xf32>
      %53 = vector.shape_cast %52 : vector<1x8x1xf32> to vector<8x1xf32>
      %54 = vector.shape_cast %28 : vector<8x1xf32> to vector<1x8x1xf32>
      tpu.vector_store %arg7[%c0_31, %c0_32, %c0_33], %54 {strides = array<i32>} : memref<4x8x1xf32, #tpu.memory_space<vmem>>, vector<1x8x1xf32>,
      %c0_34 = arith.constant 0 : index
      %c0_35 = arith.constant 0 : index
      %c8 = arith.constant 8 : index
      %55 = vector.load %arg3[%c0_34, %c0_35, %c8] : memref<1x8x32xbf16, #tpu.memory_space<vmem>>, vector<1x8x8xbf16>
      %56 = vector.shape_cast %55 : vector<1x8x8xbf16> to vector<8x8xbf16>
      %c0_36 = arith.constant 0 : index
      %c0_37 = arith.constant 0 : index
      %c8_38 = arith.constant 8 : index
      %57 = vector.load %arg4[%c0_36, %c0_37, %c8_38] : memref<1x8x32xbf16, #tpu.memory_space<vmem>>, vector<1x8x8xbf16>
      %58 = vector.shape_cast %57 : vector<1x8x8xbf16> to vector<8x8xbf16>
      %cst_39 = arith.constant dense<0.000000e+00> : vector<8x8xf32>
      %59 = tpu.matmul %56, %58, %cst_39 {dimension_numbers = #tpu.dot_dimension_numbers<[1], [1], [0], [0], [0, 0, 1, 0], [], []>} : vector<8x8xbf16>, vector<8x8xbf16>, vector<8x8xf32> -> vector<8x8xf32>
      %60 = arith.addf %59, %17 : vector<8x8xf32>
      %c1 = arith.constant 1 : index
      %c0_40 = arith.constant 0 : index
      %c0_41 = arith.constant 0 : index
      %61 = vector.load %arg7[%c1, %c0_40, %c0_41] : memref<4x8x1xf32, #tpu.memory_space<vmem>>, vector<1x8x1xf32>
      %62 = vector.shape_cast %61 : vector<1x8x1xf32> to vector<8x1xf32>
      %cst_42 = arith.constant dense<0xFF800000> : vector<8xf32>
      %63 = vector.multi_reduction <maximumf>, %60, %cst_42 [1] : vector<8x8xf32> to vector<8xf32>
      %64 = vector.shape_cast %63 : vector<8xf32> to vector<8x1xf32>
      %65 = arith.maximumf %62, %64 : vector<8x1xf32>
      %66 = arith.subf %62, %65 : vector<8x1xf32>
      %67 = math.exp %66 : vector<8x1xf32>
      %68 = vector.broadcast %65 : vector<8x1xf32> to vector<8x8xf32>
      %69 = arith.subf %60, %68 : vector<8x8xf32>
      %70 = math.exp %69 : vector<8x8xf32>
      %c1_43 = arith.constant 1 : index
      %c0_44 = arith.constant 0 : index
      %c0_45 = arith.constant 0 : index
      %71 = vector.load %arg8[%c1_43, %c0_44, %c0_45] : memref<4x8x1xf32, #tpu.memory_space<vmem>>, vector<1x8x1xf32>
      %72 = vector.shape_cast %71 : vector<1x8x1xf32> to vector<8x1xf32>
      %73 = arith.mulf %67, %72 : vector<8x1xf32>
      %cst_46 = arith.constant dense<0.000000e+00> : vector<8xf32>
      %74 = vector.multi_reduction <add>, %70, %cst_46 [1] : vector<8x8xf32> to vector<8xf32>
      %75 = vector.shape_cast %74 : vector<8xf32> to vector<8x1xf32>
      %76 = arith.addf %73, %75 : vector<8x1xf32>
      %c1_47 = arith.constant 1 : index
      %c0_48 = arith.constant 0 : index
      %c0_49 = arith.constant 0 : index
      %77 = vector.load %arg8[%c1_47, %c0_48, %c0_49] : memref<4x8x1xf32, #tpu.memory_space<vmem>>, vector<1x8x1xf32>
      %78 = vector.shape_cast %77 : vector<1x8x1xf32> to vector<8x1xf32>
      %79 = vector.shape_cast %76 : vector<8x1xf32> to vector<1x8x1xf32>
      tpu.vector_store %arg8[%c1_47, %c0_48, %c0_49], %79 {strides = array<i32>} : memref<4x8x1xf32, #tpu.memory_space<vmem>>, vector<1x8x1xf32>,
      %c0_50 = arith.constant 0 : index
      %c0_51 = arith.constant 0 : index
      %c8_52 = arith.constant 8 : index
      %80 = vector.load %arg5[%c0_50, %c0_51, %c8_52] : memref<1x8x32xbf16, #tpu.memory_space<vmem>>, vector<1x8x8xbf16>
      %81 = vector.shape_cast %80 : vector<1x8x8xbf16> to vector<8x8xbf16>
      %82 = arith.truncf %70 : vector<8x8xf32> to vector<8x8xbf16>
      %cst_53 = arith.constant dense<0.000000e+00> : vector<8x8xf32>
      %83 = tpu.matmul %82, %81, %cst_53 {dimension_numbers = #tpu.dot_dimension_numbers<[1], [0], [0], [1], [0, 0, 1, 1], [], []>} : vector<8x8xbf16>, vector<8x8xbf16>, vector<8x8xf32> -> vector<8x8xf32>
      %c0_54 = arith.constant 0 : index
      %c8_55 = arith.constant 8 : index
      %84 = vector.load %arg9[%c0_54, %c8_55] : memref<8x32xf32, #tpu.memory_space<vmem>>, vector<8x8xf32>
      %85 = vector.broadcast %67 : vector<8x1xf32> to vector<8x8xf32>
      %86 = arith.mulf %85, %84 : vector<8x8xf32>
      %87 = arith.addf %86, %83 : vector<8x8xf32>
      %c0_56 = arith.constant 0 : index
      %c8_57 = arith.constant 8 : index
      %88 = vector.load %arg9[%c0_56, %c8_57] : memref<8x32xf32, #tpu.memory_space<vmem>>, vector<8x8xf32>
      tpu.vector_store %arg9[%c0_56, %c8_57], %87 {strides = array<i32>} : memref<8x32xf32, #tpu.memory_space<vmem>>, vector<8x8xf32>,
      %c1_58 = arith.constant 1 : index
      %c0_59 = arith.constant 0 : index
      %c0_60 = arith.constant 0 : index
      %89 = vector.load %arg7[%c1_58, %c0_59, %c0_60] : memref<4x8x1xf32, #tpu.memory_space<vmem>>, vector<1x8x1xf32>
      %90 = vector.shape_cast %89 : vector<1x8x1xf32> to vector<8x1xf32>
      %91 = vector.shape_cast %65 : vector<8x1xf32> to vector<1x8x1xf32>
      tpu.vector_store %arg7[%c1_58, %c0_59, %c0_60], %91 {strides = array<i32>} : memref<4x8x1xf32, #tpu.memory_space<vmem>>, vector<1x8x1xf32>,
      %c0_61 = arith.constant 0 : index
      %c0_62 = arith.constant 0 : index
      %c16 = arith.constant 16 : index
      %92 = vector.load %arg3[%c0_61, %c0_62, %c16] : memref<1x8x32xbf16, #tpu.memory_space<vmem>>, vector<1x8x8xbf16>
      %93 = vector.shape_cast %92 : vector<1x8x8xbf16> to vector<8x8xbf16>
      %c0_63 = arith.constant 0 : index
      %c0_64 = arith.constant 0 : index
      %c16_65 = arith.constant 16 : index
      %94 = vector.load %arg4[%c0_63, %c0_64, %c16_65] : memref<1x8x32xbf16, #tpu.memory_space<vmem>>, vector<1x8x8xbf16>
      %95 = vector.shape_cast %94 : vector<1x8x8xbf16> to vector<8x8xbf16>
      %cst_66 = arith.constant dense<0.000000e+00> : vector<8x8xf32>
      %96 = tpu.matmul %93, %95, %cst_66 {dimension_numbers = #tpu.dot_dimension_numbers<[1], [1], [0], [0], [0, 0, 1, 0], [], []>} : vector<8x8xbf16>, vector<8x8xbf16>, vector<8x8xf32> -> vector<8x8xf32>
      %97 = arith.addf %96, %17 : vector<8x8xf32>
      %c2 = arith.constant 2 : index
      %c0_67 = arith.constant 0 : index
      %c0_68 = arith.constant 0 : index
      %98 = vector.load %arg7[%c2, %c0_67, %c0_68] : memref<4x8x1xf32, #tpu.memory_space<vmem>>, vector<1x8x1xf32>
      %99 = vector.shape_cast %98 : vector<1x8x1xf32> to vector<8x1xf32>
      %cst_69 = arith.constant dense<0xFF800000> : vector<8xf32>
      %100 = vector.multi_reduction <maximumf>, %97, %cst_69 [1] : vector<8x8xf32> to vector<8xf32>
      %101 = vector.shape_cast %100 : vector<8xf32> to vector<8x1xf32>
      %102 = arith.maximumf %99, %101 : vector<8x1xf32>
      %103 = arith.subf %99, %102 : vector<8x1xf32>
      %104 = math.exp %103 : vector<8x1xf32>
      %105 = vector.broadcast %102 : vector<8x1xf32> to vector<8x8xf32>
      %106 = arith.subf %97, %105 : vector<8x8xf32>
      %107 = math.exp %106 : vector<8x8xf32>
      %c2_70 = arith.constant 2 : index
      %c0_71 = arith.constant 0 : index
      %c0_72 = arith.constant 0 : index
      %108 = vector.load %arg8[%c2_70, %c0_71, %c0_72] : memref<4x8x1xf32, #tpu.memory_space<vmem>>, vector<1x8x1xf32>
      %109 = vector.shape_cast %108 : vector<1x8x1xf32> to vector<8x1xf32>
      %110 = arith.mulf %104, %109 : vector<8x1xf32>
      %cst_73 = arith.constant dense<0.000000e+00> : vector<8xf32>
      %111 = vector.multi_reduction <add>, %107, %cst_73 [1] : vector<8x8xf32> to vector<8xf32>
      %112 = vector.shape_cast %111 : vector<8xf32> to vector<8x1xf32>
      %113 = arith.addf %110, %112 : vector<8x1xf32>
      %c2_74 = arith.constant 2 : index
      %c0_75 = arith.constant 0 : index
      %c0_76 = arith.constant 0 : index
      %114 = vector.load %arg8[%c2_74, %c0_75, %c0_76] : memref<4x8x1xf32, #tpu.memory_space<vmem>>, vector<1x8x1xf32>
      %115 = vector.shape_cast %114 : vector<1x8x1xf32> to vector<8x1xf32>
      %116 = vector.shape_cast %113 : vector<8x1xf32> to vector<1x8x1xf32>
      tpu.vector_store %arg8[%c2_74, %c0_75, %c0_76], %116 {strides = array<i32>} : memref<4x8x1xf32, #tpu.memory_space<vmem>>, vector<1x8x1xf32>,
      %c0_77 = arith.constant 0 : index
      %c0_78 = arith.constant 0 : index
      %c16_79 = arith.constant 16 : index
      %117 = vector.load %arg5[%c0_77, %c0_78, %c16_79] : memref<1x8x32xbf16, #tpu.memory_space<vmem>>, vector<1x8x8xbf16>
      %118 = vector.shape_cast %117 : vector<1x8x8xbf16> to vector<8x8xbf16>
      %119 = arith.truncf %107 : vector<8x8xf32> to vector<8x8xbf16>
      %cst_80 = arith.constant dense<0.000000e+00> : vector<8x8xf32>
      %120 = tpu.matmul %119, %118, %cst_80 {dimension_numbers = #tpu.dot_dimension_numbers<[1], [0], [0], [1], [0, 0, 1, 1], [], []>} : vector<8x8xbf16>, vector<8x8xbf16>, vector<8x8xf32> -> vector<8x8xf32>
      %c0_81 = arith.constant 0 : index
      %c16_82 = arith.constant 16 : index
      %121 = vector.load %arg9[%c0_81, %c16_82] : memref<8x32xf32, #tpu.memory_space<vmem>>, vector<8x8xf32>
      %122 = vector.broadcast %104 : vector<8x1xf32> to vector<8x8xf32>
      %123 = arith.mulf %122, %121 : vector<8x8xf32>
      %124 = arith.addf %123, %120 : vector<8x8xf32>
      %c0_83 = arith.constant 0 : index
      %c16_84 = arith.constant 16 : index
      %125 = vector.load %arg9[%c0_83, %c16_84] : memref<8x32xf32, #tpu.memory_space<vmem>>, vector<8x8xf32>
      tpu.vector_store %arg9[%c0_83, %c16_84], %124 {strides = array<i32>} : memref<8x32xf32, #tpu.memory_space<vmem>>, vector<8x8xf32>,
      %c2_85 = arith.constant 2 : index
      %c0_86 = arith.constant 0 : index
      %c0_87 = arith.constant 0 : index
      %126 = vector.load %arg7[%c2_85, %c0_86, %c0_87] : memref<4x8x1xf32, #tpu.memory_space<vmem>>, vector<1x8x1xf32>
      %127 = vector.shape_cast %126 : vector<1x8x1xf32> to vector<8x1xf32>
      %128 = vector.shape_cast %102 : vector<8x1xf32> to vector<1x8x1xf32>
      tpu.vector_store %arg7[%c2_85, %c0_86, %c0_87], %128 {strides = array<i32>} : memref<4x8x1xf32, #tpu.memory_space<vmem>>, vector<1x8x1xf32>,
      %c0_88 = arith.constant 0 : index
      %c0_89 = arith.constant 0 : index
      %c24 = arith.constant 24 : index
      %129 = vector.load %arg3[%c0_88, %c0_89, %c24] : memref<1x8x32xbf16, #tpu.memory_space<vmem>>, vector<1x8x8xbf16>
      %130 = vector.shape_cast %129 : vector<1x8x8xbf16> to vector<8x8xbf16>
      %c0_90 = arith.constant 0 : index
      %c0_91 = arith.constant 0 : index
      %c24_92 = arith.constant 24 : index
      %131 = vector.load %arg4[%c0_90, %c0_91, %c24_92] : memref<1x8x32xbf16, #tpu.memory_space<vmem>>, vector<1x8x8xbf16>
      %132 = vector.shape_cast %131 : vector<1x8x8xbf16> to vector<8x8xbf16>
      %cst_93 = arith.constant dense<0.000000e+00> : vector<8x8xf32>
      %133 = tpu.matmul %130, %132, %cst_93 {dimension_numbers = #tpu.dot_dimension_numbers<[1], [1], [0], [0], [0, 0, 1, 0], [], []>} : vector<8x8xbf16>, vector<8x8xbf16>, vector<8x8xf32> -> vector<8x8xf32>
      %134 = arith.addf %133, %17 : vector<8x8xf32>
      %c3 = arith.constant 3 : index
      %c0_94 = arith.constant 0 : index
      %c0_95 = arith.constant 0 : index
      %135 = vector.load %arg7[%c3, %c0_94, %c0_95] : memref<4x8x1xf32, #tpu.memory_space<vmem>>, vector<1x8x1xf32>
      %136 = vector.shape_cast %135 : vector<1x8x1xf32> to vector<8x1xf32>
      %cst_96 = arith.constant dense<0xFF800000> : vector<8xf32>
      %137 = vector.multi_reduction <maximumf>, %134, %cst_96 [1] : vector<8x8xf32> to vector<8xf32>
      %138 = vector.shape_cast %137 : vector<8xf32> to vector<8x1xf32>
      %139 = arith.maximumf %136, %138 : vector<8x1xf32>
      %140 = arith.subf %136, %139 : vector<8x1xf32>
      %141 = math.exp %140 : vector<8x1xf32>
      %142 = vector.broadcast %139 : vector<8x1xf32> to vector<8x8xf32>
      %143 = arith.subf %134, %142 : vector<8x8xf32>
      %144 = math.exp %143 : vector<8x8xf32>
      %c3_97 = arith.constant 3 : index
      %c0_98 = arith.constant 0 : index
      %c0_99 = arith.constant 0 : index
      %145 = vector.load %arg8[%c3_97, %c0_98, %c0_99] : memref<4x8x1xf32, #tpu.memory_space<vmem>>, vector<1x8x1xf32>
      %146 = vector.shape_cast %145 : vector<1x8x1xf32> to vector<8x1xf32>
      %147 = arith.mulf %141, %146 : vector<8x1xf32>
      %cst_100 = arith.constant dense<0.000000e+00> : vector<8xf32>
      %148 = vector.multi_reduction <add>, %144, %cst_100 [1] : vector<8x8xf32> to vector<8xf32>
      %149 = vector.shape_cast %148 : vector<8xf32> to vector<8x1xf32>
      %150 = arith.addf %147, %149 : vector<8x1xf32>
      %c3_101 = arith.constant 3 : index
      %c0_102 = arith.constant 0 : index
      %c0_103 = arith.constant 0 : index
      %151 = vector.load %arg8[%c3_101, %c0_102, %c0_103] : memref<4x8x1xf32, #tpu.memory_space<vmem>>, vector<1x8x1xf32>
      %152 = vector.shape_cast %151 : vector<1x8x1xf32> to vector<8x1xf32>
      %153 = vector.shape_cast %150 : vector<8x1xf32> to vector<1x8x1xf32>
      tpu.vector_store %arg8[%c3_101, %c0_102, %c0_103], %153 {strides = array<i32>} : memref<4x8x1xf32, #tpu.memory_space<vmem>>, vector<1x8x1xf32>,
      %c0_104 = arith.constant 0 : index
      %c0_105 = arith.constant 0 : index
      %c24_106 = arith.constant 24 : index
      %154 = vector.load %arg5[%c0_104, %c0_105, %c24_106] : memref<1x8x32xbf16, #tpu.memory_space<vmem>>, vector<1x8x8xbf16>
      %155 = vector.shape_cast %154 : vector<1x8x8xbf16> to vector<8x8xbf16>
      %156 = arith.truncf %144 : vector<8x8xf32> to vector<8x8xbf16>
      %cst_107 = arith.constant dense<0.000000e+00> : vector<8x8xf32>
      %157 = tpu.matmul %156, %155, %cst_107 {dimension_numbers = #tpu.dot_dimension_numbers<[1], [0], [0], [1], [0, 0, 1, 1], [], []>} : vector<8x8xbf16>, vector<8x8xbf16>, vector<8x8xf32> -> vector<8x8xf32>
      %c0_108 = arith.constant 0 : index
      %c24_109 = arith.constant 24 : index
      %158 = vector.load %arg9[%c0_108, %c24_109] : memref<8x32xf32, #tpu.memory_space<vmem>>, vector<8x8xf32>
      %159 = vector.broadcast %141 : vector<8x1xf32> to vector<8x8xf32>
      %160 = arith.mulf %159, %158 : vector<8x8xf32>
      %161 = arith.addf %160, %157 : vector<8x8xf32>
      %c0_110 = arith.constant 0 : index
      %c24_111 = arith.constant 24 : index
      %162 = vector.load %arg9[%c0_110, %c24_111] : memref<8x32xf32, #tpu.memory_space<vmem>>, vector<8x8xf32>
      tpu.vector_store %arg9[%c0_110, %c24_111], %161 {strides = array<i32>} : memref<8x32xf32, #tpu.memory_space<vmem>>, vector<8x8xf32>,
      %c3_112 = arith.constant 3 : index
      %c0_113 = arith.constant 0 : index
      %c0_114 = arith.constant 0 : index
      %163 = vector.load %arg7[%c3_112, %c0_113, %c0_114] : memref<4x8x1xf32, #tpu.memory_space<vmem>>, vector<1x8x1xf32>
      %164 = vector.shape_cast %163 : vector<1x8x1xf32> to vector<8x1xf32>
      %165 = vector.shape_cast %139 : vector<8x1xf32> to vector<1x8x1xf32>
      tpu.vector_store %arg7[%c3_112, %c0_113, %c0_114], %165 {strides = array<i32>} : memref<4x8x1xf32, #tpu.memory_space<vmem>>, vector<1x8x1xf32>,
    } else {
    }
    %c0_i32_3 = arith.constant 0 : i32
    %9 = arith.cmpi eq, %arg2, %c0_i32_3 : i32
    %10 = arith.extui %9 : i1 to i32
    %c0_i32_4 = arith.constant 0 : i32
    %11 = arith.cmpi ne, %10, %c0_i32_4 : i32
    scf.if %11 {
      %c0 = arith.constant 0 : index
      %c0_5 = arith.constant 0 : index
      %12 = vector.load %arg9[%c0, %c0_5] : memref<8x32xf32, #tpu.memory_space<vmem>>, vector<8x8xf32>
      %c0_6 = arith.constant 0 : index
      %c0_7 = arith.constant 0 : index
      %c0_8 = arith.constant 0 : index
      %13 = vector.load %arg8[%c0_6, %c0_7, %c0_8] : memref<4x8x1xf32, #tpu.memory_space<vmem>>, vector<1x8x1xf32>
      %14 = vector.shape_cast %13 : vector<1x8x1xf32> to vector<8x1xf32>
      %15 = tpu.reciprocal %14 {approx = true} : vector<8x1xf32> -> vector<8x1xf32>
      %16 = vector.broadcast %15 : vector<8x1xf32> to vector<8x8xf32>
      %17 = arith.mulf %12, %16 : vector<8x8xf32>
      %c0_9 = arith.constant 0 : index
      %c0_10 = arith.constant 0 : index
      %18 = vector.load %arg9[%c0_9, %c0_10] : memref<8x32xf32, #tpu.memory_space<vmem>>, vector<8x8xf32>
      tpu.vector_store %arg9[%c0_9, %c0_10], %17 {strides = array<i32>} : memref<8x32xf32, #tpu.memory_space<vmem>>, vector<8x8xf32>,
      %c0_11 = arith.constant 0 : index
      %c8 = arith.constant 8 : index
      %19 = vector.load %arg9[%c0_11, %c8] : memref<8x32xf32, #tpu.memory_space<vmem>>, vector<8x8xf32>
      %c1 = arith.constant 1 : index
      %c0_12 = arith.constant 0 : index
      %c0_13 = arith.constant 0 : index
      %20 = vector.load %arg8[%c1, %c0_12, %c0_13] : memref<4x8x1xf32, #tpu.memory_space<vmem>>, vector<1x8x1xf32>
      %21 = vector.shape_cast %20 : vector<1x8x1xf32> to vector<8x1xf32>
      %22 = tpu.reciprocal %21 {approx = true} : vector<8x1xf32> -> vector<8x1xf32>
      %23 = vector.broadcast %22 : vector<8x1xf32> to vector<8x8xf32>
      %24 = arith.mulf %19, %23 : vector<8x8xf32>
      %c0_14 = arith.constant 0 : index
      %c8_15 = arith.constant 8 : index
      %25 = vector.load %arg9[%c0_14, %c8_15] : memref<8x32xf32, #tpu.memory_space<vmem>>, vector<8x8xf32>
      tpu.vector_store %arg9[%c0_14, %c8_15], %24 {strides = array<i32>} : memref<8x32xf32, #tpu.memory_space<vmem>>, vector<8x8xf32>,
      %c0_16 = arith.constant 0 : index
      %c16 = arith.constant 16 : index
      %26 = vector.load %arg9[%c0_16, %c16] : memref<8x32xf32, #tpu.memory_space<vmem>>, vector<8x8xf32>
      %c2 = arith.constant 2 : index
      %c0_17 = arith.constant 0 : index
      %c0_18 = arith.constant 0 : index
      %27 = vector.load %arg8[%c2, %c0_17, %c0_18] : memref<4x8x1xf32, #tpu.memory_space<vmem>>, vector<1x8x1xf32>
      %28 = vector.shape_cast %27 : vector<1x8x1xf32> to vector<8x1xf32>
      %29 = tpu.reciprocal %28 {approx = true} : vector<8x1xf32> -> vector<8x1xf32>
      %30 = vector.broadcast %29 : vector<8x1xf32> to vector<8x8xf32>
      %31 = arith.mulf %26, %30 : vector<8x8xf32>
      %c0_19 = arith.constant 0 : index
      %c16_20 = arith.constant 16 : index
      %32 = vector.load %arg9[%c0_19, %c16_20] : memref<8x32xf32, #tpu.memory_space<vmem>>, vector<8x8xf32>
      tpu.vector_store %arg9[%c0_19, %c16_20], %31 {strides = array<i32>} : memref<8x32xf32, #tpu.memory_space<vmem>>, vector<8x8xf32>,
      %c0_21 = arith.constant 0 : index
      %c24 = arith.constant 24 : index
      %33 = vector.load %arg9[%c0_21, %c24] : memref<8x32xf32, #tpu.memory_space<vmem>>, vector<8x8xf32>
      %c3 = arith.constant 3 : index
      %c0_22 = arith.constant 0 : index
      %c0_23 = arith.constant 0 : index
      %34 = vector.load %arg8[%c3, %c0_22, %c0_23] : memref<4x8x1xf32, #tpu.memory_space<vmem>>, vector<1x8x1xf32>
      %35 = vector.shape_cast %34 : vector<1x8x1xf32> to vector<8x1xf32>
      %36 = tpu.reciprocal %35 {approx = true} : vector<8x1xf32> -> vector<8x1xf32>
      %37 = vector.broadcast %36 : vector<8x1xf32> to vector<8x8xf32>
      %38 = arith.mulf %33, %37 : vector<8x8xf32>
      %c0_24 = arith.constant 0 : index
      %c24_25 = arith.constant 24 : index
      %39 = vector.load %arg9[%c0_24, %c24_25] : memref<8x32xf32, #tpu.memory_space<vmem>>, vector<8x8xf32>
      tpu.vector_store %arg9[%c0_24, %c24_25], %38 {strides = array<i32>} : memref<8x32xf32, #tpu.memory_space<vmem>>, vector<8x8xf32>,
      %c0_26 = arith.constant 0 : index
      %c0_27 = arith.constant 0 : index
      %40 = vector.load %arg9[%c0_26, %c0_27] : memref<8x32xf32, #tpu.memory_space<vmem>>, vector<8x32xf32>
      %41 = arith.truncf %40 : vector<8x32xf32> to vector<8x32xbf16>
      %c0_28 = arith.constant 0 : index
      %c0_29 = arith.constant 0 : index
      %c0_30 = arith.constant 0 : index
      %42 = vector.load %arg6[%c0_28, %c0_29, %c0_30] : memref<1x8x32xbf16, #tpu.memory_space<vmem>>, vector<1x8x32xbf16>
      %43 = vector.shape_cast %42 : vector<1x8x32xbf16> to vector<8x32xbf16>
      %44 = vector.shape_cast %41 : vector<8x32xbf16> to vector<1x8x32xbf16>
      tpu.vector_store %arg6[%c0_28, %c0_29, %c0_30], %44 {strides = array<i32>} : memref<1x8x32xbf16, #tpu.memory_space<vmem>>, vector<1x8x32xbf16>,
    } else {
    }
    return
  }
  func.func @transform_0(%arg0: i32, %arg1: i32, %arg2: i32) -> (i32, i32, i32) {
    %c0_i32 = arith.constant 0 : i32
    %c0_i32_0 = arith.constant 0 : i32
    return %arg0, %arg1, %c0_i32 : i32, i32, i32
  }
  func.func @transform_1(%arg0: i32, %arg1: i32, %arg2: i32) -> (i32, i32, i32) {
    %0 = arith.minsi %arg2, %arg1 : i32
    %c0_i32 = arith.constant 0 : i32
    %c0_i32_0 = arith.constant 0 : i32
    return %arg0, %0, %c0_i32 : i32, i32, i32
  }
  func.func @transform_2(%arg0: i32, %arg1: i32, %arg2: i32) -> (i32, i32, i32) {
    %0 = arith.minsi %arg2, %arg1 : i32
    %c0_i32 = arith.constant 0 : i32
    %c0_i32_0 = arith.constant 0 : i32
    return %arg0, %0, %c0_i32 : i32, i32, i32
  }
  func.func @transform_3(%arg0: i32, %arg1: i32, %arg2: i32) -> (i32, i32, i32) {
    %c0_i32 = arith.constant 0 : i32
    %c0_i32_0 = arith.constant 0 : i32
    return %arg0, %arg1, %c0_i32 : i32, i32, i32
  }
}

</mosaic_0001>

<llo_original>
// kernel: block_forward.3
$region0: #{block_forward.3}
  #allocation0 [shape = 'u32[]', space=smem, size = 0x4, offset = 0x4, fixed_abs, tag = 'smem constant byte address 0x4 - core index']
  #allocation1 [shape = 'u32[144,128]{1,0:T(1,128)}', space=vmem, size = 0x12000, scoped, tag = 'internal scratch']
  %s0 = inlined_call_operand.vmem [shape: f32[2,8,32], index: 0, kind: input, shape index: {}]
  %s1 = inlined_call_operand.vmem [shape: f32[1,32], index: 1, kind: input, shape index: {}]
  %s2 = inlined_call_operand.vmem [shape: f32[1,32], index: 2, kind: input, shape index: {}]
  %s3 = inlined_call_operand.vmem [shape: bf16[32,32], index: 3, kind: input, shape index: {}]
  %s4 = inlined_call_operand.vmem [shape: bf16[32,32], index: 4, kind: input, shape index: {}]
  %s5 = inlined_call_operand.vmem [shape: bf16[32,32], index: 5, kind: input, shape index: {}]
  %s6 = inlined_call_operand.vmem [shape: f32[1,32], index: 6, kind: input, shape index: {}]
  %s7 = inlined_call_operand.vmem [shape: f32[1,32], index: 7, kind: input, shape index: {}]
  %s8 = inlined_call_operand.vmem [shape: f32[1,32], index: 8, kind: input, shape index: {}]
  %s9 = inlined_call_operand.vmem [shape: bf16[2,8,32], index: 9, kind: output, shape index: {0}]
  %s10 = inlined_call_operand.vmem [shape: bf16[2,8,32], index: 10, kind: output, shape index: {1}]
  %s11 = inlined_call_operand.vmem [shape: bf16[2,8,32], index: 11, kind: output, shape index: {2}]
  %12 = xla_tuple %s9, %s10, %s11
  %s13 = sld [smem:[#allocation0]]
  $region85: #{block_forward.3} parent=0
    _
  %s15 = ssub.s32 1, %s13
  %s16 = scalar_select 0, %s15, %s13
  loop: start=0, step=1, limit=4
  $region2: #{block_forward.3} parent=0 // loop_pre_header
    _
  $region3: #{block_forward.3} parent=0 // loop_header
    %s18 = sphi 0, %s22
    %p19 = scmp.ge.s32.totalorder %s18, 4
    %s25 = sphi 0, %s37
    %s26 = sphi 0, %s33
    %s27 = sphi 0, %s25
    %s28 = sphi 0, %s26
    %s29 = sphi 0, %s27
    %s30 = sphi 0, %s28
    %s42 = sphi 0, %s44
    %s45 = sphi 0, %s42
    %s46 = sphi 0, %s45
    %s62 = sphi 0, %s46
    %s66 = sphi 0, %s66
    %s68 = sphi 0, %s66
    %s69 = sphi 0, %s68
    %s83 = sphi 0, %s69
    %s87 = sphi 0, %s87
    %s89 = sphi 0, %s87
    %s90 = sphi 0, %s89
    %s104 = sphi 0, %s90
    %s108 = sphi 0, %s108
    %s110 = sphi 0, %s108
    %s111 = sphi 0, %s110
    %s125 = sphi 0, %s111
    %s129 = sphi 0, %s129
    %s131 = sphi 0, %s129
    %s132 = sphi 0, %s131
    %s146 = sphi 0, %s132
    %s150 = sphi 0, %s150
    %s152 = sphi 0, %s150
    %s153 = sphi 0, %s152
    %s167 = sphi 0, %s153
    %s171 = sphi 0, %s171
    %s173 = sphi 0, %s171
    %s174 = sphi 0, %s173
    %s188 = sphi 0, %s174
    %s192 = sphi 0, %s192
    %s194 = sphi 0, %s192
    %s195 = sphi 0, %s194
    %s209 = sphi 0, %s195
    %s213 = sphi 0, %s213
    %s215 = sphi 0, %s213
    %s216 = sphi 0, %s215
    %s230 = sphi 0, %s216
    %s238 = sphi 0, %s240
    %s241 = sphi 0, %s238
    %s242 = sphi 0, %s241
    %s258 = sphi 0, %s242
    %s266 = sphi 0, %s268
    %s269 = sphi 0, %s266
    %s270 = sphi 0, %s269
    %s286 = sphi 0, %s270
    %s294 = sphi 0, %s296
    %s297 = sphi 0, %s294
    %s298 = sphi 0, %s297
    %s314 = sphi 0, %s298
  $region4: #{block_forward.3} parent=0 // loop_header_branch
    %21 = sbr.rel (%p19) target = $region8
  $region5: #{block_forward.3} parent=0 // loop_body
    %s23 = ssub.s32 %s18, 1
    %s24 = ssub.s32 %s18, 2
    %s31 = sadd.s32 1, %s26
    %p32 = scmp.ge.s32.totalorder %s31, 1
    %s33 = scalar_select %p32, 0, %s31
    %s34 = sadd.s32 1, %s25
    %s35 = scalar_select %p32, %s34, %s25
    %p36 = scmp.ge.s32.totalorder %s35, 2
    %s37 = scalar_select %p36, 0, %s35
    %s38 = ssub.s32 %s25, %s37
    %s39 = ssub.s32 %s26, %s33
    %s40 = sor.u32 %s38, %s39
    %p41 = scmp.eq.s32.totalorder %s40, 0
    %s43 = sadd.s32 %s42, 1
    %s44 = scalar_select %p41, %s42, %s43
    %p47 = pneg %p41
    %p48 = scmp.eq.s32.totalorder %s18, 1
    %p49 = por %p47, %p48
    %p50 = scmp.ne.s32.totalorder %s42, %s45
    %p51 = scmp.eq.s32.totalorder %s18, 0
    %p52 = por %p50, %p51
    %p53 = scmp.ne.s32.totalorder %s42, %s45
    %p54 = scmp.eq.s32.totalorder %s23, 1
    %p55 = por %p53, %p54
    %p56 = scmp.ne.s32.totalorder %s45, %s46
    %p57 = scmp.eq.s32.totalorder %s23, 0
    %p58 = por %p56, %p57
    %p59 = scmp.ne.s32.totalorder %s45, %s46
    %p60 = scmp.eq.s32.totalorder %s24, 1
    %p61 = por %p59, %p60
    %p63 = scmp.ne.s32.totalorder %s46, %s62
    %p64 = scmp.eq.s32.totalorder %s24, 0
    %p65 = por %p63, %p64
    %s67 = sadd.s32 %s66, 1
    %p70 = scmp.eq.s32.totalorder %s18, 1
    %p71 = scmp.ne.s32.totalorder %s66, %s68
    %p72 = scmp.eq.s32.totalorder %s18, 0
    %p73 = por %p71, %p72
    %p74 = scmp.ne.s32.totalorder %s66, %s68
    %p75 = scmp.eq.s32.totalorder %s23, 1
    %p76 = por %p74, %p75
    %p77 = scmp.ne.s32.totalorder %s68, %s69
    %p78 = scmp.eq.s32.totalorder %s23, 0
    %p79 = por %p77, %p78
    %p80 = scmp.ne.s32.totalorder %s68, %s69
    %p81 = scmp.eq.s32.totalorder %s24, 1
    %p82 = por %p80, %p81
    %p84 = scmp.ne.s32.totalorder %s69, %s83
    %p85 = scmp.eq.s32.totalorder %s24, 0
    %p86 = por %p84, %p85
    %s88 = sadd.s32 %s87, 1
    %p91 = scmp.eq.s32.totalorder %s18, 1
    %p92 = scmp.ne.s32.totalorder %s87, %s89
    %p93 = scmp.eq.s32.totalorder %s18, 0
    %p94 = por %p92, %p93
    %p95 = scmp.ne.s32.totalorder %s87, %s89
    %p96 = scmp.eq.s32.totalorder %s23, 1
    %p97 = por %p95, %p96
    %p98 = scmp.ne.s32.totalorder %s89, %s90
    %p99 = scmp.eq.s32.totalorder %s23, 0
    %p100 = por %p98, %p99
    %p101 = scmp.ne.s32.totalorder %s89, %s90
    %p102 = scmp.eq.s32.totalorder %s24, 1
    %p103 = por %p101, %p102
    %p105 = scmp.ne.s32.totalorder %s90, %s104
    %p106 = scmp.eq.s32.totalorder %s24, 0
    %p107 = por %p105, %p106
    %s109 = sadd.s32 %s108, 1
    %p112 = scmp.eq.s32.totalorder %s18, 1
    %p113 = scmp.ne.s32.totalorder %s108, %s110
    %p114 = scmp.eq.s32.totalorder %s18, 0
    %p115 = por %p113, %p114
    %p116 = scmp.ne.s32.totalorder %s108, %s110
    %p117 = scmp.eq.s32.totalorder %s23, 1
    %p118 = por %p116, %p117
    %p119 = scmp.ne.s32.totalorder %s110, %s111
    %p120 = scmp.eq.s32.totalorder %s23, 0
    %p121 = por %p119, %p120
    %p122 = scmp.ne.s32.totalorder %s110, %s111
    %p123 = scmp.eq.s32.totalorder %s24, 1
    %p124 = por %p122, %p123
    %p126 = scmp.ne.s32.totalorder %s111, %s125
    %p127 = scmp.eq.s32.totalorder %s24, 0
    %p128 = por %p126, %p127
    %s130 = sadd.s32 %s129, 1
    %p133 = scmp.eq.s32.totalorder %s18, 1
    %p134 = scmp.ne.s32.totalorder %s129, %s131
    %p135 = scmp.eq.s32.totalorder %s18, 0
    %p136 = por %p134, %p135
    %p137 = scmp.ne.s32.totalorder %s129, %s131
    %p138 = scmp.eq.s32.totalorder %s23, 1
    %p139 = por %p137, %p138
    %p140 = scmp.ne.s32.totalorder %s131, %s132
    %p141 = scmp.eq.s32.totalorder %s23, 0
    %p142 = por %p140, %p141
    %p143 = scmp.ne.s32.totalorder %s131, %s132
    %p144 = scmp.eq.s32.totalorder %s24, 1
    %p145 = por %p143, %p144
    %p147 = scmp.ne.s32.totalorder %s132, %s146
    %p148 = scmp.eq.s32.totalorder %s24, 0
    %p149 = por %p147, %p148
    %s151 = sadd.s32 %s150, 1
    %p154 = scmp.eq.s32.totalorder %s18, 1
    %p155 = scmp.ne.s32.totalorder %s150, %s152
    %p156 = scmp.eq.s32.totalorder %s18, 0
    %p157 = por %p155, %p156
    %p158 = scmp.ne.s32.totalorder %s150, %s152
    %p159 = scmp.eq.s32.totalorder %s23, 1
    %p160 = por %p158, %p159
    %p161 = scmp.ne.s32.totalorder %s152, %s153
    %p162 = scmp.eq.s32.totalorder %s23, 0
    %p163 = por %p161, %p162
    %p164 = scmp.ne.s32.totalorder %s152, %s153
    %p165 = scmp.eq.s32.totalorder %s24, 1
    %p166 = por %p164, %p165
    %p168 = scmp.ne.s32.totalorder %s153, %s167
    %p169 = scmp.eq.s32.totalorder %s24, 0
    %p170 = por %p168, %p169
    %s172 = sadd.s32 %s171, 1
    %p175 = scmp.eq.s32.totalorder %s18, 1
    %p176 = scmp.ne.s32.totalorder %s171, %s173
    %p177 = scmp.eq.s32.totalorder %s18, 0
    %p178 = por %p176, %p177
    %p179 = scmp.ne.s32.totalorder %s171, %s173
    %p180 = scmp.eq.s32.totalorder %s23, 1
    %p181 = por %p179, %p180
    %p182 = scmp.ne.s32.totalorder %s173, %s174
    %p183 = scmp.eq.s32.totalorder %s23, 0
    %p184 = por %p182, %p183
    %p185 = scmp.ne.s32.totalorder %s173, %s174
    %p186 = scmp.eq.s32.totalorder %s24, 1
    %p187 = por %p185, %p186
    %p189 = scmp.ne.s32.totalorder %s174, %s188
    %p190 = scmp.eq.s32.totalorder %s24, 0
    %p191 = por %p189, %p190
    %s193 = sadd.s32 %s192, 1
    %p196 = scmp.eq.s32.totalorder %s18, 1
    %p197 = scmp.ne.s32.totalorder %s192, %s194
    %p198 = scmp.eq.s32.totalorder %s18, 0
    %p199 = por %p197, %p198
    %p200 = scmp.ne.s32.totalorder %s192, %s194
    %p201 = scmp.eq.s32.totalorder %s23, 1
    %p202 = por %p200, %p201
    %p203 = scmp.ne.s32.totalorder %s194, %s195
    %p204 = scmp.eq.s32.totalorder %s23, 0
    %p205 = por %p203, %p204
    %p206 = scmp.ne.s32.totalorder %s194, %s195
    %p207 = scmp.eq.s32.totalorder %s24, 1
    %p208 = por %p206, %p207
    %p210 = scmp.ne.s32.totalorder %s195, %s209
    %p211 = scmp.eq.s32.totalorder %s24, 0
    %p212 = por %p210, %p211
    %s214 = sadd.s32 %s213, 1
    %p217 = scmp.eq.s32.totalorder %s18, 1
    %p218 = scmp.ne.s32.totalorder %s213, %s215
    %p219 = scmp.eq.s32.totalorder %s18, 0
    %p220 = por %p218, %p219
    %p221 = scmp.ne.s32.totalorder %s213, %s215
    %p222 = scmp.eq.s32.totalorder %s23, 1
    %p223 = por %p221, %p222
    %p224 = scmp.ne.s32.totalorder %s215, %s216
    %p225 = scmp.eq.s32.totalorder %s23, 0
    %p226 = por %p224, %p225
    %p227 = scmp.ne.s32.totalorder %s215, %s216
    %p228 = scmp.eq.s32.totalorder %s24, 1
    %p229 = por %p227, %p228
    %p231 = scmp.ne.s32.totalorder %s216, %s230
    %p232 = scmp.eq.s32.totalorder %s24, 0
    %p233 = por %p231, %p232
    %s234 = ssub.s32 %s25, %s37
    %s235 = ssub.s32 %s26, %s33
    %s236 = sor.u32 %s234, %s235
    %p237 = scmp.eq.s32.totalorder %s236, 0
    %s239 = sadd.s32 %s238, 1
    %s240 = scalar_select %p237, %s238, %s239
    %p243 = pneg %p237
    %p244 = scmp.eq.s32.totalorder %s18, 1
    %p245 = por %p243, %p244
    %p246 = scmp.ne.s32.totalorder %s238, %s241
    %p247 = scmp.eq.s32.totalorder %s18, 0
    %p248 = por %p246, %p247
    %p249 = scmp.ne.s32.totalorder %s238, %s241
    %p250 = scmp.eq.s32.totalorder %s23, 1
    %p251 = por %p249, %p250
    %p252 = scmp.ne.s32.totalorder %s241, %s242
    %p253 = scmp.eq.s32.totalorder %s23, 0
    %p254 = por %p252, %p253
    %p255 = scmp.ne.s32.totalorder %s241, %s242
    %p256 = scmp.eq.s32.totalorder %s24, 1
    %p257 = por %p255, %p256
    %p259 = scmp.ne.s32.totalorder %s242, %s258
    %p260 = scmp.eq.s32.totalorder %s24, 0
    %p261 = por %p259, %p260
    %s262 = ssub.s32 %s25, %s37
    %s263 = ssub.s32 %s26, %s33
    %s264 = sor.u32 %s262, %s263
    %p265 = scmp.eq.s32.totalorder %s264, 0
    %s267 = sadd.s32 %s266, 1
    %s268 = scalar_select %p265, %s266, %s267
    %p271 = pneg %p265
    %p272 = scmp.eq.s32.totalorder %s18, 1
    %p273 = por %p271, %p272
    %p274 = scmp.ne.s32.totalorder %s266, %s269
    %p275 = scmp.eq.s32.totalorder %s18, 0
    %p276 = por %p274, %p275
    %p277 = scmp.ne.s32.totalorder %s266, %s269
    %p278 = scmp.eq.s32.totalorder %s23, 1
    %p279 = por %p277, %p278
    %p280 = scmp.ne.s32.totalorder %s269, %s270
    %p281 = scmp.eq.s32.totalorder %s23, 0
    %p282 = por %p280, %p281
    %p283 = scmp.ne.s32.totalorder %s269, %s270
    %p284 = scmp.eq.s32.totalorder %s24, 1
    %p285 = por %p283, %p284
    %p287 = scmp.ne.s32.totalorder %s270, %s286
    %p288 = scmp.eq.s32.totalorder %s24, 0
    %p289 = por %p287, %p288
    %s290 = ssub.s32 %s25, %s37
    %s291 = ssub.s32 %s26, %s33
    %s292 = sor.u32 %s290, %s291
    %p293 = scmp.eq.s32.totalorder %s292, 0
    %s295 = sadd.s32 %s294, 1
    %s296 = scalar_select %p293, %s294, %s295
    %p299 = pneg %p293
    %p300 = scmp.eq.s32.totalorder %s18, 1
    %p301 = por %p299, %p300
    %p302 = scmp.ne.s32.totalorder %s294, %s297
    %p303 = scmp.eq.s32.totalorder %s18, 0
    %p304 = por %p302, %p303
    %p305 = scmp.ne.s32.totalorder %s294, %s297
    %p306 = scmp.eq.s32.totalorder %s23, 1
    %p307 = por %p305, %p306
    %p308 = scmp.ne.s32.totalorder %s297, %s298
    %p309 = scmp.eq.s32.totalorder %s23, 0
    %p310 = por %p308, %p309
    %p311 = scmp.ne.s32.totalorder %s297, %s298
    %p312 = scmp.eq.s32.totalorder %s24, 1
    %p313 = por %p311, %p312
    %p315 = scmp.ne.s32.totalorder %s298, %s314
    %p316 = scmp.eq.s32.totalorder %s24, 0
    %p317 = por %p315, %p316
    %p318 = scmp.le.s32.totalorder 1, %s18
    %p319 = scmp.lt.s32.totalorder %s18, 3
    %p320 = pnand %p318, %p319
    %p321 = pneg %p320
    // Predicated region
    $region9: #{block_forward.3} parent=5 // pred_check
      _
    $region10: #{block_forward.3} parent=5 // pred_check_branch
      %323 = sbr.rel (%p320) target = $region12
    $region11: #{block_forward.3} parent=5 // pred_region
      %s324 = ssub.s32 %s18, 1
      // Predicated region
      $region13: #{block_forward.3} parent=11 // pred_check
        %p325 = pneg %p79
      $region14: #{block_forward.3} parent=11 // pred_check_branch
        %327 = sbr.rel (%p325) target = $region16
      $region15: #{block_forward.3} parent=11 // pred_region
        _
      $region16: #{block_forward.3} parent=11 // pred_fallthru
        _
      // Predicated region
      $region17: #{block_forward.3} parent=11 // pred_check
        %p328 = pneg %p100
      $region18: #{block_forward.3} parent=11 // pred_check_branch
        %330 = sbr.rel (%p328) target = $region20
      $region19: #{block_forward.3} parent=11 // pred_region
        _
      $region20: #{block_forward.3} parent=11 // pred_fallthru
        _
      // Predicated region
      $region21: #{block_forward.3} parent=11 // pred_check
        %p331 = pneg %p121
      $region22: #{block_forward.3} parent=11 // pred_check_branch
        %333 = sbr.rel (%p331) target = $region24
      $region23: #{block_forward.3} parent=11 // pred_region
        _
      $region24: #{block_forward.3} parent=11 // pred_fallthru
        _
      // Predicated region
      $region25: #{block_forward.3} parent=11 // pred_check
        %p334 = pneg %p142
      $region26: #{block_forward.3} parent=11 // pred_check_branch
        %336 = sbr.rel (%p334) target = $region28
      $region27: #{block_forward.3} parent=11 // pred_region
        _
      $region28: #{block_forward.3} parent=11 // pred_fallthru
        _
      // Predicated region
      $region29: #{block_forward.3} parent=11 // pred_check
        %p337 = pneg %p163
      $region30: #{block_forward.3} parent=11 // pred_check_branch
        %339 = sbr.rel (%p337) target = $region32
      $region31: #{block_forward.3} parent=11 // pred_region
        _
      $region32: #{block_forward.3} parent=11 // pred_fallthru
        _
      // Predicated region
      $region33: #{block_forward.3} parent=11 // pred_check
        %p340 = pneg %p184
      $region34: #{block_forward.3} parent=11 // pred_check_branch
        %342 = sbr.rel (%p340) target = $region36
      $region35: #{block_forward.3} parent=11 // pred_region
        _
      $region36: #{block_forward.3} parent=11 // pred_fallthru
        _
      // Predicated region
      $region37: #{block_forward.3} parent=11 // pred_check
        %p343 = pneg %p205
      $region38: #{block_forward.3} parent=11 // pred_check_branch
        %345 = sbr.rel (%p343) target = $region40
      $region39: #{block_forward.3} parent=11 // pred_region
        _
      $region40: #{block_forward.3} parent=11 // pred_fallthru
        _
      // Predicated region
      $region41: #{block_forward.3} parent=11 // pred_check
        %p346 = pneg %p226
      $region42: #{block_forward.3} parent=11 // pred_check_branch
        %348 = sbr.rel (%p346) target = $region44
      $region43: #{block_forward.3} parent=11 // pred_region
        _
      $region44: #{block_forward.3} parent=11 // pred_fallthru
        _
    $region12: #{block_forward.3} parent=5 // pred_fallthru
      _
    %p349 = scmp.lt.s32.totalorder %s18, 2
    // Predicated region
    $region45: #{block_forward.3} parent=5 // pred_check
      %p350 = pneg %p349
    $region46: #{block_forward.3} parent=5 // pred_check_branch
      %352 = sbr.rel (%p350) target = $region48
    $region47: #{block_forward.3} parent=5 // pred_region
      // Predicated region
      $region49: #{block_forward.3} parent=47 // pred_check
        %p353 = pneg %p52
      $region50: #{block_forward.3} parent=47 // pred_check_branch
        %355 = sbr.rel (%p353) target = $region52
      $region51: #{block_forward.3} parent=47 // pred_region
        %p356 = scmp.lt.s32.totalorder %s25, 1
        %s357 = scalar_select %p356, %s25, 1
        %p358 = scmp.lt.s32.totalorder %s26, 0
        %s359 = scalar_select %p358, %s26, 0
        %s360 = sadd.s32 %s359, %s357
        %s361 = smul.addr %s360, 8
        %s362 = scalar_lea.vmem %s0, %s361
      $region52: #{block_forward.3} parent=47 // pred_fallthru
        _
    $region48: #{block_forward.3} parent=5 // pred_fallthru
      _
    %p363 = scmp.le.s32.totalorder 1, %s18
    %p364 = scmp.lt.s32.totalorder %s18, 3
    %p365 = pnand %p363, %p364
    %p366 = pneg %p365
    // Predicated region
    $region53: #{block_forward.3} parent=5 // pred_check
      _
    $region54: #{block_forward.3} parent=5 // pred_check_branch
      %368 = sbr.rel (%p365) target = $region56
    $region55: #{block_forward.3} parent=5 // pred_region
      %s369 = ssub.s32 %s18, 1
      %p370 = scmp.lt.s32.totalorder %s27, 1
      %s371 = scalar_select %p370, %s27, 1
      %p372 = scmp.lt.s32.totalorder %s28, 0
      %s373 = scalar_select %p372, %s28, 0
      %s374 = sadd.s32 %s373, %s371
      %s375 = smul.addr %s374, 8
      %s376 = scalar_lea.vmem %s0, %s375
      %p377 = pneg %p58
      %p378 = pneg %p55
      %p379 = pneg %p79
      %p380 = pneg %p76
      %p381 = pneg %p100
      %p382 = pneg %p97
      %p383 = pneg %p121
      %p384 = pneg %p118
      %p385 = pneg %p142
      %p386 = pneg %p139
      %p387 = pneg %p163
      %p388 = pneg %p160
      %p389 = pneg %p184
      %p390 = pneg %p181
      %p391 = pneg %p205
      %p392 = pneg %p202
      %p393 = pneg %p226
      %p394 = pneg %p223
      %p395 = pneg %p254
      %p396 = pneg %p251
      %p397 = scmp.lt.s32.totalorder %s27, 1
      %s398 = scalar_select %p397, %s27, 1
      %p399 = scmp.lt.s32.totalorder %s28, 0
      %s400 = scalar_select %p399, %s28, 0
      %s401 = sadd.s32 %s400, %s398
      %s402 = smul.addr %s401, 4
      %s403 = scalar_lea.vmem %s9, %s402
      %p404 = pneg %p282
      %p405 = pneg %p279
      %p406 = scmp.lt.s32.totalorder %s27, 1
      %s407 = scalar_select %p406, %s27, 1
      %p408 = scmp.lt.s32.totalorder %s28, 0
      %s409 = scalar_select %p408, %s28, 0
      %s410 = sadd.s32 %s409, %s407
      %s411 = smul.addr %s410, 4
      %s412 = scalar_lea.vmem %s10, %s411
      %p413 = pneg %p310
      %p414 = pneg %p307
      %p415 = scmp.lt.s32.totalorder %s27, 1
      %s416 = scalar_select %p415, %s27, 1
      %p417 = scmp.lt.s32.totalorder %s28, 0
      %s418 = scalar_select %p417, %s28, 0
      %s419 = sadd.s32 %s418, %s416
      %s420 = smul.addr %s419, 4
      %s421 = scalar_lea.vmem %s11, %s420
      %p422 = scmp.lt.s32.totalorder %s27, 1
      %s423 = scalar_select %p422, %s27, 1
      %p424 = scmp.lt.s32.totalorder %s28, 0
      %s425 = scalar_select %p424, %s28, 0
      %s426 = sadd.s32 %s425, %s423
      %s427 = smul.addr %s426, 8
      %s428 = scalar_lea.vmem %s0, %s427
      %p429 = scmp.lt.s32.totalorder %s27, 1
      %s430 = scalar_select %p429, %s27, 1
      %p431 = scmp.lt.s32.totalorder %s28, 0
      %s432 = scalar_select %p431, %s28, 0
      %s433 = sadd.s32 %s432, %s430
      %s434 = smul.addr %s433, 4
      %s435 = scalar_lea.vmem %s9, %s434
      %p436 = scmp.lt.s32.totalorder %s27, 1
      %s437 = scalar_select %p436, %s27, 1
      %p438 = scmp.lt.s32.totalorder %s28, 0
      %s439 = scalar_select %p438, %s28, 0
      %s440 = sadd.s32 %s439, %s437
      %s441 = smul.addr %s440, 4
      %s442 = scalar_lea.vmem %s10, %s441
      %p443 = scmp.lt.s32.totalorder %s27, 1
      %s444 = scalar_select %p443, %s27, 1
      %p445 = scmp.lt.s32.totalorder %s28, 0
      %s446 = scalar_select %p445, %s28, 0
      %s447 = sadd.s32 %s446, %s444
      %s448 = smul.addr %s447, 4
      %s449 = scalar_lea.vmem %s11, %s448
      %v451 = vld [vmem:[%s428] sm:$0xff]
      %v452 = vld [vmem:[%s1] sm:$0x1]
      %v453 = vld [vmem:[%s2] sm:$0x1]
      %vm454 = vcmask 261120
      %v455 = vsel %vm454, %v451, 0.0
      %456 = vadd.xlane.f32.xlu0 %v455
      %v457 = vpop.xlane.xlu0 %456
      %v458 = vrcp.pop 32.0
      %v459 = vmul.f32 %v457, %v458
      %v460 = vsub.f32 %v451, %v459
      %v461 = vmul.f32 %v460, %v460
      %v462 = vsel %vm454, %v461, 0.0
      %463 = vadd.xlane.f32.xlu0 %v462
      %v464 = vpop.xlane.xlu0 %463
      %v465 = vmul.f32 %v464, %v458
      %v466 = vadd.f32 %v465, 1e-05
      %v467 = vrsqrt.pop %v466
      %v468 = vmul.f32 %v460, %v467
      %v470 = vlaneseq
      %v471 = vshrl.u32 %v470, 7
      %v472 = vsub.s32 0, %v471
      %v473 = vrot.slane %v452, %v472
      %v475 = vmul.f32 %v468, %v473
      %v477 = vlaneseq
      %v478 = vshrl.u32 %v477, 7
      %v479 = vsub.s32 0, %v478
      %v480 = vrot.slane %v453, %v479
      %v482 = vadd.f32 %v475, %v480
      %v483 = vpack.c.bf16 %v482, %v482
      %v484 = vld [vmem:[%s3] sm:$0xf]
      %v485 = vld [vmem:[%s3 + $0x4] sm:$0xf]
      %v486 = vld [vmem:[%s3 + $0x8] sm:$0xf]
      %v487 = vld [vmem:[%s3 + $0xc] sm:$0xf]
      %v488 = vld [vmem:[%s6] sm:$0x1]
      %v490 = vlaneseq
      %v491 = vshrl.u32 %v490, 7
      %v492 = vsub.s32 0, %v491
      %v493 = vrot.slane %v488, %v492
      %v499 = vunpack.c.l.b16 %v484
      %v500 = vunpack.c.l.b16 %v485
      %v501 = vunpack.c.l.b16 %v486
      %v502 = vunpack.c.l.b16 %v487
      %v503 = vpack.c.b16 %v500, %v499
      %v504 = vpack.c.b16 %v502, %v501
      %v508 = vsel %vm454, %v483, 0
      %510 = vmatprep.subr.bf16.mxu0 0
      %511 = vmatpush1.bf16.msra.mxu0 %v503
      %512 = vmatprep.subr.bf16.mxu0 0
      %513 = vmatpush1.bf16.msra.mxu0 %v504
      %514 = vmatprep.subr.bf16.mxu0 0
      %515 = vmatpush1.bf16.msra.mxu0 0
      %516 = vmatprep.subr.bf16.mxu0 0
      %517 = vmatpush1.bf16.msra.mxu0 0
      %518 = vmatprep.subr.bf16.mxu0 0
      %519 = vmatpush1.bf16.msra.mxu0 0
      %520 = vmatprep.subr.bf16.mxu0 0
      %521 = vmatpush1.bf16.msra.mxu0 0
      %522 = vmatprep.subr.bf16.mxu0 0
      %523 = vmatpush1.bf16.msra.mxu0 0
      %524 = vmatprep.subr.bf16.mxu0 0
      %525 = vmatpush1.bf16.msra.mxu0 0
      %526 = vmatprep.subr.bf16.mxu0 0
      %527 = vmatpush1.bf16.msra.mxu0 0
      %528 = vmatprep.subr.bf16.mxu0 0
      %529 = vmatpush1.bf16.msra.mxu0 0
      %530 = vmatprep.subr.bf16.mxu0 0
      %531 = vmatpush1.bf16.msra.mxu0 0
      %532 = vmatprep.subr.bf16.mxu0 0
      %533 = vmatpush1.bf16.msra.mxu0 0
      %534 = vmatprep.subr.bf16.mxu0 0
      %535 = vmatpush1.bf16.msra.mxu0 0
      %536 = vmatprep.subr.bf16.mxu0 0
      %537 = vmatpush1.bf16.msra.mxu0 0
      %538 = vmatprep.subr.bf16.mxu0 0
      %539 = vmatpush1.bf16.msra.mxu0 0
      %540 = vmatprep.subr.bf16.mxu0 0
      %541 = vmatpush1.bf16.msra.mxu0 0
      %542 = vmatprep.mubr.bf16.mxu0 0
      %543 = vmatmul.mubr.bf16.gmra.mrb[0].mxu0 %v508
      %v544 = vpop.f32.mrb[0].mxu0
      %v545 = vadd.f32 %v493, %v544
      %v546 = vpop.f32.mrb[0].mxu0
      %v547 = vpop.f32.mrb[0].mxu0
      %v548 = vpop.f32.mrb[0].mxu0
      %549 = vdwg.mxu0
      %v550 = vld [vmem:[%s4] sm:$0xf]
      %v551 = vld [vmem:[%s4 + $0x4] sm:$0xf]
      %v552 = vld [vmem:[%s4 + $0x8] sm:$0xf]
      %v553 = vld [vmem:[%s4 + $0xc] sm:$0xf]
      %v554 = vld [vmem:[%s7] sm:$0x1]
      %v556 = vlaneseq
      %v557 = vshrl.u32 %v556, 7
      %v558 = vsub.s32 0, %v557
      %v559 = vrot.slane %v554, %v558
      %v565 = vunpack.c.l.b16 %v550
      %v566 = vunpack.c.l.b16 %v551
      %v567 = vunpack.c.l.b16 %v552
      %v568 = vunpack.c.l.b16 %v553
      %v569 = vpack.c.b16 %v566, %v565
      %v570 = vpack.c.b16 %v568, %v567
      %573 = vmatprep.subr.bf16.mxu0 0
      %574 = vmatpush1.bf16.msra.mxu0 %v569
      %575 = vmatprep.subr.bf16.mxu0 0
      %576 = vmatpush1.bf16.msra.mxu0 %v570
      %577 = vmatprep.subr.bf16.mxu0 0
      %578 = vmatpush1.bf16.msra.mxu0 0
      %579 = vmatprep.subr.bf16.mxu0 0
      %580 = vmatpush1.bf16.msra.mxu0 0
      %581 = vmatprep.subr.bf16.mxu0 0
      %582 = vmatpush1.bf16.msra.mxu0 0
      %583 = vmatprep.subr.bf16.mxu0 0
      %584 = vmatpush1.bf16.msra.mxu0 0
      %585 = vmatprep.subr.bf16.mxu0 0
      %586 = vmatpush1.bf16.msra.mxu0 0
      %587 = vmatprep.subr.bf16.mxu0 0
      %588 = vmatpush1.bf16.msra.mxu0 0
      %589 = vmatprep.subr.bf16.mxu0 0
      %590 = vmatpush1.bf16.msra.mxu0 0
      %591 = vmatprep.subr.bf16.mxu0 0
      %592 = vmatpush1.bf16.msra.mxu0 0
      %593 = vmatprep.subr.bf16.mxu0 0
      %594 = vmatpush1.bf16.msra.mxu0 0
      %595 = vmatprep.subr.bf16.mxu0 0
      %596 = vmatpush1.bf16.msra.mxu0 0
      %597 = vmatprep.subr.bf16.mxu0 0
      %598 = vmatpush1.bf16.msra.mxu0 0
      %599 = vmatprep.subr.bf16.mxu0 0
      %600 = vmatpush1.bf16.msra.mxu0 0
      %601 = vmatprep.subr.bf16.mxu0 0
      %602 = vmatpush1.bf16.msra.mxu0 0
      %603 = vmatprep.subr.bf16.mxu0 0
      %604 = vmatpush1.bf16.msra.mxu0 0
      %605 = vmatprep.mubr.bf16.mxu0 0
      %606 = vmatmul.mubr.bf16.gmra.mrb[0].mxu0 %v508
      %v607 = vpop.f32.mrb[0].mxu0
      %v608 = vadd.f32 %v559, %v607
      %v609 = vpop.f32.mrb[0].mxu0
      %v610 = vpop.f32.mrb[0].mxu0
      %v611 = vpop.f32.mrb[0].mxu0
      %612 = vdwg.mxu0
      %v613 = vld [vmem:[%s5] sm:$0xf]
      %v614 = vld [vmem:[%s5 + $0x4] sm:$0xf]
      %v615 = vld [vmem:[%s5 + $0x8] sm:$0xf]
      %v616 = vld [vmem:[%s5 + $0xc] sm:$0xf]
      %v617 = vld [vmem:[%s8] sm:$0x1]
      %v619 = vlaneseq
      %v620 = vshrl.u32 %v619, 7
      %v621 = vsub.s32 0, %v620
      %v622 = vrot.slane %v617, %v621
      %v628 = vunpack.c.l.b16 %v613
      %v629 = vunpack.c.l.b16 %v614
      %v630 = vunpack.c.l.b16 %v615
      %v631 = vunpack.c.l.b16 %v616
      %v632 = vpack.c.b16 %v629, %v628
      %v633 = vpack.c.b16 %v631, %v630
      %636 = vmatprep.subr.bf16.mxu0 0
      %637 = vmatpush1.bf16.msra.mxu0 %v632
      %638 = vmatprep.subr.bf16.mxu0 0
      %639 = vmatpush1.bf16.msra.mxu0 %v633
      %640 = vmatprep.subr.bf16.mxu0 0
      %641 = vmatpush1.bf16.msra.mxu0 0
      %642 = vmatprep.subr.bf16.mxu0 0
      %643 = vmatpush1.bf16.msra.mxu0 0
      %644 = vmatprep.subr.bf16.mxu0 0
      %645 = vmatpush1.bf16.msra.mxu0 0
      %646 = vmatprep.subr.bf16.mxu0 0
      %647 = vmatpush1.bf16.msra.mxu0 0
      %648 = vmatprep.subr.bf16.mxu0 0
      %649 = vmatpush1.bf16.msra.mxu0 0
      %650 = vmatprep.subr.bf16.mxu0 0
      %651 = vmatpush1.bf16.msra.mxu0 0
      %652 = vmatprep.subr.bf16.mxu0 0
      %653 = vmatpush1.bf16.msra.mxu0 0
      %654 = vmatprep.subr.bf16.mxu0 0
      %655 = vmatpush1.bf16.msra.mxu0 0
      %656 = vmatprep.subr.bf16.mxu0 0
      %657 = vmatpush1.bf16.msra.mxu0 0
      %658 = vmatprep.subr.bf16.mxu0 0
      %659 = vmatpush1.bf16.msra.mxu0 0
      %660 = vmatprep.subr.bf16.mxu0 0
      %661 = vmatpush1.bf16.msra.mxu0 0
      %662 = vmatprep.subr.bf16.mxu0 0
      %663 = vmatpush1.bf16.msra.mxu0 0
      %664 = vmatprep.subr.bf16.mxu0 0
      %665 = vmatpush1.bf16.msra.mxu0 0
      %666 = vmatprep.subr.bf16.mxu0 0
      %667 = vmatpush1.bf16.msra.mxu0 0
      %668 = vmatprep.mubr.bf16.mxu0 0
      %669 = vmatmul.mubr.bf16.gmra.mrb[0].mxu0 %v508
      %v670 = vpop.f32.mrb[0].mxu0
      %v671 = vadd.f32 %v622, %v670
      %v672 = vpop.f32.mrb[0].mxu0
      %v673 = vpop.f32.mrb[0].mxu0
      %v674 = vpop.f32.mrb[0].mxu0
      %675 = vdwg.mxu0
      %v676 = vpack.c.bf16 %v545, %v545
      %vm677 = vcmask 257024
      %678 = vst.msk [vmem:[%s435] sm:$0xf] %vm677, %v676
      %v679 = vpack.c.bf16 %v608, %v608
      %680 = vst.msk [vmem:[%s442] sm:$0xf] %vm677, %v679
      %v681 = vpack.c.bf16 %v671, %v671
      %682 = vst.msk [vmem:[%s449] sm:$0xf] %vm677, %v681
      %p683 = scmp.lt.s32.totalorder %s27, 1
      %s684 = scalar_select %p683, %s27, 1
      %p685 = scmp.lt.s32.totalorder %s28, 0
      %s686 = scalar_select %p685, %s28, 0
      %s687 = sadd.s32 %s686, %s684
      %s688 = smul.addr %s687, 4
      %s689 = scalar_lea.vmem %s9, %s688
      %p690 = scmp.lt.s32.totalorder %s27, 1
      %s691 = scalar_select %p690, %s27, 1
      %p692 = scmp.lt.s32.totalorder %s28, 0
      %s693 = scalar_select %p692, %s28, 0
      %s694 = sadd.s32 %s693, %s691
      %s695 = smul.addr %s694, 4
      %s696 = scalar_lea.vmem %s10, %s695
      %p697 = scmp.lt.s32.totalorder %s27, 1
      %s698 = scalar_select %p697, %s27, 1
      %p699 = scmp.lt.s32.totalorder %s28, 0
      %s700 = scalar_select %p699, %s28, 0
      %s701 = sadd.s32 %s700, %s698
      %s702 = smul.addr %s701, 4
      %s703 = scalar_lea.vmem %s11, %s702
      // Predicated region
      $region57: #{block_forward.3} parent=55 // pred_check
        %p704 = pneg %p251
      $region58: #{block_forward.3} parent=55 // pred_check_branch
        %706 = sbr.rel (%p704) target = $region60
      $region59: #{block_forward.3} parent=55 // pred_region
        _
      $region60: #{block_forward.3} parent=55 // pred_fallthru
        _
      // Predicated region
      $region61: #{block_forward.3} parent=55 // pred_check
        %p707 = pneg %p279
      $region62: #{block_forward.3} parent=55 // pred_check_branch
        %709 = sbr.rel (%p707) target = $region64
      $region63: #{block_forward.3} parent=55 // pred_region
        _
      $region64: #{block_forward.3} parent=55 // pred_fallthru
        _
      // Predicated region
      $region65: #{block_forward.3} parent=55 // pred_check
        %p710 = pneg %p307
      $region66: #{block_forward.3} parent=55 // pred_check_branch
        %712 = sbr.rel (%p710) target = $region68
      $region67: #{block_forward.3} parent=55 // pred_region
        _
      $region68: #{block_forward.3} parent=55 // pred_fallthru
        _
    $region56: #{block_forward.3} parent=5 // pred_fallthru
      _
    %p713 = scmp.le.s32.totalorder 2, %s18
    // Predicated region
    $region69: #{block_forward.3} parent=5 // pred_check
      %p714 = pneg %p713
    $region70: #{block_forward.3} parent=5 // pred_check_branch
      %716 = sbr.rel (%p714) target = $region72
    $region71: #{block_forward.3} parent=5 // pred_region
      %s717 = ssub.s32 %s18, 2
      // Predicated region
      $region73: #{block_forward.3} parent=71 // pred_check
        %p718 = pneg %p257
      $region74: #{block_forward.3} parent=71 // pred_check_branch
        %720 = sbr.rel (%p718) target = $region76
      $region75: #{block_forward.3} parent=71 // pred_region
        %p721 = scmp.lt.s32.totalorder %s29, 1
        %s722 = scalar_select %p721, %s29, 1
        %p723 = scmp.lt.s32.totalorder %s30, 0
        %s724 = scalar_select %p723, %s30, 0
        %s725 = sadd.s32 %s724, %s722
        %s726 = smul.addr %s725, 4
        %s727 = scalar_lea.vmem %s9, %s726
      $region76: #{block_forward.3} parent=71 // pred_fallthru
        _
      // Predicated region
      $region77: #{block_forward.3} parent=71 // pred_check
        %p728 = pneg %p285
      $region78: #{block_forward.3} parent=71 // pred_check_branch
        %730 = sbr.rel (%p728) target = $region80
      $region79: #{block_forward.3} parent=71 // pred_region
        %p731 = scmp.lt.s32.totalorder %s29, 1
        %s732 = scalar_select %p731, %s29, 1
        %p733 = scmp.lt.s32.totalorder %s30, 0
        %s734 = scalar_select %p733, %s30, 0
        %s735 = sadd.s32 %s734, %s732
        %s736 = smul.addr %s735, 4
        %s737 = scalar_lea.vmem %s10, %s736
      $region80: #{block_forward.3} parent=71 // pred_fallthru
        _
      // Predicated region
      $region81: #{block_forward.3} parent=71 // pred_check
        %p738 = pneg %p313
      $region82: #{block_forward.3} parent=71 // pred_check_branch
        %740 = sbr.rel (%p738) target = $region84
      $region83: #{block_forward.3} parent=71 // pred_region
        %p741 = scmp.lt.s32.totalorder %s29, 1
        %s742 = scalar_select %p741, %s29, 1
        %p743 = scmp.lt.s32.totalorder %s30, 0
        %s744 = scalar_select %p743, %s30, 0
        %s745 = sadd.s32 %s744, %s742
        %s746 = smul.addr %s745, 4
        %s747 = scalar_lea.vmem %s11, %s746
      $region84: #{block_forward.3} parent=71 // pred_fallthru
        _
    $region72: #{block_forward.3} parent=5 // pred_fallthru
      _
  $region6: #{block_forward.3} parent=0 // loop_footer
    %s22 = sadd.s32 1, %s18
  $region7: #{block_forward.3} parent=0 // loop_footer_branch
    %17 = sbr.rel target = $region3
  $region8: #{block_forward.3} parent=0 // loop_exit
    _

// kernel: block_forward.5
$region0: #{block_forward.5}
  #allocation0 [shape = 'u32[]', space=smem, size = 0x4, offset = 0x4, fixed_abs, tag = 'smem constant byte address 0x4 - core index']
  #allocation1 [shape = 'u32[144,128]{1,0:T(1,128)}', space=vmem, size = 0x12000, scoped, tag = 'internal scratch']
  %s0 = inlined_call_operand.vmem [shape: f32[2,8,32], index: 0, kind: input, shape index: {}]
  %s1 = inlined_call_operand.vmem [shape: bf16[2,8,32], index: 1, kind: input, shape index: {}]
  %s2 = inlined_call_operand.vmem [shape: bf16[32,32], index: 2, kind: input, shape index: {}]
  %s3 = inlined_call_operand.vmem [shape: f32[1,32], index: 3, kind: input, shape index: {}]
  %s4 = inlined_call_operand.vmem [shape: f32[1,32], index: 4, kind: input, shape index: {}]
  %s5 = inlined_call_operand.vmem [shape: f32[1,32], index: 5, kind: input, shape index: {}]
  %s6 = inlined_call_operand.vmem [shape: bf16[32,128], index: 6, kind: input, shape index: {}]
  %s7 = inlined_call_operand.vmem [shape: f32[1,128], index: 7, kind: input, shape index: {}]
  %s8 = inlined_call_operand.vmem [shape: bf16[128,32], index: 8, kind: input, shape index: {}]
  %s9 = inlined_call_operand.vmem [shape: f32[1,32], index: 9, kind: input, shape index: {}]
  %s10 = inlined_call_operand.hbm [shape: f32[2,8,32], index: 10, kind: output, shape index: {}]
  %s11 = sld [smem:[#allocation0]]
  $region73: #{block_forward.5} parent=0
    _
  %s13 = ssub.s32 1, %s11
  %s14 = scalar_select 0, %s13, %s11
  $region1: #{block_forward.5} parent=0
    #allocation2 [shape = 'u8[8192]{0}', space=vmem, size = 0x2000, scoped, tag = 'output window, operand 0']
    #allocation3 [shape = 's32[2]{0}', space=sflag, size = 0x8, scoped, tag = 'scoped memory for block_forward.5']
    %15 = vsyncpa [#allocation3], 0
    %s16 = scalar_lea.sflag [#allocation3], 1
    %17 = vsyncpa %s16, 0
    loop: start=0, step=1, limit=4
    $region2: #{block_forward.5} parent=1 // loop_pre_header
      _
    $region3: #{block_forward.5} parent=1 // loop_header
      %s19 = sphi 0, %s23
      %p20 = scmp.ge.s32.totalorder %s19, 4
      %s26 = sphi 0, %s38
      %s27 = sphi 0, %s34
      %s28 = sphi 0, %s26
      %s29 = sphi 0, %s27
      %s30 = sphi 0, %s28
      %s31 = sphi 0, %s29
      %s43 = sphi 0, %s45
      %s46 = sphi 0, %s43
      %s47 = sphi 0, %s46
      %s63 = sphi 0, %s47
      %s71 = sphi 0, %s73
      %s74 = sphi 0, %s71
      %s75 = sphi 0, %s74
      %s91 = sphi 0, %s75
      %s95 = sphi 0, %s95
      %s97 = sphi 0, %s95
      %s98 = sphi 0, %s97
      %s112 = sphi 0, %s98
      %s116 = sphi 0, %s116
      %s118 = sphi 0, %s116
      %s119 = sphi 0, %s118
      %s133 = sphi 0, %s119
      %s137 = sphi 0, %s137
      %s139 = sphi 0, %s137
      %s140 = sphi 0, %s139
      %s154 = sphi 0, %s140
      %s158 = sphi 0, %s158
      %s160 = sphi 0, %s158
      %s161 = sphi 0, %s160
      %s175 = sphi 0, %s161
      %s179 = sphi 0, %s179
      %s181 = sphi 0, %s179
      %s182 = sphi 0, %s181
      %s196 = sphi 0, %s182
      %s200 = sphi 0, %s200
      %s202 = sphi 0, %s200
      %s203 = sphi 0, %s202
      %s217 = sphi 0, %s203
      %s221 = sphi 0, %s221
      %s223 = sphi 0, %s221
      %s224 = sphi 0, %s223
      %s238 = sphi 0, %s224
      %s242 = sphi 0, %s242
      %s244 = sphi 0, %s242
      %s245 = sphi 0, %s244
      %s259 = sphi 0, %s245
      %s267 = sphi 0, %s269
      %s270 = sphi 0, %s267
      %s271 = sphi 0, %s270
      %s287 = sphi 0, %s271
    $region4: #{block_forward.5} parent=1 // loop_header_branch
      %22 = sbr.rel (%p20) target = $region8
    $region5: #{block_forward.5} parent=1 // loop_body
      %s24 = ssub.s32 %s19, 1
      %s25 = ssub.s32 %s19, 2
      %s32 = sadd.s32 1, %s27
      %p33 = scmp.ge.s32.totalorder %s32, 1
      %s34 = scalar_select %p33, 0, %s32
      %s35 = sadd.s32 1, %s26
      %s36 = scalar_select %p33, %s35, %s26
      %p37 = scmp.ge.s32.totalorder %s36, 2
      %s38 = scalar_select %p37, 0, %s36
      %s39 = ssub.s32 %s26, %s38
      %s40 = ssub.s32 %s27, %s34
      %s41 = sor.u32 %s39, %s40
      %p42 = scmp.eq.s32.totalorder %s41, 0
      %s44 = sadd.s32 %s43, 1
      %s45 = scalar_select %p42, %s43, %s44
      %p48 = pneg %p42
      %p49 = scmp.eq.s32.totalorder %s19, 1
      %p50 = por %p48, %p49
      %p51 = scmp.ne.s32.totalorder %s43, %s46
      %p52 = scmp.eq.s32.totalorder %s19, 0
      %p53 = por %p51, %p52
      %p54 = scmp.ne.s32.totalorder %s43, %s46
      %p55 = scmp.eq.s32.totalorder %s24, 1
      %p56 = por %p54, %p55
      %p57 = scmp.ne.s32.totalorder %s46, %s47
      %p58 = scmp.eq.s32.totalorder %s24, 0
      %p59 = por %p57, %p58
      %p60 = scmp.ne.s32.totalorder %s46, %s47
      %p61 = scmp.eq.s32.totalorder %s25, 1
      %p62 = por %p60, %p61
      %p64 = scmp.ne.s32.totalorder %s47, %s63
      %p65 = scmp.eq.s32.totalorder %s25, 0
      %p66 = por %p64, %p65
      %s67 = ssub.s32 %s26, %s38
      %s68 = ssub.s32 %s27, %s34
      %s69 = sor.u32 %s67, %s68
      %p70 = scmp.eq.s32.totalorder %s69, 0
      %s72 = sadd.s32 %s71, 1
      %s73 = scalar_select %p70, %s71, %s72
      %p76 = pneg %p70
      %p77 = scmp.eq.s32.totalorder %s19, 1
      %p78 = por %p76, %p77
      %p79 = scmp.ne.s32.totalorder %s71, %s74
      %p80 = scmp.eq.s32.totalorder %s19, 0
      %p81 = por %p79, %p80
      %p82 = scmp.ne.s32.totalorder %s71, %s74
      %p83 = scmp.eq.s32.totalorder %s24, 1
      %p84 = por %p82, %p83
      %p85 = scmp.ne.s32.totalorder %s74, %s75
      %p86 = scmp.eq.s32.totalorder %s24, 0
      %p87 = por %p85, %p86
      %p88 = scmp.ne.s32.totalorder %s74, %s75
      %p89 = scmp.eq.s32.totalorder %s25, 1
      %p90 = por %p88, %p89
      %p92 = scmp.ne.s32.totalorder %s75, %s91
      %p93 = scmp.eq.s32.totalorder %s25, 0
      %p94 = por %p92, %p93
      %s96 = sadd.s32 %s95, 1
      %p99 = scmp.eq.s32.totalorder %s19, 1
      %p100 = scmp.ne.s32.totalorder %s95, %s97
      %p101 = scmp.eq.s32.totalorder %s19, 0
      %p102 = por %p100, %p101
      %p103 = scmp.ne.s32.totalorder %s95, %s97
      %p104 = scmp.eq.s32.totalorder %s24, 1
      %p105 = por %p103, %p104
      %p106 = scmp.ne.s32.totalorder %s97, %s98
      %p107 = scmp.eq.s32.totalorder %s24, 0
      %p108 = por %p106, %p107
      %p109 = scmp.ne.s32.totalorder %s97, %s98
      %p110 = scmp.eq.s32.totalorder %s25, 1
      %p111 = por %p109, %p110
      %p113 = scmp.ne.s32.totalorder %s98, %s112
      %p114 = scmp.eq.s32.totalorder %s25, 0
      %p115 = por %p113, %p114
      %s117 = sadd.s32 %s116, 1
      %p120 = scmp.eq.s32.totalorder %s19, 1
      %p121 = scmp.ne.s32.totalorder %s116, %s118
      %p122 = scmp.eq.s32.totalorder %s19, 0
      %p123 = por %p121, %p122
      %p124 = scmp.ne.s32.totalorder %s116, %s118
      %p125 = scmp.eq.s32.totalorder %s24, 1
      %p126 = por %p124, %p125
      %p127 = scmp.ne.s32.totalorder %s118, %s119
      %p128 = scmp.eq.s32.totalorder %s24, 0
      %p129 = por %p127, %p128
      %p130 = scmp.ne.s32.totalorder %s118, %s119
      %p131 = scmp.eq.s32.totalorder %s25, 1
      %p132 = por %p130, %p131
      %p134 = scmp.ne.s32.totalorder %s119, %s133
      %p135 = scmp.eq.s32.totalorder %s25, 0
      %p136 = por %p134, %p135
      %s138 = sadd.s32 %s137, 1
      %p141 = scmp.eq.s32.totalorder %s19, 1
      %p142 = scmp.ne.s32.totalorder %s137, %s139
      %p143 = scmp.eq.s32.totalorder %s19, 0
      %p144 = por %p142, %p143
      %p145 = scmp.ne.s32.totalorder %s137, %s139
      %p146 = scmp.eq.s32.totalorder %s24, 1
      %p147 = por %p145, %p146
      %p148 = scmp.ne.s32.totalorder %s139, %s140
      %p149 = scmp.eq.s32.totalorder %s24, 0
      %p150 = por %p148, %p149
      %p151 = scmp.ne.s32.totalorder %s139, %s140
      %p152 = scmp.eq.s32.totalorder %s25, 1
      %p153 = por %p151, %p152
      %p155 = scmp.ne.s32.totalorder %s140, %s154
      %p156 = scmp.eq.s32.totalorder %s25, 0
      %p157 = por %p155, %p156
      %s159 = sadd.s32 %s158, 1
      %p162 = scmp.eq.s32.totalorder %s19, 1
      %p163 = scmp.ne.s32.totalorder %s158, %s160
      %p164 = scmp.eq.s32.totalorder %s19, 0
      %p165 = por %p163, %p164
      %p166 = scmp.ne.s32.totalorder %s158, %s160
      %p167 = scmp.eq.s32.totalorder %s24, 1
      %p168 = por %p166, %p167
      %p169 = scmp.ne.s32.totalorder %s160, %s161
      %p170 = scmp.eq.s32.totalorder %s24, 0
      %p171 = por %p169, %p170
      %p172 = scmp.ne.s32.totalorder %s160, %s161
      %p173 = scmp.eq.s32.totalorder %s25, 1
      %p174 = por %p172, %p173
      %p176 = scmp.ne.s32.totalorder %s161, %s175
      %p177 = scmp.eq.s32.totalorder %s25, 0
      %p178 = por %p176, %p177
      %s180 = sadd.s32 %s179, 1
      %p183 = scmp.eq.s32.totalorder %s19, 1
      %p184 = scmp.ne.s32.totalorder %s179, %s181
      %p185 = scmp.eq.s32.totalorder %s19, 0
      %p186 = por %p184, %p185
      %p187 = scmp.ne.s32.totalorder %s179, %s181
      %p188 = scmp.eq.s32.totalorder %s24, 1
      %p189 = por %p187, %p188
      %p190 = scmp.ne.s32.totalorder %s181, %s182
      %p191 = scmp.eq.s32.totalorder %s24, 0
      %p192 = por %p190, %p191
      %p193 = scmp.ne.s32.totalorder %s181, %s182
      %p194 = scmp.eq.s32.totalorder %s25, 1
      %p195 = por %p193, %p194
      %p197 = scmp.ne.s32.totalorder %s182, %s196
      %p198 = scmp.eq.s32.totalorder %s25, 0
      %p199 = por %p197, %p198
      %s201 = sadd.s32 %s200, 1
      %p204 = scmp.eq.s32.totalorder %s19, 1
      %p205 = scmp.ne.s32.totalorder %s200, %s202
      %p206 = scmp.eq.s32.totalorder %s19, 0
      %p207 = por %p205, %p206
      %p208 = scmp.ne.s32.totalorder %s200, %s202
      %p209 = scmp.eq.s32.totalorder %s24, 1
      %p210 = por %p208, %p209
      %p211 = scmp.ne.s32.totalorder %s202, %s203
      %p212 = scmp.eq.s32.totalorder %s24, 0
      %p213 = por %p211, %p212
      %p214 = scmp.ne.s32.totalorder %s202, %s203
      %p215 = scmp.eq.s32.totalorder %s25, 1
      %p216 = por %p214, %p215
      %p218 = scmp.ne.s32.totalorder %s203, %s217
      %p219 = scmp.eq.s32.totalorder %s25, 0
      %p220 = por %p218, %p219
      %s222 = sadd.s32 %s221, 1
      %p225 = scmp.eq.s32.totalorder %s19, 1
      %p226 = scmp.ne.s32.totalorder %s221, %s223
      %p227 = scmp.eq.s32.totalorder %s19, 0
      %p228 = por %p226, %p227
      %p229 = scmp.ne.s32.totalorder %s221, %s223
      %p230 = scmp.eq.s32.totalorder %s24, 1
      %p231 = por %p229, %p230
      %p232 = scmp.ne.s32.totalorder %s223, %s224
      %p233 = scmp.eq.s32.totalorder %s24, 0
      %p234 = por %p232, %p233
      %p235 = scmp.ne.s32.totalorder %s223, %s224
      %p236 = scmp.eq.s32.totalorder %s25, 1
      %p237 = por %p235, %p236
      %p239 = scmp.ne.s32.totalorder %s224, %s238
      %p240 = scmp.eq.s32.totalorder %s25, 0
      %p241 = por %p239, %p240
      %s243 = sadd.s32 %s242, 1
      %p246 = scmp.eq.s32.totalorder %s19, 1
      %p247 = scmp.ne.s32.totalorder %s242, %s244
      %p248 = scmp.eq.s32.totalorder %s19, 0
      %p249 = por %p247, %p248
      %p250 = scmp.ne.s32.totalorder %s242, %s244
      %p251 = scmp.eq.s32.totalorder %s24, 1
      %p252 = por %p250, %p251
      %p253 = scmp.ne.s32.totalorder %s244, %s245
      %p254 = scmp.eq.s32.totalorder %s24, 0
      %p255 = por %p253, %p254
      %p256 = scmp.ne.s32.totalorder %s244, %s245
      %p257 = scmp.eq.s32.totalorder %s25, 1
      %p258 = por %p256, %p257
      %p260 = scmp.ne.s32.totalorder %s245, %s259
      %p261 = scmp.eq.s32.totalorder %s25, 0
      %p262 = por %p260, %p261
      %s263 = ssub.s32 %s26, %s38
      %s264 = ssub.s32 %s27, %s34
      %s265 = sor.u32 %s263, %s264
      %p266 = scmp.eq.s32.totalorder %s265, 0
      %s268 = sadd.s32 %s267, 1
      %s269 = scalar_select %p266, %s267, %s268
      %p272 = pneg %p266
      %p273 = scmp.eq.s32.totalorder %s19, 1
      %p274 = por %p272, %p273
      %p275 = scmp.ne.s32.totalorder %s267, %s270
      %p276 = scmp.eq.s32.totalorder %s19, 0
      %p277 = por %p275, %p276
      %p278 = scmp.ne.s32.totalorder %s267, %s270
      %p279 = scmp.eq.s32.totalorder %s24, 1
      %p280 = por %p278, %p279
      %p281 = scmp.ne.s32.totalorder %s270, %s271
      %p282 = scmp.eq.s32.totalorder %s24, 0
      %p283 = por %p281, %p282
      %p284 = scmp.ne.s32.totalorder %s270, %s271
      %p285 = scmp.eq.s32.totalorder %s25, 1
      %p286 = por %p284, %p285
      %p288 = scmp.ne.s32.totalorder %s271, %s287
      %p289 = scmp.eq.s32.totalorder %s25, 0
      %p290 = por %p288, %p289
      %p291 = scmp.le.s32.totalorder 1, %s19
      %p292 = scmp.lt.s32.totalorder %s19, 3
      %p293 = pnand %p291, %p292
      %p294 = pneg %p293
      // Predicated region
      $region9: #{block_forward.5} parent=5 // pred_check
        _
      $region10: #{block_forward.5} parent=5 // pred_check_branch
        %296 = sbr.rel (%p293) target = $region12
      $region11: #{block_forward.5} parent=5 // pred_region
        %s297 = ssub.s32 %s19, 1
        // Predicated region
        $region13: #{block_forward.5} parent=11 // pred_check
          %p298 = pneg %p108
        $region14: #{block_forward.5} parent=11 // pred_check_branch
          %300 = sbr.rel (%p298) target = $region16
        $region15: #{block_forward.5} parent=11 // pred_region
          _
        $region16: #{block_forward.5} parent=11 // pred_fallthru
          _
        // Predicated region
        $region17: #{block_forward.5} parent=11 // pred_check
          %p301 = pneg %p129
        $region18: #{block_forward.5} parent=11 // pred_check_branch
          %303 = sbr.rel (%p301) target = $region20
        $region19: #{block_forward.5} parent=11 // pred_region
          _
        $region20: #{block_forward.5} parent=11 // pred_fallthru
          _
        // Predicated region
        $region21: #{block_forward.5} parent=11 // pred_check
          %p304 = pneg %p150
        $region22: #{block_forward.5} parent=11 // pred_check_branch
          %306 = sbr.rel (%p304) target = $region24
        $region23: #{block_forward.5} parent=11 // pred_region
          _
        $region24: #{block_forward.5} parent=11 // pred_fallthru
          _
        // Predicated region
        $region25: #{block_forward.5} parent=11 // pred_check
          %p307 = pneg %p171
        $region26: #{block_forward.5} parent=11 // pred_check_branch
          %309 = sbr.rel (%p307) target = $region28
        $region27: #{block_forward.5} parent=11 // pred_region
          _
        $region28: #{block_forward.5} parent=11 // pred_fallthru
          _
        // Predicated region
        $region29: #{block_forward.5} parent=11 // pred_check
          %p310 = pneg %p192
        $region30: #{block_forward.5} parent=11 // pred_check_branch
          %312 = sbr.rel (%p310) target = $region32
        $region31: #{block_forward.5} parent=11 // pred_region
          _
        $region32: #{block_forward.5} parent=11 // pred_fallthru
          _
        // Predicated region
        $region33: #{block_forward.5} parent=11 // pred_check
          %p313 = pneg %p213
        $region34: #{block_forward.5} parent=11 // pred_check_branch
          %315 = sbr.rel (%p313) target = $region36
        $region35: #{block_forward.5} parent=11 // pred_region
          _
        $region36: #{block_forward.5} parent=11 // pred_fallthru
          _
        // Predicated region
        $region37: #{block_forward.5} parent=11 // pred_check
          %p316 = pneg %p234
        $region38: #{block_forward.5} parent=11 // pred_check_branch
          %318 = sbr.rel (%p316) target = $region40
        $region39: #{block_forward.5} parent=11 // pred_region
          _
        $region40: #{block_forward.5} parent=11 // pred_fallthru
          _
        // Predicated region
        $region41: #{block_forward.5} parent=11 // pred_check
          %p319 = pneg %p255
        $region42: #{block_forward.5} parent=11 // pred_check_branch
          %321 = sbr.rel (%p319) target = $region44
        $region43: #{block_forward.5} parent=11 // pred_region
          _
        $region44: #{block_forward.5} parent=11 // pred_fallthru
          _
      $region12: #{block_forward.5} parent=5 // pred_fallthru
        _
      %p322 = scmp.lt.s32.totalorder %s19, 2
      // Predicated region
      $region45: #{block_forward.5} parent=5 // pred_check
        %p323 = pneg %p322
      $region46: #{block_forward.5} parent=5 // pred_check_branch
        %325 = sbr.rel (%p323) target = $region48
      $region47: #{block_forward.5} parent=5 // pred_region
        // Predicated region
        $region49: #{block_forward.5} parent=47 // pred_check
          %p326 = pneg %p53
        $region50: #{block_forward.5} parent=47 // pred_check_branch
          %328 = sbr.rel (%p326) target = $region52
        $region51: #{block_forward.5} parent=47 // pred_region
          %p329 = scmp.lt.s32.totalorder %s26, 1
          %s330 = scalar_select %p329, %s26, 1
          %p331 = scmp.lt.s32.totalorder %s27, 0
          %s332 = scalar_select %p331, %s27, 0
          %s333 = sadd.s32 %s332, %s330
          %s334 = smul.addr %s333, 8
          %s335 = scalar_lea.vmem %s0, %s334
        $region52: #{block_forward.5} parent=47 // pred_fallthru
          _
        // Predicated region
        $region53: #{block_forward.5} parent=47 // pred_check
          %p336 = pneg %p81
        $region54: #{block_forward.5} parent=47 // pred_check_branch
          %338 = sbr.rel (%p336) target = $region56
        $region55: #{block_forward.5} parent=47 // pred_region
          %p339 = scmp.lt.s32.totalorder %s26, 1
          %s340 = scalar_select %p339, %s26, 1
          %p341 = scmp.lt.s32.totalorder %s27, 0
          %s342 = scalar_select %p341, %s27, 0
          %s343 = sadd.s32 %s342, %s340
          %s344 = smul.addr %s343, 4
          %s345 = scalar_lea.vmem %s1, %s344
        $region56: #{block_forward.5} parent=47 // pred_fallthru
          _
      $region48: #{block_forward.5} parent=5 // pred_fallthru
        _
      %p346 = scmp.le.s32.totalorder 1, %s19
      %p347 = scmp.lt.s32.totalorder %s19, 3
      %p348 = pnand %p346, %p347
      %p349 = pneg %p348
      // Predicated region
      $region57: #{block_forward.5} parent=5 // pred_check
        _
      $region58: #{block_forward.5} parent=5 // pred_check_branch
        %351 = sbr.rel (%p348) target = $region60
      $region59: #{block_forward.5} parent=5 // pred_region
        %s352 = ssub.s32 %s19, 1
        %p353 = scmp.lt.s32.totalorder %s28, 1
        %s354 = scalar_select %p353, %s28, 1
        %p355 = scmp.lt.s32.totalorder %s29, 0
        %s356 = scalar_select %p355, %s29, 0
        %s357 = sadd.s32 %s356, %s354
        %s358 = smul.addr %s357, 8
        %s359 = scalar_lea.vmem %s0, %s358
        %p360 = pneg %p59
        %p361 = pneg %p56
        %p362 = scmp.lt.s32.totalorder %s28, 1
        %s363 = scalar_select %p362, %s28, 1
        %p364 = scmp.lt.s32.totalorder %s29, 0
        %s365 = scalar_select %p364, %s29, 0
        %s366 = sadd.s32 %s365, %s363
        %s367 = smul.addr %s366, 4
        %s368 = scalar_lea.vmem %s1, %s367
        %p369 = pneg %p87
        %p370 = pneg %p84
        %p371 = pneg %p108
        %p372 = pneg %p105
        %p373 = pneg %p129
        %p374 = pneg %p126
        %p375 = pneg %p150
        %p376 = pneg %p147
        %p377 = pneg %p171
        %p378 = pneg %p168
        %p379 = pneg %p192
        %p380 = pneg %p189
        %p381 = pneg %p213
        %p382 = pneg %p210
        %p383 = pneg %p234
        %p384 = pneg %p231
        %p385 = pneg %p255
        %p386 = pneg %p252
        %p387 = pneg %p283
        %p388 = pneg %p280
        %s389 = sand.u32 %s270, 1
        %s390 = scalar_lea.sflag [#allocation3], %s389
        %s391 = sand.u32 %s270, 1
        %s392 = smul.addr %s391, 8
        %s393 = scalar_lea.vmem [#allocation2], %s392
        %p394 = scmp.lt.s32.totalorder %s28, 1
        %s395 = scalar_select %p394, %s28, 1
        %p396 = scmp.lt.s32.totalorder %s29, 0
        %s397 = scalar_select %p396, %s29, 0
        %s398 = sadd.s32 %s397, %s395
        %s399 = smul.addr %s398, 8
        %s400 = scalar_lea.vmem %s0, %s399
        %p401 = scmp.lt.s32.totalorder %s28, 1
        %s402 = scalar_select %p401, %s28, 1
        %p403 = scmp.lt.s32.totalorder %s29, 0
        %s404 = scalar_select %p403, %s29, 0
        %s405 = sadd.s32 %s404, %s402
        %s406 = smul.addr %s405, 4
        %s407 = scalar_lea.vmem %s1, %s406
        %v409 = vld [vmem:[%s400] sm:$0xff]
        %v410 = vld [vmem:[%s407] sm:$0xf]
        %v411 = vld [vmem:[%s2] sm:$0xf]
        %v412 = vld [vmem:[%s2 + $0x4] sm:$0xf]
        %v413 = vld [vmem:[%s2 + $0x8] sm:$0xf]
        %v414 = vld [vmem:[%s2 + $0xc] sm:$0xf]
        %v415 = vld [vmem:[%s3] sm:$0x1]
        %v417 = vlaneseq
        %v418 = vshrl.u32 %v417, 7
        %v419 = vsub.s32 0, %v418
        %v420 = vrot.slane %v415, %v419
        %v426 = vunpack.c.l.b16 %v411
        %v427 = vunpack.c.l.b16 %v412
        %v428 = vunpack.c.l.b16 %v413
        %v429 = vunpack.c.l.b16 %v414
        %v430 = vpack.c.b16 %v427, %v426
        %v431 = vpack.c.b16 %v429, %v428
        %vm434 = vcmask 261120
        %v436 = vsel %vm434, %v410, 0
        %438 = vmatprep.subr.bf16.mxu0 0
        %439 = vmatpush1.bf16.msra.mxu0 %v430
        %440 = vmatprep.subr.bf16.mxu0 0
        %441 = vmatpush1.bf16.msra.mxu0 %v431
        %442 = vmatprep.subr.bf16.mxu0 0
        %443 = vmatpush1.bf16.msra.mxu0 0
        %444 = vmatprep.subr.bf16.mxu0 0
        %445 = vmatpush1.bf16.msra.mxu0 0
        %446 = vmatprep.subr.bf16.mxu0 0
        %447 = vmatpush1.bf16.msra.mxu0 0
        %448 = vmatprep.subr.bf16.mxu0 0
        %449 = vmatpush1.bf16.msra.mxu0 0
        %450 = vmatprep.subr.bf16.mxu0 0
        %451 = vmatpush1.bf16.msra.mxu0 0
        %452 = vmatprep.subr.bf16.mxu0 0
        %453 = vmatpush1.bf16.msra.mxu0 0
        %454 = vmatprep.subr.bf16.mxu0 0
        %455 = vmatpush1.bf16.msra.mxu0 0
        %456 = vmatprep.subr.bf16.mxu0 0
        %457 = vmatpush1.bf16.msra.mxu0 0
        %458 = vmatprep.subr.bf16.mxu0 0
        %459 = vmatpush1.bf16.msra.mxu0 0
        %460 = vmatprep.subr.bf16.mxu0 0
        %461 = vmatpush1.bf16.msra.mxu0 0
        %462 = vmatprep.subr.bf16.mxu0 0
        %463 = vmatpush1.bf16.msra.mxu0 0
        %464 = vmatprep.subr.bf16.mxu0 0
        %465 = vmatpush1.bf16.msra.mxu0 0
        %466 = vmatprep.subr.bf16.mxu0 0
        %467 = vmatpush1.bf16.msra.mxu0 0
        %468 = vmatprep.subr.bf16.mxu0 0
        %469 = vmatpush1.bf16.msra.mxu0 0
        %470 = vmatprep.mubr.bf16.mxu0 0
        %471 = vmatmul.mubr.bf16.gmra.mrb[0].mxu0 %v436
        %v472 = vpop.f32.mrb[0].mxu0
        %v473 = vadd.f32 %v420, %v472
        %v474 = vpop.f32.mrb[0].mxu0
        %v475 = vpop.f32.mrb[0].mxu0
        %v476 = vpop.f32.mrb[0].mxu0
        %477 = vdwg.mxu0
        %v478 = vadd.f32 %v409, %v473
        %v479 = vld [vmem:[%s4] sm:$0x1]
        %v480 = vld [vmem:[%s5] sm:$0x1]
        %v481 = vsel %vm434, %v478, 0.0
        %482 = vadd.xlane.f32.xlu0 %v481
        %v483 = vpop.xlane.xlu0 %482
        %v484 = vrcp.pop 32.0
        %v485 = vmul.f32 %v483, %v484
        %v486 = vsub.f32 %v478, %v485
        %v487 = vmul.f32 %v486, %v486
        %v488 = vsel %vm434, %v487, 0.0
        %489 = vadd.xlane.f32.xlu0 %v488
        %v490 = vpop.xlane.xlu0 %489
        %v491 = vmul.f32 %v490, %v484
        %v492 = vadd.f32 %v491, 1e-05
        %v493 = vrsqrt.pop %v492
        %v494 = vmul.f32 %v486, %v493
        %v496 = vlaneseq
        %v497 = vshrl.u32 %v496, 7
        %v498 = vsub.s32 0, %v497
        %v499 = vrot.slane %v479, %v498
        %v501 = vmul.f32 %v494, %v499
        %v503 = vlaneseq
        %v504 = vshrl.u32 %v503, 7
        %v505 = vsub.s32 0, %v504
        %v506 = vrot.slane %v480, %v505
        %v508 = vadd.f32 %v501, %v506
        %v509 = vpack.c.bf16 %v508, %v508
        %v510 = vld [vmem:[%s6] sm:$0xf]
        %v511 = vld [vmem:[%s6 + $0x4] sm:$0xf]
        %v512 = vld [vmem:[%s6 + $0x8] sm:$0xf]
        %v513 = vld [vmem:[%s6 + $0xc] sm:$0xf]
        %v514 = vld [vmem:[%s7] sm:$0x1]
        %v516 = vlaneseq
        %v517 = vshrl.u32 %v516, 7
        %v518 = vsub.s32 0, %v517
        %v519 = vrot.slane %v514, %v518
        %v525 = vunpack.c.l.b16 %v510
        %v526 = vunpack.c.l.b16 %v511
        %v527 = vunpack.c.l.b16 %v512
        %v528 = vunpack.c.l.b16 %v513
        %v529 = vpack.c.b16 %v526, %v525
        %v530 = vpack.c.b16 %v528, %v527
        %v534 = vsel %vm434, %v509, 0
        %536 = vmatprep.subr.bf16.mxu0 0
        %537 = vmatpush1.bf16.msra.mxu0 %v529
        %538 = vmatprep.subr.bf16.mxu0 0
        %539 = vmatpush1.bf16.msra.mxu0 %v530
        %540 = vmatprep.subr.bf16.mxu0 0
        %541 = vmatpush1.bf16.msra.mxu0 0
        %542 = vmatprep.subr.bf16.mxu0 0
        %543 = vmatpush1.bf16.msra.mxu0 0
        %544 = vmatprep.subr.bf16.mxu0 0
        %545 = vmatpush1.bf16.msra.mxu0 0
        %546 = vmatprep.subr.bf16.mxu0 0
        %547 = vmatpush1.bf16.msra.mxu0 0
        %548 = vmatprep.subr.bf16.mxu0 0
        %549 = vmatpush1.bf16.msra.mxu0 0
        %550 = vmatprep.subr.bf16.mxu0 0
        %551 = vmatpush1.bf16.msra.mxu0 0
        %552 = vmatprep.subr.bf16.mxu0 0
        %553 = vmatpush1.bf16.msra.mxu0 0
        %554 = vmatprep.subr.bf16.mxu0 0
        %555 = vmatpush1.bf16.msra.mxu0 0
        %556 = vmatprep.subr.bf16.mxu0 0
        %557 = vmatpush1.bf16.msra.mxu0 0
        %558 = vmatprep.subr.bf16.mxu0 0
        %559 = vmatpush1.bf16.msra.mxu0 0
        %560 = vmatprep.subr.bf16.mxu0 0
        %561 = vmatpush1.bf16.msra.mxu0 0
        %562 = vmatprep.subr.bf16.mxu0 0
        %563 = vmatpush1.bf16.msra.mxu0 0
        %564 = vmatprep.subr.bf16.mxu0 0
        %565 = vmatpush1.bf16.msra.mxu0 0
        %566 = vmatprep.subr.bf16.mxu0 0
        %567 = vmatpush1.bf16.msra.mxu0 0
        %568 = vmatprep.mubr.bf16.mxu0 0
        %569 = vmatmul.mubr.bf16.gmra.mrb[0].mxu0 %v534
        %v570 = vpop.f32.mrb[0].mxu0
        %v571 = vadd.f32 %v519, %v570
        %v572 = vpop.f32.mrb[0].mxu0
        %v573 = vpop.f32.mrb[0].mxu0
        %v574 = vpop.f32.mrb[0].mxu0
        %575 = vdwg.mxu0
        %v576 = vmul.f32 %v571, 0.5
        %v577 = vmul.f32 %v571, 0.70710677
        %v578 = verf.f32.pop %v577
        %v579 = vadd.f32 %v578, 1.0
        %v580 = vmul.f32 %v576, %v579
        %v581 = vpack.c.bf16 %v580, %v580
        %v582 = vld [vmem:[%s8] sm:$0xf]
        %v583 = vld [vmem:[%s8 + $0x4] sm:$0xf]
        %v584 = vld [vmem:[%s8 + $0x8] sm:$0xf]
        %v585 = vld [vmem:[%s8 + $0xc] sm:$0xf]
        %v586 = vld [vmem:[%s8 + $0x10] sm:$0xf]
        %v587 = vld [vmem:[%s8 + $0x14] sm:$0xf]
        %v588 = vld [vmem:[%s8 + $0x18] sm:$0xf]
        %v589 = vld [vmem:[%s8 + $0x1c] sm:$0xf]
        %v590 = vld [vmem:[%s8 + $0x20] sm:$0xf]
        %v591 = vld [vmem:[%s8 + $0x24] sm:$0xf]
        %v592 = vld [vmem:[%s8 + $0x28] sm:$0xf]
        %v593 = vld [vmem:[%s8 + $0x2c] sm:$0xf]
        %v594 = vld [vmem:[%s8 + $0x30] sm:$0xf]
        %v595 = vld [vmem:[%s8 + $0x34] sm:$0xf]
        %v596 = vld [vmem:[%s8 + $0x38] sm:$0xf]
        %v597 = vld [vmem:[%s8 + $0x3c] sm:$0xf]
        %v598 = vld [vmem:[%s9] sm:$0x1]
        %v600 = vlaneseq
        %v601 = vshrl.u32 %v600, 7
        %v602 = vsub.s32 0, %v601
        %v603 = vrot.slane %v598, %v602
        %v621 = vunpack.c.l.b16 %v582
        %v622 = vunpack.c.l.b16 %v583
        %v623 = vunpack.c.l.b16 %v584
        %v624 = vunpack.c.l.b16 %v585
        %v625 = vunpack.c.l.b16 %v586
        %v626 = vunpack.c.l.b16 %v587
        %v627 = vunpack.c.l.b16 %v588
        %v628 = vunpack.c.l.b16 %v589
        %v629 = vunpack.c.l.b16 %v590
        %v630 = vunpack.c.l.b16 %v591
        %v631 = vunpack.c.l.b16 %v592
        %v632 = vunpack.c.l.b16 %v593
        %v633 = vunpack.c.l.b16 %v594
        %v634 = vunpack.c.l.b16 %v595
        %v635 = vunpack.c.l.b16 %v596
        %v636 = vunpack.c.l.b16 %v597
        %v637 = vpack.c.b16 %v622, %v621
        %v638 = vpack.c.b16 %v624, %v623
        %v639 = vpack.c.b16 %v626, %v625
        %v640 = vpack.c.b16 %v628, %v627
        %v641 = vpack.c.b16 %v630, %v629
        %v642 = vpack.c.b16 %v632, %v631
        %v643 = vpack.c.b16 %v634, %v633
        %v644 = vpack.c.b16 %v636, %v635
        %653 = vmatprep.subr.bf16.mxu0 0
        %654 = vmatpush1.bf16.msra.mxu0 %v637
        %655 = vmatprep.subr.bf16.mxu0 0
        %656 = vmatpush1.bf16.msra.mxu0 %v638
        %657 = vmatprep.subr.bf16.mxu0 0
        %658 = vmatpush1.bf16.msra.mxu0 %v639
        %659 = vmatprep.subr.bf16.mxu0 0
        %660 = vmatpush1.bf16.msra.mxu0 %v640
        %661 = vmatprep.subr.bf16.mxu0 0
        %662 = vmatpush1.bf16.msra.mxu0 %v641
        %663 = vmatprep.subr.bf16.mxu0 0
        %664 = vmatpush1.bf16.msra.mxu0 %v642
        %665 = vmatprep.subr.bf16.mxu0 0
        %666 = vmatpush1.bf16.msra.mxu0 %v643
        %667 = vmatprep.subr.bf16.mxu0 0
        %668 = vmatpush1.bf16.msra.mxu0 %v644
        %669 = vmatprep.subr.bf16.mxu0 0
        %670 = vmatpush1.bf16.msra.mxu0 0
        %671 = vmatprep.subr.bf16.mxu0 0
        %672 = vmatpush1.bf16.msra.mxu0 0
        %673 = vmatprep.subr.bf16.mxu0 0
        %674 = vmatpush1.bf16.msra.mxu0 0
        %675 = vmatprep.subr.bf16.mxu0 0
        %676 = vmatpush1.bf16.msra.mxu0 0
        %677 = vmatprep.subr.bf16.mxu0 0
        %678 = vmatpush1.bf16.msra.mxu0 0
        %679 = vmatprep.subr.bf16.mxu0 0
        %680 = vmatpush1.bf16.msra.mxu0 0
        %681 = vmatprep.subr.bf16.mxu0 0
        %682 = vmatpush1.bf16.msra.mxu0 0
        %683 = vmatprep.subr.bf16.mxu0 0
        %684 = vmatpush1.bf16.msra.mxu0 0
        %685 = vmatprep.mubr.bf16.mxu0 0
        %686 = vmatmul.mubr.bf16.gmra.mrb[0].mxu0 %v581
        %v687 = vpop.f32.mrb[0].mxu0
        %v688 = vadd.f32 %v603, %v687
        %v689 = vpop.f32.mrb[0].mxu0
        %v690 = vpop.f32.mrb[0].mxu0
        %v691 = vpop.f32.mrb[0].mxu0
        %692 = vdwg.mxu0
        %v693 = vadd.f32 %v478, %v688
        %694 = vst.msk [vmem:[%s393] sm:$0xff] %vm434, %v693
        %s695 = sand.u32 %s270, 1
        %s696 = scalar_lea.sflag [#allocation3], %s695
        %s697 = sand.u32 %s270, 1
        %s698 = smul.addr %s697, 8
        %s699 = scalar_lea.vmem [#allocation2], %s698
        // Predicated region
        $region61: #{block_forward.5} parent=59 // pred_check
          %p700 = pneg %p280
        $region62: #{block_forward.5} parent=59 // pred_check_branch
          %702 = sbr.rel (%p700) target = $region64
        $region63: #{block_forward.5} parent=59 // pred_region
          %s704 = ssub.s32 128, 128
          %705 = vsyncadd %s696, %s704
          %s706 = sadd.s32 %s29, %s28
          %s707 = smul.addr %s706, 128
          %s708 = scalar_lea.hbm %s10, %s707
          %s710 = sshll.u32 %s699, 4
          %s711 = int_to_ptr.vmem [resolvable:$true] %s710
          %713 = dma.vmem_to_hbm [thread:$0]  %s711, 128, %s708, %s696
        $region64: #{block_forward.5} parent=59 // pred_fallthru
          _
      $region60: #{block_forward.5} parent=5 // pred_fallthru
        _
      %p714 = scmp.le.s32.totalorder 2, %s19
      // Predicated region
      $region65: #{block_forward.5} parent=5 // pred_check
        %p715 = pneg %p714
      $region66: #{block_forward.5} parent=5 // pred_check_branch
        %717 = sbr.rel (%p715) target = $region68
      $region67: #{block_forward.5} parent=5 // pred_region
        %s718 = ssub.s32 %s19, 2
        // Predicated region
        $region69: #{block_forward.5} parent=67 // pred_check
          %p719 = pneg %p286
        $region70: #{block_forward.5} parent=67 // pred_check_branch
          %721 = sbr.rel (%p719) target = $region72
        $region71: #{block_forward.5} parent=67 // pred_region
          %s722 = sand.u32 %s271, 1
          %s723 = scalar_lea.sflag [#allocation3], %s722
          %s724 = sand.u32 %s271, 1
          %s725 = smul.addr %s724, 8
          %s726 = scalar_lea.vmem [#allocation2], %s725
          %727 = dma.done %s723, 128
        $region72: #{block_forward.5} parent=67 // pred_fallthru
          _
      $region68: #{block_forward.5} parent=5 // pred_fallthru
        _
    $region6: #{block_forward.5} parent=1 // loop_footer
      %s23 = sadd.s32 1, %s19
    $region7: #{block_forward.5} parent=1 // loop_footer_branch
      %18 = sbr.rel target = $region3
    $region8: #{block_forward.5} parent=1 // loop_exit
      _
    %728 = vsyncpa [#allocation3], 1
    %s729 = scalar_lea.sflag [#allocation3], 1
    %730 = vsyncpa %s729, 1

// kernel: block_forward.4
$region0: #{block_forward.4}
  #allocation0 [shape = 'u32[]', space=smem, size = 0x4, offset = 0x4, fixed_abs, tag = 'smem constant byte address 0x4 - core index']
  #allocation1 [shape = 'u32[144,128]{1,0:T(1,128)}', space=vmem, size = 0x12000, scoped, tag = 'internal scratch']
  #allocation2 [shape = 'f32[4,8,1]{2,1,0:T(8,128)}', space=vmem, size = 0x4000, scoped, tag = 'scratch operand']
  #allocation3 [shape = 'f32[4,8,1]{2,1,0:T(8,128)}', space=vmem, size = 0x4000, scoped, tag = 'scratch operand']
  #allocation4 [shape = 'f32[8,32]{1,0:T(8,128)}', space=vmem, size = 0x1000, scoped, tag = 'scratch operand']
  %s0 = inlined_call_operand.vmem [shape: bf16[2,8,32], index: 0, kind: input, shape index: {}]
  %s1 = inlined_call_operand.vmem [shape: bf16[2,8,32], index: 1, kind: input, shape index: {}]
  %s2 = inlined_call_operand.vmem [shape: bf16[2,8,32], index: 2, kind: input, shape index: {}]
  %s3 = inlined_call_operand.vmem [shape: bf16[2,8,32], index: 3, kind: output, shape index: {}]
  %s4 = sld [smem:[#allocation0]]
  $region61: #{block_forward.4} parent=0
    _
  %s6 = ssub.s32 1, %s4
  %s7 = scalar_select 0, %s6, %s4
  loop: start=0, step=1, limit=4
  $region2: #{block_forward.4} parent=0 // loop_pre_header
    _
  $region3: #{block_forward.4} parent=0 // loop_header
    %s9 = sphi 0, %s13
    %p10 = scmp.ge.s32.totalorder %s9, 4
    %s16 = sphi 0, %s35
    %s17 = sphi 0, %s31
    %s18 = sphi 0, %s27
    %s19 = sphi 0, %s16
    %s20 = sphi 0, %s17
    %s21 = sphi 0, %s18
    %s22 = sphi 0, %s19
    %s23 = sphi 0, %s20
    %s24 = sphi 0, %s21
    %s40 = sphi 0, %s42
    %s43 = sphi 0, %s40
    %s44 = sphi 0, %s43
    %s60 = sphi 0, %s44
    %s72 = sphi 0, %s74
    %s75 = sphi 0, %s72
    %s76 = sphi 0, %s75
    %s92 = sphi 0, %s76
    %s104 = sphi 0, %s106
    %s107 = sphi 0, %s104
    %s108 = sphi 0, %s107
    %s124 = sphi 0, %s108
    %s132 = sphi 0, %s134
    %s135 = sphi 0, %s132
    %s136 = sphi 0, %s135
    %s152 = sphi 0, %s136
  $region4: #{block_forward.4} parent=0 // loop_header_branch
    %12 = sbr.rel (%p10) target = $region8
  $region5: #{block_forward.4} parent=0 // loop_body
    %s14 = ssub.s32 %s9, 1
    %s15 = ssub.s32 %s9, 2
    %s25 = sadd.s32 1, %s18
    %p26 = scmp.ge.s32.totalorder %s25, 1
    %s27 = scalar_select %p26, 0, %s25
    %s28 = sadd.s32 1, %s17
    %s29 = scalar_select %p26, %s28, %s17
    %p30 = scmp.ge.s32.totalorder %s29, 1
    %s31 = scalar_select %p30, 0, %s29
    %s32 = sadd.s32 1, %s16
    %s33 = scalar_select %p30, %s32, %s16
    %p34 = scmp.ge.s32.totalorder %s33, 2
    %s35 = scalar_select %p34, 0, %s33
    %s36 = ssub.s32 %s16, %s35
    %s37 = ssub.s32 %s17, %s31
    %s38 = sor.u32 %s36, %s37
    %p39 = scmp.eq.s32.totalorder %s38, 0
    %s41 = sadd.s32 %s40, 1
    %s42 = scalar_select %p39, %s40, %s41
    %p45 = pneg %p39
    %p46 = scmp.eq.s32.totalorder %s9, 1
    %p47 = por %p45, %p46
    %p48 = scmp.ne.s32.totalorder %s40, %s43
    %p49 = scmp.eq.s32.totalorder %s9, 0
    %p50 = por %p48, %p49
    %p51 = scmp.ne.s32.totalorder %s40, %s43
    %p52 = scmp.eq.s32.totalorder %s14, 1
    %p53 = por %p51, %p52
    %p54 = scmp.ne.s32.totalorder %s43, %s44
    %p55 = scmp.eq.s32.totalorder %s14, 0
    %p56 = por %p54, %p55
    %p57 = scmp.ne.s32.totalorder %s43, %s44
    %p58 = scmp.eq.s32.totalorder %s15, 1
    %p59 = por %p57, %p58
    %p61 = scmp.ne.s32.totalorder %s44, %s60
    %p62 = scmp.eq.s32.totalorder %s15, 0
    %p63 = por %p61, %p62
    %p64 = scmp.lt.s32.totalorder %s18, %s17
    %s65 = scalar_select %p64, %s18, %s17
    %p66 = scmp.lt.s32.totalorder %s27, %s31
    %s67 = scalar_select %p66, %s27, %s31
    %s68 = ssub.s32 %s16, %s35
    %s69 = ssub.s32 %s65, %s67
    %s70 = sor.u32 %s68, %s69
    %p71 = scmp.eq.s32.totalorder %s70, 0
    %s73 = sadd.s32 %s72, 1
    %s74 = scalar_select %p71, %s72, %s73
    %p77 = pneg %p71
    %p78 = scmp.eq.s32.totalorder %s9, 1
    %p79 = por %p77, %p78
    %p80 = scmp.ne.s32.totalorder %s72, %s75
    %p81 = scmp.eq.s32.totalorder %s9, 0
    %p82 = por %p80, %p81
    %p83 = scmp.ne.s32.totalorder %s72, %s75
    %p84 = scmp.eq.s32.totalorder %s14, 1
    %p85 = por %p83, %p84
    %p86 = scmp.ne.s32.totalorder %s75, %s76
    %p87 = scmp.eq.s32.totalorder %s14, 0
    %p88 = por %p86, %p87
    %p89 = scmp.ne.s32.totalorder %s75, %s76
    %p90 = scmp.eq.s32.totalorder %s15, 1
    %p91 = por %p89, %p90
    %p93 = scmp.ne.s32.totalorder %s76, %s92
    %p94 = scmp.eq.s32.totalorder %s15, 0
    %p95 = por %p93, %p94
    %p96 = scmp.lt.s32.totalorder %s18, %s17
    %s97 = scalar_select %p96, %s18, %s17
    %p98 = scmp.lt.s32.totalorder %s27, %s31
    %s99 = scalar_select %p98, %s27, %s31
    %s100 = ssub.s32 %s16, %s35
    %s101 = ssub.s32 %s97, %s99
    %s102 = sor.u32 %s100, %s101
    %p103 = scmp.eq.s32.totalorder %s102, 0
    %s105 = sadd.s32 %s104, 1
    %s106 = scalar_select %p103, %s104, %s105
    %p109 = pneg %p103
    %p110 = scmp.eq.s32.totalorder %s9, 1
    %p111 = por %p109, %p110
    %p112 = scmp.ne.s32.totalorder %s104, %s107
    %p113 = scmp.eq.s32.totalorder %s9, 0
    %p114 = por %p112, %p113
    %p115 = scmp.ne.s32.totalorder %s104, %s107
    %p116 = scmp.eq.s32.totalorder %s14, 1
    %p117 = por %p115, %p116
    %p118 = scmp.ne.s32.totalorder %s107, %s108
    %p119 = scmp.eq.s32.totalorder %s14, 0
    %p120 = por %p118, %p119
    %p121 = scmp.ne.s32.totalorder %s107, %s108
    %p122 = scmp.eq.s32.totalorder %s15, 1
    %p123 = por %p121, %p122
    %p125 = scmp.ne.s32.totalorder %s108, %s124
    %p126 = scmp.eq.s32.totalorder %s15, 0
    %p127 = por %p125, %p126
    %s128 = ssub.s32 %s16, %s35
    %s129 = ssub.s32 %s17, %s31
    %s130 = sor.u32 %s128, %s129
    %p131 = scmp.eq.s32.totalorder %s130, 0
    %s133 = sadd.s32 %s132, 1
    %s134 = scalar_select %p131, %s132, %s133
    %p137 = pneg %p131
    %p138 = scmp.eq.s32.totalorder %s9, 1
    %p139 = por %p137, %p138
    %p140 = scmp.ne.s32.totalorder %s132, %s135
    %p141 = scmp.eq.s32.totalorder %s9, 0
    %p142 = por %p140, %p141
    %p143 = scmp.ne.s32.totalorder %s132, %s135
    %p144 = scmp.eq.s32.totalorder %s14, 1
    %p145 = por %p143, %p144
    %p146 = scmp.ne.s32.totalorder %s135, %s136
    %p147 = scmp.eq.s32.totalorder %s14, 0
    %p148 = por %p146, %p147
    %p149 = scmp.ne.s32.totalorder %s135, %s136
    %p150 = scmp.eq.s32.totalorder %s15, 1
    %p151 = por %p149, %p150
    %p153 = scmp.ne.s32.totalorder %s136, %s152
    %p154 = scmp.eq.s32.totalorder %s15, 0
    %p155 = por %p153, %p154
    %p156 = scmp.le.s32.totalorder 1, %s9
    %p157 = scmp.lt.s32.totalorder %s9, 3
    %p158 = pnand %p156, %p157
    %p159 = pneg %p158
    // Predicated region
    $region9: #{block_forward.4} parent=5 // pred_check
      _
    $region10: #{block_forward.4} parent=5 // pred_check_branch
      %161 = sbr.rel (%p158) target = $region12
    $region11: #{block_forward.4} parent=5 // pred_region
      %s162 = ssub.s32 %s9, 1
    $region12: #{block_forward.4} parent=5 // pred_fallthru
      _
    %p163 = scmp.lt.s32.totalorder %s9, 2
    // Predicated region
    $region13: #{block_forward.4} parent=5 // pred_check
      %p164 = pneg %p163
    $region14: #{block_forward.4} parent=5 // pred_check_branch
      %166 = sbr.rel (%p164) target = $region16
    $region15: #{block_forward.4} parent=5 // pred_region
      // Predicated region
      $region17: #{block_forward.4} parent=15 // pred_check
        %p167 = pneg %p50
      $region18: #{block_forward.4} parent=15 // pred_check_branch
        %169 = sbr.rel (%p167) target = $region20
      $region19: #{block_forward.4} parent=15 // pred_region
        %p170 = scmp.lt.s32.totalorder %s16, 1
        %s171 = scalar_select %p170, %s16, 1
        %p172 = scmp.lt.s32.totalorder %s17, 0
        %s173 = scalar_select %p172, %s17, 0
        %s174 = sadd.s32 %s173, %s171
        %s175 = smul.addr %s174, 4
        %s176 = scalar_lea.vmem %s0, %s175
      $region20: #{block_forward.4} parent=15 // pred_fallthru
        _
      // Predicated region
      $region21: #{block_forward.4} parent=15 // pred_check
        %p177 = pneg %p82
      $region22: #{block_forward.4} parent=15 // pred_check_branch
        %179 = sbr.rel (%p177) target = $region24
      $region23: #{block_forward.4} parent=15 // pred_region
        %p180 = scmp.lt.s32.totalorder %s18, %s17
        %s181 = scalar_select %p180, %s18, %s17
        %p182 = scmp.lt.s32.totalorder %s16, 1
        %s183 = scalar_select %p182, %s16, 1
        %p184 = scmp.lt.s32.totalorder %s181, 0
        %s185 = scalar_select %p184, %s181, 0
        %s186 = sadd.s32 %s185, %s183
        %s187 = smul.addr %s186, 4
        %s188 = scalar_lea.vmem %s1, %s187
        %p189 = scmp.lt.s32.totalorder %s18, %s17
        %s190 = scalar_select %p189, %s18, %s17
      $region24: #{block_forward.4} parent=15 // pred_fallthru
        _
      // Predicated region
      $region25: #{block_forward.4} parent=15 // pred_check
        %p191 = pneg %p114
      $region26: #{block_forward.4} parent=15 // pred_check_branch
        %193 = sbr.rel (%p191) target = $region28
      $region27: #{block_forward.4} parent=15 // pred_region
        %p194 = scmp.lt.s32.totalorder %s18, %s17
        %s195 = scalar_select %p194, %s18, %s17
        %p196 = scmp.lt.s32.totalorder %s16, 1
        %s197 = scalar_select %p196, %s16, 1
        %p198 = scmp.lt.s32.totalorder %s195, 0
        %s199 = scalar_select %p198, %s195, 0
        %s200 = sadd.s32 %s199, %s197
        %s201 = smul.addr %s200, 4
        %s202 = scalar_lea.vmem %s2, %s201
        %p203 = scmp.lt.s32.totalorder %s18, %s17
        %s204 = scalar_select %p203, %s18, %s17
      $region28: #{block_forward.4} parent=15 // pred_fallthru
        _
    $region16: #{block_forward.4} parent=5 // pred_fallthru
      _
    %p205 = scmp.le.s32.totalorder 1, %s9
    %p206 = scmp.lt.s32.totalorder %s9, 3
    %p207 = pnand %p205, %p206
    %p208 = pneg %p207
    // Predicated region
    $region29: #{block_forward.4} parent=5 // pred_check
      _
    $region30: #{block_forward.4} parent=5 // pred_check_branch
      %210 = sbr.rel (%p207) target = $region32
    $region31: #{block_forward.4} parent=5 // pred_region
      %s211 = ssub.s32 %s9, 1
      %p212 = scmp.lt.s32.totalorder %s19, 1
      %s213 = scalar_select %p212, %s19, 1
      %p214 = scmp.lt.s32.totalorder %s20, 0
      %s215 = scalar_select %p214, %s20, 0
      %s216 = sadd.s32 %s215, %s213
      %s217 = smul.addr %s216, 4
      %s218 = scalar_lea.vmem %s0, %s217
      %p219 = pneg %p56
      %p220 = pneg %p53
      %p221 = scmp.lt.s32.totalorder %s21, %s20
      %s222 = scalar_select %p221, %s21, %s20
      %p223 = scmp.lt.s32.totalorder %s19, 1
      %s224 = scalar_select %p223, %s19, 1
      %p225 = scmp.lt.s32.totalorder %s222, 0
      %s226 = scalar_select %p225, %s222, 0
      %s227 = sadd.s32 %s226, %s224
      %s228 = smul.addr %s227, 4
      %s229 = scalar_lea.vmem %s1, %s228
      %p230 = pneg %p88
      %p231 = pneg %p85
      %p232 = scmp.lt.s32.totalorder %s21, %s20
      %s233 = scalar_select %p232, %s21, %s20
      %p234 = scmp.lt.s32.totalorder %s19, 1
      %s235 = scalar_select %p234, %s19, 1
      %p236 = scmp.lt.s32.totalorder %s233, 0
      %s237 = scalar_select %p236, %s233, 0
      %s238 = sadd.s32 %s237, %s235
      %s239 = smul.addr %s238, 4
      %s240 = scalar_lea.vmem %s2, %s239
      %p241 = pneg %p120
      %p242 = pneg %p117
      %p243 = pneg %p148
      %p244 = pneg %p145
      %p245 = scmp.lt.s32.totalorder %s19, 1
      %s246 = scalar_select %p245, %s19, 1
      %p247 = scmp.lt.s32.totalorder %s20, 0
      %s248 = scalar_select %p247, %s20, 0
      %s249 = sadd.s32 %s248, %s246
      %s250 = smul.addr %s249, 4
      %s251 = scalar_lea.vmem %s3, %s250
      %p252 = scmp.lt.s32.totalorder %s19, 1
      %s253 = scalar_select %p252, %s19, 1
      %p254 = scmp.lt.s32.totalorder %s20, 0
      %s255 = scalar_select %p254, %s20, 0
      %s256 = sadd.s32 %s255, %s253
      %s257 = smul.addr %s256, 4
      %s258 = scalar_lea.vmem %s0, %s257
      %p259 = scmp.lt.s32.totalorder %s21, %s20
      %s260 = scalar_select %p259, %s21, %s20
      %p261 = scmp.lt.s32.totalorder %s19, 1
      %s262 = scalar_select %p261, %s19, 1
      %p263 = scmp.lt.s32.totalorder %s260, 0
      %s264 = scalar_select %p263, %s260, 0
      %s265 = sadd.s32 %s264, %s262
      %s266 = smul.addr %s265, 4
      %s267 = scalar_lea.vmem %s1, %s266
      %p268 = scmp.lt.s32.totalorder %s21, %s20
      %s269 = scalar_select %p268, %s21, %s20
      %p270 = scmp.lt.s32.totalorder %s21, %s20
      %s271 = scalar_select %p270, %s21, %s20
      %p272 = scmp.lt.s32.totalorder %s19, 1
      %s273 = scalar_select %p272, %s19, 1
      %p274 = scmp.lt.s32.totalorder %s271, 0
      %s275 = scalar_select %p274, %s271, 0
      %s276 = sadd.s32 %s275, %s273
      %s277 = smul.addr %s276, 4
      %s278 = scalar_lea.vmem %s2, %s277
      %p279 = scmp.lt.s32.totalorder %s21, %s20
      %s280 = scalar_select %p279, %s21, %s20
      %p281 = scmp.lt.s32.totalorder %s19, 1
      %s282 = scalar_select %p281, %s19, 1
      %p283 = scmp.lt.s32.totalorder %s20, 0
      %s284 = scalar_select %p283, %s20, 0
      %s285 = sadd.s32 %s284, %s282
      %s286 = smul.addr %s285, 4
      %s287 = scalar_lea.vmem %s3, %s286
      %p289 = scmp.eq.s32.totalorder %s21, 0
      // Predicated region
      $region33: #{block_forward.4} parent=31 // pred_check
        %p290 = pneg %p289
      $region34: #{block_forward.4} parent=31 // pred_check_branch
        %292 = sbr.rel (%p290) target = $region36
      $region35: #{block_forward.4} parent=31 // pred_region
        %vm293 = vcmask 7168
        %294 = vst.msk [vmem:[#allocation2] sm:$0xff] %vm293, -inf
        %295 = vst.msk [vmem:[#allocation2 + $0x8] sm:$0xff] %vm293, -inf
        %296 = vst.msk [vmem:[#allocation2 + $0x10] sm:$0xff] %vm293, -inf
        %297 = vst.msk [vmem:[#allocation2 + $0x18] sm:$0xff] %vm293, -inf
        %298 = vst.msk [vmem:[#allocation3] sm:$0xff] %vm293, 0.0
        %299 = vst.msk [vmem:[#allocation3 + $0x8] sm:$0xff] %vm293, 0.0
        %300 = vst.msk [vmem:[#allocation3 + $0x10] sm:$0xff] %vm293, 0.0
        %301 = vst.msk [vmem:[#allocation3 + $0x18] sm:$0xff] %vm293, 0.0
        %vm302 = vcmask 261120
        %303 = vst.msk [vmem:[#allocation4] sm:$0xff] %vm302, 0.0
      $region36: #{block_forward.4} parent=31 // pred_fallthru
        _
      %p304 = scmp.lt.s32.totalorder %s21, %s20
      // Predicated region
      $region37: #{block_forward.4} parent=31 // pred_check
        %p305 = pneg %p304
      $region38: #{block_forward.4} parent=31 // pred_check_branch
        %307 = sbr.rel (%p305) target = $region40
      $region39: #{block_forward.4} parent=31 // pred_region
        %v308 = vld [vmem:[%s258] sm:$0xf]
        %v309 = vld [vmem:[%s267] sm:$0xf]
        %vm310 = vcmask 64512
        %v312 = vsel %vm310, %v308, 0
        %v315 = vsel %vm310, %v309, 0
        %317 = vmatprep.subr.bf16.mxu0 0
        %318 = vmatpush1.bf16.xpose.msra.mxu0 %v315
        %319 = vmatprep.subr.bf16.mxu0 0
        %320 = vmatpush1.bf16.xpose.msra.mxu0 0
        %321 = vmatprep.subr.bf16.mxu0 0
        %322 = vmatpush1.bf16.xpose.msra.mxu0 0
        %323 = vmatprep.subr.bf16.mxu0 0
        %324 = vmatpush1.bf16.xpose.msra.mxu0 0
        %325 = vmatprep.subr.bf16.mxu0 0
        %326 = vmatpush1.bf16.xpose.msra.mxu0 0
        %327 = vmatprep.subr.bf16.mxu0 0
        %328 = vmatpush1.bf16.xpose.msra.mxu0 0
        %329 = vmatprep.subr.bf16.mxu0 0
        %330 = vmatpush1.bf16.xpose.msra.mxu0 0
        %331 = vmatprep.subr.bf16.mxu0 0
        %332 = vmatpush1.bf16.xpose.msra.mxu0 0
        %333 = vmatprep.subr.bf16.mxu0 0
        %334 = vmatpush1.bf16.xpose.msra.mxu0 0
        %335 = vmatprep.subr.bf16.mxu0 0
        %336 = vmatpush1.bf16.xpose.msra.mxu0 0
        %337 = vmatprep.subr.bf16.mxu0 0
        %338 = vmatpush1.bf16.xpose.msra.mxu0 0
        %339 = vmatprep.subr.bf16.mxu0 0
        %340 = vmatpush1.bf16.xpose.msra.mxu0 0
        %341 = vmatprep.subr.bf16.mxu0 0
        %342 = vmatpush1.bf16.xpose.msra.mxu0 0
        %343 = vmatprep.subr.bf16.mxu0 0
        %344 = vmatpush1.bf16.xpose.msra.mxu0 0
        %345 = vmatprep.subr.bf16.mxu0 0
        %346 = vmatpush1.bf16.xpose.msra.mxu0 0
        %347 = vmatprep.subr.bf16.mxu0 0
        %348 = vmatpush1.bf16.xpose.msra.mxu0 0
        %349 = vmatprep.mubr.bf16.mxu0 0
        %350 = vmatmul.mubr.bf16.gmra.mrb[0].mxu0 %v312
        %v351 = vpop.f32.mrb[0].mxu0
        %v352 = vadd.f32 0.0, %v351
        %v353 = vpop.f32.mrb[0].mxu0
        %v354 = vpop.f32.mrb[0].mxu0
        %v355 = vpop.f32.mrb[0].mxu0
        %356 = vdwg.mxu0
        %v357 = vld [vmem:[#allocation2] sm:$0xff]
        %v358 = vsel %vm310, %v352, -inf
        %359 = vmax.xlane.f32.xlu0 %v358
        %v360 = vpop.xlane.xlu0 %359
        %v361 = vmax.f32 %v357, %v360
        %v362 = vsub.f32 %v357, %v361
        %v363 = vmul.f32 %v362, 1.442695
        %v364 = vpow.pop %v363
        %366 = vset.pattern.permute.xlu0 0
        %367 = vperm.xlu0 %366, %v361
        %v368 = vpop.permute.xlu0 %367
        %v370 = vsub.f32 %v352, %v368
        %v371 = vmul.f32 %v370, 1.442695
        %v372 = vpow.pop %v371
        %v373 = vld [vmem:[#allocation3] sm:$0xff]
        %v374 = vmul.f32 %v364, %v373
        %v375 = vsel %vm310, %v372, 0.0
        %376 = vadd.xlane.f32.xlu0 %v375
        %v377 = vpop.xlane.xlu0 %376
        %v378 = vadd.f32 %v374, %v377
        %vm379 = vcmask 7168
        %380 = vst.msk [vmem:[#allocation3] sm:$0xff] %vm379, %v378
        %v381 = vld [vmem:[%s278] sm:$0xf]
        %v382 = vpack.c.bf16 %v372, %v372
        %v384 = vsel %vm310, %v382, 0
        %vm386 = vcmask 1043456
        %v388 = vsel %vm386, %v381, 0
        %390 = vmatprep.subr.bf16.mxu0 0
        %391 = vmatpush1.bf16.msra.mxu0 %v388
        %392 = vmatprep.subr.bf16.mxu0 0
        %393 = vmatpush1.bf16.msra.mxu0 0
        %394 = vmatprep.subr.bf16.mxu0 0
        %395 = vmatpush1.bf16.msra.mxu0 0
        %396 = vmatprep.subr.bf16.mxu0 0
        %397 = vmatpush1.bf16.msra.mxu0 0
        %398 = vmatprep.subr.bf16.mxu0 0
        %399 = vmatpush1.bf16.msra.mxu0 0
        %400 = vmatprep.subr.bf16.mxu0 0
        %401 = vmatpush1.bf16.msra.mxu0 0
        %402 = vmatprep.subr.bf16.mxu0 0
        %403 = vmatpush1.bf16.msra.mxu0 0
        %404 = vmatprep.subr.bf16.mxu0 0
        %405 = vmatpush1.bf16.msra.mxu0 0
        %406 = vmatprep.subr.bf16.mxu0 0
        %407 = vmatpush1.bf16.msra.mxu0 0
        %408 = vmatprep.subr.bf16.mxu0 0
        %409 = vmatpush1.bf16.msra.mxu0 0
        %410 = vmatprep.subr.bf16.mxu0 0
        %411 = vmatpush1.bf16.msra.mxu0 0
        %412 = vmatprep.subr.bf16.mxu0 0
        %413 = vmatpush1.bf16.msra.mxu0 0
        %414 = vmatprep.subr.bf16.mxu0 0
        %415 = vmatpush1.bf16.msra.mxu0 0
        %416 = vmatprep.subr.bf16.mxu0 0
        %417 = vmatpush1.bf16.msra.mxu0 0
        %418 = vmatprep.subr.bf16.mxu0 0
        %419 = vmatpush1.bf16.msra.mxu0 0
        %420 = vmatprep.subr.bf16.mxu0 0
        %421 = vmatpush1.bf16.msra.mxu0 0
        %422 = vmatprep.mubr.bf16.mxu0 0
        %423 = vmatmul.mubr.bf16.gmra.mrb[0].mxu0 %v384
        %v424 = vpop.f32.mrb[0].mxu0
        %v425 = vadd.f32 0.0, %v424
        %v426 = vpop.f32.mrb[0].mxu0
        %v427 = vpop.f32.mrb[0].mxu0
        %v428 = vpop.f32.mrb[0].mxu0
        %429 = vdwg.mxu0
        %v430 = vld [vmem:[#allocation4] sm:$0xff]
        %432 = vset.pattern.permute.xlu0 0
        %433 = vperm.xlu0 %432, %v364
        %v434 = vpop.permute.xlu0 %433
        %v436 = vmul.f32 %v434, %v430
        %v437 = vadd.f32 %v436, %v425
        %438 = vst.msk [vmem:[#allocation4] sm:$0xff] %vm310, %v437
        %439 = vst.msk [vmem:[#allocation2] sm:$0xff] %vm379, %v361
        %v440 = vld [vmem:[%s258] sm:$0xf]
        %v441 = vld [vmem:[%s267] sm:$0xf]
        %v443 = vunpack.c.l.b16 %v440
        %v444 = vpack.c.b16 %v443, %v443
        %445 = vrot.lane.b32.xlu0 %v444, 120
        %v446 = vpop.permute.xlu0 %445
        %v448 = vunpack.c.l.b16 %v441
        %v449 = vpack.c.b16 %v448, %v448
        %450 = vrot.lane.b32.xlu0 %v449, 120
        %v451 = vpop.permute.xlu0 %450
        %v453 = vsel %vm310, %v446, 0
        %v456 = vsel %vm310, %v451, 0
        %458 = vmatprep.subr.bf16.mxu0 0
        %459 = vmatpush1.bf16.xpose.msra.mxu0 %v456
        %460 = vmatprep.subr.bf16.mxu0 0
        %461 = vmatpush1.bf16.xpose.msra.mxu0 0
        %462 = vmatprep.subr.bf16.mxu0 0
        %463 = vmatpush1.bf16.xpose.msra.mxu0 0
        %464 = vmatprep.subr.bf16.mxu0 0
        %465 = vmatpush1.bf16.xpose.msra.mxu0 0
        %466 = vmatprep.subr.bf16.mxu0 0
        %467 = vmatpush1.bf16.xpose.msra.mxu0 0
        %468 = vmatprep.subr.bf16.mxu0 0
        %469 = vmatpush1.bf16.xpose.msra.mxu0 0
        %470 = vmatprep.subr.bf16.mxu0 0
        %471 = vmatpush1.bf16.xpose.msra.mxu0 0
        %472 = vmatprep.subr.bf16.mxu0 0
        %473 = vmatpush1.bf16.xpose.msra.mxu0 0
        %474 = vmatprep.subr.bf16.mxu0 0
        %475 = vmatpush1.bf16.xpose.msra.mxu0 0
        %476 = vmatprep.subr.bf16.mxu0 0
        %477 = vmatpush1.bf16.xpose.msra.mxu0 0
        %478 = vmatprep.subr.bf16.mxu0 0
        %479 = vmatpush1.bf16.xpose.msra.mxu0 0
        %480 = vmatprep.subr.bf16.mxu0 0
        %481 = vmatpush1.bf16.xpose.msra.mxu0 0
        %482 = vmatprep.subr.bf16.mxu0 0
        %483 = vmatpush1.bf16.xpose.msra.mxu0 0
        %484 = vmatprep.subr.bf16.mxu0 0
        %485 = vmatpush1.bf16.xpose.msra.mxu0 0
        %486 = vmatprep.subr.bf16.mxu0 0
        %487 = vmatpush1.bf16.xpose.msra.mxu0 0
        %488 = vmatprep.subr.bf16.mxu0 0
        %489 = vmatpush1.bf16.xpose.msra.mxu0 0
        %490 = vmatprep.mubr.bf16.mxu0 0
        %491 = vmatmul.mubr.bf16.gmra.mrb[0].mxu0 %v453
        %v492 = vpop.f32.mrb[0].mxu0
        %v493 = vadd.f32 0.0, %v492
        %v494 = vpop.f32.mrb[0].mxu0
        %v495 = vpop.f32.mrb[0].mxu0
        %v496 = vpop.f32.mrb[0].mxu0
        %497 = vdwg.mxu0
        %s498 = scalar_lea.vmem [#allocation2], 8
        %v499 = vld [vmem:[%s498] sm:$0xff]
        %v500 = vsel %vm310, %v493, -inf
        %501 = vmax.xlane.f32.xlu0 %v500
        %v502 = vpop.xlane.xlu0 %501
        %v503 = vmax.f32 %v499, %v502
        %v504 = vsub.f32 %v499, %v503
        %v505 = vmul.f32 %v504, 1.442695
        %v506 = vpow.pop %v505
        %508 = vset.pattern.permute.xlu0 0
        %509 = vperm.xlu0 %508, %v503
        %v510 = vpop.permute.xlu0 %509
        %v512 = vsub.f32 %v493, %v510
        %v513 = vmul.f32 %v512, 1.442695
        %v514 = vpow.pop %v513
        %s515 = scalar_lea.vmem [#allocation3], 8
        %v516 = vld [vmem:[%s515] sm:$0xff]
        %v517 = vmul.f32 %v506, %v516
        %v518 = vsel %vm310, %v514, 0.0
        %519 = vadd.xlane.f32.xlu0 %v518
        %v520 = vpop.xlane.xlu0 %519
        %v521 = vadd.f32 %v517, %v520
        %522 = vst.msk [vmem:[%s515] sm:$0xff] %vm379, %v521
        %v523 = vld [vmem:[%s278] sm:$0xf]
        %v524 = vpack.c.bf16 %v514, %v514
        %v526 = vunpack.c.l.b16 %v523
        %v527 = vpack.c.b16 %v526, %v526
        %528 = vrot.lane.b32.xlu0 %v527, 120
        %v529 = vpop.permute.xlu0 %528
        %v531 = vsel %vm310, %v524, 0
        %v534 = vsel %vm386, %v529, 0
        %536 = vmatprep.subr.bf16.mxu0 0
        %537 = vmatpush1.bf16.msra.mxu0 %v534
        %538 = vmatprep.subr.bf16.mxu0 0
        %539 = vmatpush1.bf16.msra.mxu0 0
        %540 = vmatprep.subr.bf16.mxu0 0
        %541 = vmatpush1.bf16.msra.mxu0 0
        %542 = vmatprep.subr.bf16.mxu0 0
        %543 = vmatpush1.bf16.msra.mxu0 0
        %544 = vmatprep.subr.bf16.mxu0 0
        %545 = vmatpush1.bf16.msra.mxu0 0
        %546 = vmatprep.subr.bf16.mxu0 0
        %547 = vmatpush1.bf16.msra.mxu0 0
        %548 = vmatprep.subr.bf16.mxu0 0
        %549 = vmatpush1.bf16.msra.mxu0 0
        %550 = vmatprep.subr.bf16.mxu0 0
        %551 = vmatpush1.bf16.msra.mxu0 0
        %552 = vmatprep.subr.bf16.mxu0 0
        %553 = vmatpush1.bf16.msra.mxu0 0
        %554 = vmatprep.subr.bf16.mxu0 0
        %555 = vmatpush1.bf16.msra.mxu0 0
        %556 = vmatprep.subr.bf16.mxu0 0
        %557 = vmatpush1.bf16.msra.mxu0 0
        %558 = vmatprep.subr.bf16.mxu0 0
        %559 = vmatpush1.bf16.msra.mxu0 0
        %560 = vmatprep.subr.bf16.mxu0 0
        %561 = vmatpush1.bf16.msra.mxu0 0
        %562 = vmatprep.subr.bf16.mxu0 0
        %563 = vmatpush1.bf16.msra.mxu0 0
        %564 = vmatprep.subr.bf16.mxu0 0
        %565 = vmatpush1.bf16.msra.mxu0 0
        %566 = vmatprep.subr.bf16.mxu0 0
        %567 = vmatpush1.bf16.msra.mxu0 0
        %568 = vmatprep.mubr.bf16.mxu0 0
        %569 = vmatmul.mubr.bf16.gmra.mrb[0].mxu0 %v531
        %v570 = vpop.f32.mrb[0].mxu0
        %v571 = vadd.f32 0.0, %v570
        %v572 = vpop.f32.mrb[0].mxu0
        %v573 = vpop.f32.mrb[0].mxu0
        %v574 = vpop.f32.mrb[0].mxu0
        %575 = vdwg.mxu0
        %v576 = vld [vmem:[#allocation4] sm:$0xff]
        %578 = vset.pattern.permute.xlu0 0
        %579 = vperm.xlu0 %578, %v506
        %v580 = vpop.permute.xlu0 %579
        %v582 = vmul.f32 %v580, %v576
        %584 = vrot.lane.b32.xlu0 %v571, 8
        %v585 = vpop.permute.xlu0 %584
        %v587 = vadd.f32 %v582, %v585
        %vm588 = vcmask 130112
        %589 = vst.msk [vmem:[#allocation4] sm:$0xff] %vm588, %v587
        %590 = vst.msk [vmem:[%s498] sm:$0xff] %vm379, %v503
        %v591 = vld [vmem:[%s258] sm:$0xf]
        %v592 = vld [vmem:[%s267] sm:$0xf]
        %v594 = vunpack.c.l.b16 %v591
        %v595 = vpack.c.b16 %v594, %v594
        %596 = vrot.lane.b32.xlu0 %v595, 112
        %v597 = vpop.permute.xlu0 %596
        %v599 = vunpack.c.l.b16 %v592
        %v600 = vpack.c.b16 %v599, %v599
        %601 = vrot.lane.b32.xlu0 %v600, 112
        %v602 = vpop.permute.xlu0 %601
        %v604 = vsel %vm310, %v597, 0
        %v607 = vsel %vm310, %v602, 0
        %609 = vmatprep.subr.bf16.mxu0 0
        %610 = vmatpush1.bf16.xpose.msra.mxu0 %v607
        %611 = vmatprep.subr.bf16.mxu0 0
        %612 = vmatpush1.bf16.xpose.msra.mxu0 0
        %613 = vmatprep.subr.bf16.mxu0 0
        %614 = vmatpush1.bf16.xpose.msra.mxu0 0
        %615 = vmatprep.subr.bf16.mxu0 0
        %616 = vmatpush1.bf16.xpose.msra.mxu0 0
        %617 = vmatprep.subr.bf16.mxu0 0
        %618 = vmatpush1.bf16.xpose.msra.mxu0 0
        %619 = vmatprep.subr.bf16.mxu0 0
        %620 = vmatpush1.bf16.xpose.msra.mxu0 0
        %621 = vmatprep.subr.bf16.mxu0 0
        %622 = vmatpush1.bf16.xpose.msra.mxu0 0
        %623 = vmatprep.subr.bf16.mxu0 0
        %624 = vmatpush1.bf16.xpose.msra.mxu0 0
        %625 = vmatprep.subr.bf16.mxu0 0
        %626 = vmatpush1.bf16.xpose.msra.mxu0 0
        %627 = vmatprep.subr.bf16.mxu0 0
        %628 = vmatpush1.bf16.xpose.msra.mxu0 0
        %629 = vmatprep.subr.bf16.mxu0 0
        %630 = vmatpush1.bf16.xpose.msra.mxu0 0
        %631 = vmatprep.subr.bf16.mxu0 0
        %632 = vmatpush1.bf16.xpose.msra.mxu0 0
        %633 = vmatprep.subr.bf16.mxu0 0
        %634 = vmatpush1.bf16.xpose.msra.mxu0 0
        %635 = vmatprep.subr.bf16.mxu0 0
        %636 = vmatpush1.bf16.xpose.msra.mxu0 0
        %637 = vmatprep.subr.bf16.mxu0 0
        %638 = vmatpush1.bf16.xpose.msra.mxu0 0
        %639 = vmatprep.subr.bf16.mxu0 0
        %640 = vmatpush1.bf16.xpose.msra.mxu0 0
        %641 = vmatprep.mubr.bf16.mxu0 0
        %642 = vmatmul.mubr.bf16.gmra.mrb[0].mxu0 %v604
        %v643 = vpop.f32.mrb[0].mxu0
        %v644 = vadd.f32 0.0, %v643
        %v645 = vpop.f32.mrb[0].mxu0
        %v646 = vpop.f32.mrb[0].mxu0
        %v647 = vpop.f32.mrb[0].mxu0
        %648 = vdwg.mxu0
        %s649 = scalar_lea.vmem [#allocation2], 16
        %v650 = vld [vmem:[%s649] sm:$0xff]
        %v651 = vsel %vm310, %v644, -inf
        %652 = vmax.xlane.f32.xlu0 %v651
        %v653 = vpop.xlane.xlu0 %652
        %v654 = vmax.f32 %v650, %v653
        %v655 = vsub.f32 %v650, %v654
        %v656 = vmul.f32 %v655, 1.442695
        %v657 = vpow.pop %v656
        %659 = vset.pattern.permute.xlu0 0
        %660 = vperm.xlu0 %659, %v654
        %v661 = vpop.permute.xlu0 %660
        %v663 = vsub.f32 %v644, %v661
        %v664 = vmul.f32 %v663, 1.442695
        %v665 = vpow.pop %v664
        %s666 = scalar_lea.vmem [#allocation3], 16
        %v667 = vld [vmem:[%s666] sm:$0xff]
        %v668 = vmul.f32 %v657, %v667
        %v669 = vsel %vm310, %v665, 0.0
        %670 = vadd.xlane.f32.xlu0 %v669
        %v671 = vpop.xlane.xlu0 %670
        %v672 = vadd.f32 %v668, %v671
        %673 = vst.msk [vmem:[%s666] sm:$0xff] %vm379, %v672
        %v674 = vld [vmem:[%s278] sm:$0xf]
        %v675 = vpack.c.bf16 %v665, %v665
        %v677 = vunpack.c.l.b16 %v674
        %v678 = vpack.c.b16 %v677, %v677
        %679 = vrot.lane.b32.xlu0 %v678, 112
        %v680 = vpop.permute.xlu0 %679
        %v682 = vsel %vm310, %v675, 0
        %v685 = vsel %vm386, %v680, 0
        %687 = vmatprep.subr.bf16.mxu0 0
        %688 = vmatpush1.bf16.msra.mxu0 %v685
        %689 = vmatprep.subr.bf16.mxu0 0
        %690 = vmatpush1.bf16.msra.mxu0 0
        %691 = vmatprep.subr.bf16.mxu0 0
        %692 = vmatpush1.bf16.msra.mxu0 0
        %693 = vmatprep.subr.bf16.mxu0 0
        %694 = vmatpush1.bf16.msra.mxu0 0
        %695 = vmatprep.subr.bf16.mxu0 0
        %696 = vmatpush1.bf16.msra.mxu0 0
        %697 = vmatprep.subr.bf16.mxu0 0
        %698 = vmatpush1.bf16.msra.mxu0 0
        %699 = vmatprep.subr.bf16.mxu0 0
        %700 = vmatpush1.bf16.msra.mxu0 0
        %701 = vmatprep.subr.bf16.mxu0 0
        %702 = vmatpush1.bf16.msra.mxu0 0
        %703 = vmatprep.subr.bf16.mxu0 0
        %704 = vmatpush1.bf16.msra.mxu0 0
        %705 = vmatprep.subr.bf16.mxu0 0
        %706 = vmatpush1.bf16.msra.mxu0 0
        %707 = vmatprep.subr.bf16.mxu0 0
        %708 = vmatpush1.bf16.msra.mxu0 0
        %709 = vmatprep.subr.bf16.mxu0 0
        %710 = vmatpush1.bf16.msra.mxu0 0
        %711 = vmatprep.subr.bf16.mxu0 0
        %712 = vmatpush1.bf16.msra.mxu0 0
        %713 = vmatprep.subr.bf16.mxu0 0
        %714 = vmatpush1.bf16.msra.mxu0 0
        %715 = vmatprep.subr.bf16.mxu0 0
        %716 = vmatpush1.bf16.msra.mxu0 0
        %717 = vmatprep.subr.bf16.mxu0 0
        %718 = vmatpush1.bf16.msra.mxu0 0
        %719 = vmatprep.mubr.bf16.mxu0 0
        %720 = vmatmul.mubr.bf16.gmra.mrb[0].mxu0 %v682
        %v721 = vpop.f32.mrb[0].mxu0
        %v722 = vadd.f32 0.0, %v721
        %v723 = vpop.f32.mrb[0].mxu0
        %v724 = vpop.f32.mrb[0].mxu0
        %v725 = vpop.f32.mrb[0].mxu0
        %726 = vdwg.mxu0
        %v727 = vld [vmem:[#allocation4] sm:$0xff]
        %729 = vset.pattern.permute.xlu0 0
        %730 = vperm.xlu0 %729, %v657
        %v731 = vpop.permute.xlu0 %730
        %v733 = vmul.f32 %v731, %v727
        %735 = vrot.lane.b32.xlu0 %v722, 16
        %v736 = vpop.permute.xlu0 %735
        %v738 = vadd.f32 %v733, %v736
        %vm739 = vcmask 195712
        %740 = vst.msk [vmem:[#allocation4] sm:$0xff] %vm739, %v738
        %741 = vst.msk [vmem:[%s649] sm:$0xff] %vm379, %v654
        %v742 = vld [vmem:[%s258] sm:$0xf]
        %v743 = vld [vmem:[%s267] sm:$0xf]
        %v745 = vunpack.c.l.b16 %v742
        %v746 = vpack.c.b16 %v745, %v745
        %747 = vrot.lane.b32.xlu0 %v746, 104
        %v748 = vpop.permute.xlu0 %747
        %v750 = vunpack.c.l.b16 %v743
        %v751 = vpack.c.b16 %v750, %v750
        %752 = vrot.lane.b32.xlu0 %v751, 104
        %v753 = vpop.permute.xlu0 %752
        %v755 = vsel %vm310, %v748, 0
        %v758 = vsel %vm310, %v753, 0
        %760 = vmatprep.subr.bf16.mxu0 0
        %761 = vmatpush1.bf16.xpose.msra.mxu0 %v758
        %762 = vmatprep.subr.bf16.mxu0 0
        %763 = vmatpush1.bf16.xpose.msra.mxu0 0
        %764 = vmatprep.subr.bf16.mxu0 0
        %765 = vmatpush1.bf16.xpose.msra.mxu0 0
        %766 = vmatprep.subr.bf16.mxu0 0
        %767 = vmatpush1.bf16.xpose.msra.mxu0 0
        %768 = vmatprep.subr.bf16.mxu0 0
        %769 = vmatpush1.bf16.xpose.msra.mxu0 0
        %770 = vmatprep.subr.bf16.mxu0 0
        %771 = vmatpush1.bf16.xpose.msra.mxu0 0
        %772 = vmatprep.subr.bf16.mxu0 0
        %773 = vmatpush1.bf16.xpose.msra.mxu0 0
        %774 = vmatprep.subr.bf16.mxu0 0
        %775 = vmatpush1.bf16.xpose.msra.mxu0 0
        %776 = vmatprep.subr.bf16.mxu0 0
        %777 = vmatpush1.bf16.xpose.msra.mxu0 0
        %778 = vmatprep.subr.bf16.mxu0 0
        %779 = vmatpush1.bf16.xpose.msra.mxu0 0
        %780 = vmatprep.subr.bf16.mxu0 0
        %781 = vmatpush1.bf16.xpose.msra.mxu0 0
        %782 = vmatprep.subr.bf16.mxu0 0
        %783 = vmatpush1.bf16.xpose.msra.mxu0 0
        %784 = vmatprep.subr.bf16.mxu0 0
        %785 = vmatpush1.bf16.xpose.msra.mxu0 0
        %786 = vmatprep.subr.bf16.mxu0 0
        %787 = vmatpush1.bf16.xpose.msra.mxu0 0
        %788 = vmatprep.subr.bf16.mxu0 0
        %789 = vmatpush1.bf16.xpose.msra.mxu0 0
        %790 = vmatprep.subr.bf16.mxu0 0
        %791 = vmatpush1.bf16.xpose.msra.mxu0 0
        %792 = vmatprep.mubr.bf16.mxu0 0
        %793 = vmatmul.mubr.bf16.gmra.mrb[0].mxu0 %v755
        %v794 = vpop.f32.mrb[0].mxu0
        %v795 = vadd.f32 0.0, %v794
        %v796 = vpop.f32.mrb[0].mxu0
        %v797 = vpop.f32.mrb[0].mxu0
        %v798 = vpop.f32.mrb[0].mxu0
        %799 = vdwg.mxu0
        %s800 = scalar_lea.vmem [#allocation2], 24
        %v801 = vld [vmem:[%s800] sm:$0xff]
        %v802 = vsel %vm310, %v795, -inf
        %803 = vmax.xlane.f32.xlu0 %v802
        %v804 = vpop.xlane.xlu0 %803
        %v805 = vmax.f32 %v801, %v804
        %v806 = vsub.f32 %v801, %v805
        %v807 = vmul.f32 %v806, 1.442695
        %v808 = vpow.pop %v807
        %810 = vset.pattern.permute.xlu0 0
        %811 = vperm.xlu0 %810, %v805
        %v812 = vpop.permute.xlu0 %811
        %v814 = vsub.f32 %v795, %v812
        %v815 = vmul.f32 %v814, 1.442695
        %v816 = vpow.pop %v815
        %s817 = scalar_lea.vmem [#allocation3], 24
        %v818 = vld [vmem:[%s817] sm:$0xff]
        %v819 = vmul.f32 %v808, %v818
        %v820 = vsel %vm310, %v816, 0.0
        %821 = vadd.xlane.f32.xlu0 %v820
        %v822 = vpop.xlane.xlu0 %821
        %v823 = vadd.f32 %v819, %v822
        %824 = vst.msk [vmem:[%s817] sm:$0xff] %vm379, %v823
        %v825 = vld [vmem:[%s278] sm:$0xf]
        %v826 = vpack.c.bf16 %v816, %v816
        %v828 = vunpack.c.l.b16 %v825
        %v829 = vpack.c.b16 %v828, %v828
        %830 = vrot.lane.b32.xlu0 %v829, 104
        %v831 = vpop.permute.xlu0 %830
        %v833 = vsel %vm310, %v826, 0
        %v836 = vsel %vm386, %v831, 0
        %838 = vmatprep.subr.bf16.mxu0 0
        %839 = vmatpush1.bf16.msra.mxu0 %v836
        %840 = vmatprep.subr.bf16.mxu0 0
        %841 = vmatpush1.bf16.msra.mxu0 0
        %842 = vmatprep.subr.bf16.mxu0 0
        %843 = vmatpush1.bf16.msra.mxu0 0
        %844 = vmatprep.subr.bf16.mxu0 0
        %845 = vmatpush1.bf16.msra.mxu0 0
        %846 = vmatprep.subr.bf16.mxu0 0
        %847 = vmatpush1.bf16.msra.mxu0 0
        %848 = vmatprep.subr.bf16.mxu0 0
        %849 = vmatpush1.bf16.msra.mxu0 0
        %850 = vmatprep.subr.bf16.mxu0 0
        %851 = vmatpush1.bf16.msra.mxu0 0
        %852 = vmatprep.subr.bf16.mxu0 0
        %853 = vmatpush1.bf16.msra.mxu0 0
        %854 = vmatprep.subr.bf16.mxu0 0
        %855 = vmatpush1.bf16.msra.mxu0 0
        %856 = vmatprep.subr.bf16.mxu0 0
        %857 = vmatpush1.bf16.msra.mxu0 0
        %858 = vmatprep.subr.bf16.mxu0 0
        %859 = vmatpush1.bf16.msra.mxu0 0
        %860 = vmatprep.subr.bf16.mxu0 0
        %861 = vmatpush1.bf16.msra.mxu0 0
        %862 = vmatprep.subr.bf16.mxu0 0
        %863 = vmatpush1.bf16.msra.mxu0 0
        %864 = vmatprep.subr.bf16.mxu0 0
        %865 = vmatpush1.bf16.msra.mxu0 0
        %866 = vmatprep.subr.bf16.mxu0 0
        %867 = vmatpush1.bf16.msra.mxu0 0
        %868 = vmatprep.subr.bf16.mxu0 0
        %869 = vmatpush1.bf16.msra.mxu0 0
        %870 = vmatprep.mubr.bf16.mxu0 0
        %871 = vmatmul.mubr.bf16.gmra.mrb[0].mxu0 %v833
        %v872 = vpop.f32.mrb[0].mxu0
        %v873 = vadd.f32 0.0, %v872
        %v874 = vpop.f32.mrb[0].mxu0
        %v875 = vpop.f32.mrb[0].mxu0
        %v876 = vpop.f32.mrb[0].mxu0
        %877 = vdwg.mxu0
        %v878 = vld [vmem:[#allocation4] sm:$0xff]
        %880 = vset.pattern.permute.xlu0 0
        %881 = vperm.xlu0 %880, %v808
        %v882 = vpop.permute.xlu0 %881
        %v884 = vmul.f32 %v882, %v878
        %886 = vrot.lane.b32.xlu0 %v873, 24
        %v887 = vpop.permute.xlu0 %886
        %v889 = vadd.f32 %v884, %v887
        %vm890 = vcmask 261312
        %891 = vst.msk [vmem:[#allocation4] sm:$0xff] %vm890, %v889
        %892 = vst.msk [vmem:[%s800] sm:$0xff] %vm379, %v805
      $region40: #{block_forward.4} parent=31 // pred_fallthru
        _
      %p893 = scmp.eq.s32.totalorder %s21, %s20
      // Predicated region
      $region41: #{block_forward.4} parent=31 // pred_check
        %p894 = pneg %p893
      $region42: #{block_forward.4} parent=31 // pred_check_branch
        %896 = sbr.rel (%p894) target = $region44
      $region43: #{block_forward.4} parent=31 // pred_region
        %v897 = vlaneseq
        %v898 = vshrl.u32 %v897, 7
        %v899 = vlaneseq
        %v900 = vand.u32 %v899, 127
        %vm901 = vcmp.le.s32.totalorder %v900, %v898
        %v902 = vsel %vm901, 0.0, -1e+30
        %v903 = vld [vmem:[%s258] sm:$0xf]
        %v904 = vld [vmem:[%s267] sm:$0xf]
        %vm905 = vcmask 64512
        %v907 = vsel %vm905, %v903, 0
        %v910 = vsel %vm905, %v904, 0
        %912 = vmatprep.subr.bf16.mxu0 0
        %913 = vmatpush1.bf16.xpose.msra.mxu0 %v910
        %914 = vmatprep.subr.bf16.mxu0 0
        %915 = vmatpush1.bf16.xpose.msra.mxu0 0
        %916 = vmatprep.subr.bf16.mxu0 0
        %917 = vmatpush1.bf16.xpose.msra.mxu0 0
        %918 = vmatprep.subr.bf16.mxu0 0
        %919 = vmatpush1.bf16.xpose.msra.mxu0 0
        %920 = vmatprep.subr.bf16.mxu0 0
        %921 = vmatpush1.bf16.xpose.msra.mxu0 0
        %922 = vmatprep.subr.bf16.mxu0 0
        %923 = vmatpush1.bf16.xpose.msra.mxu0 0
        %924 = vmatprep.subr.bf16.mxu0 0
        %925 = vmatpush1.bf16.xpose.msra.mxu0 0
        %926 = vmatprep.subr.bf16.mxu0 0
        %927 = vmatpush1.bf16.xpose.msra.mxu0 0
        %928 = vmatprep.subr.bf16.mxu0 0
        %929 = vmatpush1.bf16.xpose.msra.mxu0 0
        %930 = vmatprep.subr.bf16.mxu0 0
        %931 = vmatpush1.bf16.xpose.msra.mxu0 0
        %932 = vmatprep.subr.bf16.mxu0 0
        %933 = vmatpush1.bf16.xpose.msra.mxu0 0
        %934 = vmatprep.subr.bf16.mxu0 0
        %935 = vmatpush1.bf16.xpose.msra.mxu0 0
        %936 = vmatprep.subr.bf16.mxu0 0
        %937 = vmatpush1.bf16.xpose.msra.mxu0 0
        %938 = vmatprep.subr.bf16.mxu0 0
        %939 = vmatpush1.bf16.xpose.msra.mxu0 0
        %940 = vmatprep.subr.bf16.mxu0 0
        %941 = vmatpush1.bf16.xpose.msra.mxu0 0
        %942 = vmatprep.subr.bf16.mxu0 0
        %943 = vmatpush1.bf16.xpose.msra.mxu0 0
        %944 = vmatprep.mubr.bf16.mxu0 0
        %945 = vmatmul.mubr.bf16.gmra.mrb[0].mxu0 %v907
        %v946 = vpop.f32.mrb[0].mxu0
        %v947 = vadd.f32 %v902, %v946
        %v948 = vpop.f32.mrb[0].mxu0
        %v949 = vpop.f32.mrb[0].mxu0
        %v950 = vpop.f32.mrb[0].mxu0
        %951 = vdwg.mxu0
        %v952 = vld [vmem:[#allocation2] sm:$0xff]
        %v953 = vsel %vm905, %v947, -inf
        %954 = vmax.xlane.f32.xlu0 %v953
        %v955 = vpop.xlane.xlu0 %954
        %v956 = vmax.f32 %v952, %v955
        %v957 = vsub.f32 %v952, %v956
        %v958 = vmul.f32 %v957, 1.442695
        %v959 = vpow.pop %v958
        %961 = vset.pattern.permute.xlu0 0
        %962 = vperm.xlu0 %961, %v956
        %v963 = vpop.permute.xlu0 %962
        %v965 = vsub.f32 %v947, %v963
        %v966 = vmul.f32 %v965, 1.442695
        %v967 = vpow.pop %v966
        %v968 = vld [vmem:[#allocation3] sm:$0xff]
        %v969 = vmul.f32 %v959, %v968
        %v970 = vsel %vm905, %v967, 0.0
        %971 = vadd.xlane.f32.xlu0 %v970
        %v972 = vpop.xlane.xlu0 %971
        %v973 = vadd.f32 %v969, %v972
        %vm974 = vcmask 7168
        %975 = vst.msk [vmem:[#allocation3] sm:$0xff] %vm974, %v973
        %v976 = vld [vmem:[%s278] sm:$0xf]
        %v977 = vpack.c.bf16 %v967, %v967
        %v979 = vsel %vm905, %v977, 0
        %vm981 = vcmask 1043456
        %v983 = vsel %vm981, %v976, 0
        %985 = vmatprep.subr.bf16.mxu0 0
        %986 = vmatpush1.bf16.msra.mxu0 %v983
        %987 = vmatprep.subr.bf16.mxu0 0
        %988 = vmatpush1.bf16.msra.mxu0 0
        %989 = vmatprep.subr.bf16.mxu0 0
        %990 = vmatpush1.bf16.msra.mxu0 0
        %991 = vmatprep.subr.bf16.mxu0 0
        %992 = vmatpush1.bf16.msra.mxu0 0
        %993 = vmatprep.subr.bf16.mxu0 0
        %994 = vmatpush1.bf16.msra.mxu0 0
        %995 = vmatprep.subr.bf16.mxu0 0
        %996 = vmatpush1.bf16.msra.mxu0 0
        %997 = vmatprep.subr.bf16.mxu0 0
        %998 = vmatpush1.bf16.msra.mxu0 0
        %999 = vmatprep.subr.bf16.mxu0 0
        %1000 = vmatpush1.bf16.msra.mxu0 0
        %1001 = vmatprep.subr.bf16.mxu0 0
        %1002 = vmatpush1.bf16.msra.mxu0 0
        %1003 = vmatprep.subr.bf16.mxu0 0
        %1004 = vmatpush1.bf16.msra.mxu0 0
        %1005 = vmatprep.subr.bf16.mxu0 0
        %1006 = vmatpush1.bf16.msra.mxu0 0
        %1007 = vmatprep.subr.bf16.mxu0 0
        %1008 = vmatpush1.bf16.msra.mxu0 0
        %1009 = vmatprep.subr.bf16.mxu0 0
        %1010 = vmatpush1.bf16.msra.mxu0 0
        %1011 = vmatprep.subr.bf16.mxu0 0
        %1012 = vmatpush1.bf16.msra.mxu0 0
        %1013 = vmatprep.subr.bf16.mxu0 0
        %1014 = vmatpush1.bf16.msra.mxu0 0
        %1015 = vmatprep.subr.bf16.mxu0 0
        %1016 = vmatpush1.bf16.msra.mxu0 0
        %1017 = vmatprep.mubr.bf16.mxu0 0
        %1018 = vmatmul.mubr.bf16.gmra.mrb[0].mxu0 %v979
        %v1019 = vpop.f32.mrb[0].mxu0
        %v1020 = vadd.f32 0.0, %v1019
        %v1021 = vpop.f32.mrb[0].mxu0
        %v1022 = vpop.f32.mrb[0].mxu0
        %v1023 = vpop.f32.mrb[0].mxu0
        %1024 = vdwg.mxu0
        %v1025 = vld [vmem:[#allocation4] sm:$0xff]
        %1027 = vset.pattern.permute.xlu0 0
        %1028 = vperm.xlu0 %1027, %v959
        %v1029 = vpop.permute.xlu0 %1028
        %v1031 = vmul.f32 %v1029, %v1025
        %v1032 = vadd.f32 %v1031, %v1020
        %1033 = vst.msk [vmem:[#allocation4] sm:$0xff] %vm905, %v1032
        %1034 = vst.msk [vmem:[#allocation2] sm:$0xff] %vm974, %v956
        %v1035 = vld [vmem:[%s258] sm:$0xf]
        %v1036 = vld [vmem:[%s267] sm:$0xf]
        %v1038 = vunpack.c.l.b16 %v1035
        %v1039 = vpack.c.b16 %v1038, %v1038
        %1040 = vrot.lane.b32.xlu0 %v1039, 120
        %v1041 = vpop.permute.xlu0 %1040
        %v1043 = vunpack.c.l.b16 %v1036
        %v1044 = vpack.c.b16 %v1043, %v1043
        %1045 = vrot.lane.b32.xlu0 %v1044, 120
        %v1046 = vpop.permute.xlu0 %1045
        %v1048 = vsel %vm905, %v1041, 0
        %v1051 = vsel %vm905, %v1046, 0
        %1053 = vmatprep.subr.bf16.mxu0 0
        %1054 = vmatpush1.bf16.xpose.msra.mxu0 %v1051
        %1055 = vmatprep.subr.bf16.mxu0 0
        %1056 = vmatpush1.bf16.xpose.msra.mxu0 0
        %1057 = vmatprep.subr.bf16.mxu0 0
        %1058 = vmatpush1.bf16.xpose.msra.mxu0 0
        %1059 = vmatprep.subr.bf16.mxu0 0
        %1060 = vmatpush1.bf16.xpose.msra.mxu0 0
        %1061 = vmatprep.subr.bf16.mxu0 0
        %1062 = vmatpush1.bf16.xpose.msra.mxu0 0
        %1063 = vmatprep.subr.bf16.mxu0 0
        %1064 = vmatpush1.bf16.xpose.msra.mxu0 0
        %1065 = vmatprep.subr.bf16.mxu0 0
        %1066 = vmatpush1.bf16.xpose.msra.mxu0 0
        %1067 = vmatprep.subr.bf16.mxu0 0
        %1068 = vmatpush1.bf16.xpose.msra.mxu0 0
        %1069 = vmatprep.subr.bf16.mxu0 0
        %1070 = vmatpush1.bf16.xpose.msra.mxu0 0
        %1071 = vmatprep.subr.bf16.mxu0 0
        %1072 = vmatpush1.bf16.xpose.msra.mxu0 0
        %1073 = vmatprep.subr.bf16.mxu0 0
        %1074 = vmatpush1.bf16.xpose.msra.mxu0 0
        %1075 = vmatprep.subr.bf16.mxu0 0
        %1076 = vmatpush1.bf16.xpose.msra.mxu0 0
        %1077 = vmatprep.subr.bf16.mxu0 0
        %1078 = vmatpush1.bf16.xpose.msra.mxu0 0
        %1079 = vmatprep.subr.bf16.mxu0 0
        %1080 = vmatpush1.bf16.xpose.msra.mxu0 0
        %1081 = vmatprep.subr.bf16.mxu0 0
        %1082 = vmatpush1.bf16.xpose.msra.mxu0 0
        %1083 = vmatprep.subr.bf16.mxu0 0
        %1084 = vmatpush1.bf16.xpose.msra.mxu0 0
        %1085 = vmatprep.mubr.bf16.mxu0 0
        %1086 = vmatmul.mubr.bf16.gmra.mrb[0].mxu0 %v1048
        %v1087 = vpop.f32.mrb[0].mxu0
        %v1088 = vadd.f32 %v902, %v1087
        %v1089 = vpop.f32.mrb[0].mxu0
        %v1090 = vpop.f32.mrb[0].mxu0
        %v1091 = vpop.f32.mrb[0].mxu0
        %1092 = vdwg.mxu0
        %s1093 = scalar_lea.vmem [#allocation2], 8
        %v1094 = vld [vmem:[%s1093] sm:$0xff]
        %v1095 = vsel %vm905, %v1088, -inf
        %1096 = vmax.xlane.f32.xlu0 %v1095
        %v1097 = vpop.xlane.xlu0 %1096
        %v1098 = vmax.f32 %v1094, %v1097
        %v1099 = vsub.f32 %v1094, %v1098
        %v1100 = vmul.f32 %v1099, 1.442695
        %v1101 = vpow.pop %v1100
        %1103 = vset.pattern.permute.xlu0 0
        %1104 = vperm.xlu0 %1103, %v1098
        %v1105 = vpop.permute.xlu0 %1104
        %v1107 = vsub.f32 %v1088, %v1105
        %v1108 = vmul.f32 %v1107, 1.442695
        %v1109 = vpow.pop %v1108
        %s1110 = scalar_lea.vmem [#allocation3], 8
        %v1111 = vld [vmem:[%s1110] sm:$0xff]
        %v1112 = vmul.f32 %v1101, %v1111
        %v1113 = vsel %vm905, %v1109, 0.0
        %1114 = vadd.xlane.f32.xlu0 %v1113
        %v1115 = vpop.xlane.xlu0 %1114
        %v1116 = vadd.f32 %v1112, %v1115
        %1117 = vst.msk [vmem:[%s1110] sm:$0xff] %vm974, %v1116
        %v1118 = vld [vmem:[%s278] sm:$0xf]
        %v1119 = vpack.c.bf16 %v1109, %v1109
        %v1121 = vunpack.c.l.b16 %v1118
        %v1122 = vpack.c.b16 %v1121, %v1121
        %1123 = vrot.lane.b32.xlu0 %v1122, 120
        %v1124 = vpop.permute.xlu0 %1123
        %v1126 = vsel %vm905, %v1119, 0
        %v1129 = vsel %vm981, %v1124, 0
        %1131 = vmatprep.subr.bf16.mxu0 0
        %1132 = vmatpush1.bf16.msra.mxu0 %v1129
        %1133 = vmatprep.subr.bf16.mxu0 0
        %1134 = vmatpush1.bf16.msra.mxu0 0
        %1135 = vmatprep.subr.bf16.mxu0 0
        %1136 = vmatpush1.bf16.msra.mxu0 0
        %1137 = vmatprep.subr.bf16.mxu0 0
        %1138 = vmatpush1.bf16.msra.mxu0 0
        %1139 = vmatprep.subr.bf16.mxu0 0
        %1140 = vmatpush1.bf16.msra.mxu0 0
        %1141 = vmatprep.subr.bf16.mxu0 0
        %1142 = vmatpush1.bf16.msra.mxu0 0
        %1143 = vmatprep.subr.bf16.mxu0 0
        %1144 = vmatpush1.bf16.msra.mxu0 0
        %1145 = vmatprep.subr.bf16.mxu0 0
        %1146 = vmatpush1.bf16.msra.mxu0 0
        %1147 = vmatprep.subr.bf16.mxu0 0
        %1148 = vmatpush1.bf16.msra.mxu0 0
        %1149 = vmatprep.subr.bf16.mxu0 0
        %1150 = vmatpush1.bf16.msra.mxu0 0
        %1151 = vmatprep.subr.bf16.mxu0 0
        %1152 = vmatpush1.bf16.msra.mxu0 0
        %1153 = vmatprep.subr.bf16.mxu0 0
        %1154 = vmatpush1.bf16.msra.mxu0 0
        %1155 = vmatprep.subr.bf16.mxu0 0
        %1156 = vmatpush1.bf16.msra.mxu0 0
        %1157 = vmatprep.subr.bf16.mxu0 0
        %1158 = vmatpush1.bf16.msra.mxu0 0
        %1159 = vmatprep.subr.bf16.mxu0 0
        %1160 = vmatpush1.bf16.msra.mxu0 0
        %1161 = vmatprep.subr.bf16.mxu0 0
        %1162 = vmatpush1.bf16.msra.mxu0 0
        %1163 = vmatprep.mubr.bf16.mxu0 0
        %1164 = vmatmul.mubr.bf16.gmra.mrb[0].mxu0 %v1126
        %v1165 = vpop.f32.mrb[0].mxu0
        %v1166 = vadd.f32 0.0, %v1165
        %v1167 = vpop.f32.mrb[0].mxu0
        %v1168 = vpop.f32.mrb[0].mxu0
        %v1169 = vpop.f32.mrb[0].mxu0
        %1170 = vdwg.mxu0
        %v1171 = vld [vmem:[#allocation4] sm:$0xff]
        %1173 = vset.pattern.permute.xlu0 0
        %1174 = vperm.xlu0 %1173, %v1101
        %v1175 = vpop.permute.xlu0 %1174
        %v1177 = vmul.f32 %v1175, %v1171
        %1179 = vrot.lane.b32.xlu0 %v1166, 8
        %v1180 = vpop.permute.xlu0 %1179
        %v1182 = vadd.f32 %v1177, %v1180
        %vm1183 = vcmask 130112
        %1184 = vst.msk [vmem:[#allocation4] sm:$0xff] %vm1183, %v1182
        %1185 = vst.msk [vmem:[%s1093] sm:$0xff] %vm974, %v1098
        %v1186 = vld [vmem:[%s258] sm:$0xf]
        %v1187 = vld [vmem:[%s267] sm:$0xf]
        %v1189 = vunpack.c.l.b16 %v1186
        %v1190 = vpack.c.b16 %v1189, %v1189
        %1191 = vrot.lane.b32.xlu0 %v1190, 112
        %v1192 = vpop.permute.xlu0 %1191
        %v1194 = vunpack.c.l.b16 %v1187
        %v1195 = vpack.c.b16 %v1194, %v1194
        %1196 = vrot.lane.b32.xlu0 %v1195, 112
        %v1197 = vpop.permute.xlu0 %1196
        %v1199 = vsel %vm905, %v1192, 0
        %v1202 = vsel %vm905, %v1197, 0
        %1204 = vmatprep.subr.bf16.mxu0 0
        %1205 = vmatpush1.bf16.xpose.msra.mxu0 %v1202
        %1206 = vmatprep.subr.bf16.mxu0 0
        %1207 = vmatpush1.bf16.xpose.msra.mxu0 0
        %1208 = vmatprep.subr.bf16.mxu0 0
        %1209 = vmatpush1.bf16.xpose.msra.mxu0 0
        %1210 = vmatprep.subr.bf16.mxu0 0
        %1211 = vmatpush1.bf16.xpose.msra.mxu0 0
        %1212 = vmatprep.subr.bf16.mxu0 0
        %1213 = vmatpush1.bf16.xpose.msra.mxu0 0
        %1214 = vmatprep.subr.bf16.mxu0 0
        %1215 = vmatpush1.bf16.xpose.msra.mxu0 0
        %1216 = vmatprep.subr.bf16.mxu0 0
        %1217 = vmatpush1.bf16.xpose.msra.mxu0 0
        %1218 = vmatprep.subr.bf16.mxu0 0
        %1219 = vmatpush1.bf16.xpose.msra.mxu0 0
        %1220 = vmatprep.subr.bf16.mxu0 0
        %1221 = vmatpush1.bf16.xpose.msra.mxu0 0
        %1222 = vmatprep.subr.bf16.mxu0 0
        %1223 = vmatpush1.bf16.xpose.msra.mxu0 0
        %1224 = vmatprep.subr.bf16.mxu0 0
        %1225 = vmatpush1.bf16.xpose.msra.mxu0 0
        %1226 = vmatprep.subr.bf16.mxu0 0
        %1227 = vmatpush1.bf16.xpose.msra.mxu0 0
        %1228 = vmatprep.subr.bf16.mxu0 0
        %1229 = vmatpush1.bf16.xpose.msra.mxu0 0
        %1230 = vmatprep.subr.bf16.mxu0 0
        %1231 = vmatpush1.bf16.xpose.msra.mxu0 0
        %1232 = vmatprep.subr.bf16.mxu0 0
        %1233 = vmatpush1.bf16.xpose.msra.mxu0 0
        %1234 = vmatprep.subr.bf16.mxu0 0
        %1235 = vmatpush1.bf16.xpose.msra.mxu0 0
        %1236 = vmatprep.mubr.bf16.mxu0 0
        %1237 = vmatmul.mubr.bf16.gmra.mrb[0].mxu0 %v1199
        %v1238 = vpop.f32.mrb[0].mxu0
        %v1239 = vadd.f32 %v902, %v1238
        %v1240 = vpop.f32.mrb[0].mxu0
        %v1241 = vpop.f32.mrb[0].mxu0
        %v1242 = vpop.f32.mrb[0].mxu0
        %1243 = vdwg.mxu0
        %s1244 = scalar_lea.vmem [#allocation2], 16
        %v1245 = vld [vmem:[%s1244] sm:$0xff]
        %v1246 = vsel %vm905, %v1239, -inf
        %1247 = vmax.xlane.f32.xlu0 %v1246
        %v1248 = vpop.xlane.xlu0 %1247
        %v1249 = vmax.f32 %v1245, %v1248
        %v1250 = vsub.f32 %v1245, %v1249
        %v1251 = vmul.f32 %v1250, 1.442695
        %v1252 = vpow.pop %v1251
        %1254 = vset.pattern.permute.xlu0 0
        %1255 = vperm.xlu0 %1254, %v1249
        %v1256 = vpop.permute.xlu0 %1255
        %v1258 = vsub.f32 %v1239, %v1256
        %v1259 = vmul.f32 %v1258, 1.442695
        %v1260 = vpow.pop %v1259
        %s1261 = scalar_lea.vmem [#allocation3], 16
        %v1262 = vld [vmem:[%s1261] sm:$0xff]
        %v1263 = vmul.f32 %v1252, %v1262
        %v1264 = vsel %vm905, %v1260, 0.0
        %1265 = vadd.xlane.f32.xlu0 %v1264
        %v1266 = vpop.xlane.xlu0 %1265
        %v1267 = vadd.f32 %v1263, %v1266
        %1268 = vst.msk [vmem:[%s1261] sm:$0xff] %vm974, %v1267
        %v1269 = vld [vmem:[%s278] sm:$0xf]
        %v1270 = vpack.c.bf16 %v1260, %v1260
        %v1272 = vunpack.c.l.b16 %v1269
        %v1273 = vpack.c.b16 %v1272, %v1272
        %1274 = vrot.lane.b32.xlu0 %v1273, 112
        %v1275 = vpop.permute.xlu0 %1274
        %v1277 = vsel %vm905, %v1270, 0
        %v1280 = vsel %vm981, %v1275, 0
        %1282 = vmatprep.subr.bf16.mxu0 0
        %1283 = vmatpush1.bf16.msra.mxu0 %v1280
        %1284 = vmatprep.subr.bf16.mxu0 0
        %1285 = vmatpush1.bf16.msra.mxu0 0
        %1286 = vmatprep.subr.bf16.mxu0 0
        %1287 = vmatpush1.bf16.msra.mxu0 0
        %1288 = vmatprep.subr.bf16.mxu0 0
        %1289 = vmatpush1.bf16.msra.mxu0 0
        %1290 = vmatprep.subr.bf16.mxu0 0
        %1291 = vmatpush1.bf16.msra.mxu0 0
        %1292 = vmatprep.subr.bf16.mxu0 0
        %1293 = vmatpush1.bf16.msra.mxu0 0
        %1294 = vmatprep.subr.bf16.mxu0 0
        %1295 = vmatpush1.bf16.msra.mxu0 0
        %1296 = vmatprep.subr.bf16.mxu0 0
        %1297 = vmatpush1.bf16.msra.mxu0 0
        %1298 = vmatprep.subr.bf16.mxu0 0
        %1299 = vmatpush1.bf16.msra.mxu0 0
        %1300 = vmatprep.subr.bf16.mxu0 0
        %1301 = vmatpush1.bf16.msra.mxu0 0
        %1302 = vmatprep.subr.bf16.mxu0 0
        %1303 = vmatpush1.bf16.msra.mxu0 0
        %1304 = vmatprep.subr.bf16.mxu0 0
        %1305 = vmatpush1.bf16.msra.mxu0 0
        %1306 = vmatprep.subr.bf16.mxu0 0
        %1307 = vmatpush1.bf16.msra.mxu0 0
        %1308 = vmatprep.subr.bf16.mxu0 0
        %1309 = vmatpush1.bf16.msra.mxu0 0
        %1310 = vmatprep.subr.bf16.mxu0 0
        %1311 = vmatpush1.bf16.msra.mxu0 0
        %1312 = vmatprep.subr.bf16.mxu0 0
        %1313 = vmatpush1.bf16.msra.mxu0 0
        %1314 = vmatprep.mubr.bf16.mxu0 0
        %1315 = vmatmul.mubr.bf16.gmra.mrb[0].mxu0 %v1277
        %v1316 = vpop.f32.mrb[0].mxu0
        %v1317 = vadd.f32 0.0, %v1316
        %v1318 = vpop.f32.mrb[0].mxu0
        %v1319 = vpop.f32.mrb[0].mxu0
        %v1320 = vpop.f32.mrb[0].mxu0
        %1321 = vdwg.mxu0
        %v1322 = vld [vmem:[#allocation4] sm:$0xff]
        %1324 = vset.pattern.permute.xlu0 0
        %1325 = vperm.xlu0 %1324, %v1252
        %v1326 = vpop.permute.xlu0 %1325
        %v1328 = vmul.f32 %v1326, %v1322
        %1330 = vrot.lane.b32.xlu0 %v1317, 16
        %v1331 = vpop.permute.xlu0 %1330
        %v1333 = vadd.f32 %v1328, %v1331
        %vm1334 = vcmask 195712
        %1335 = vst.msk [vmem:[#allocation4] sm:$0xff] %vm1334, %v1333
        %1336 = vst.msk [vmem:[%s1244] sm:$0xff] %vm974, %v1249
        %v1337 = vld [vmem:[%s258] sm:$0xf]
        %v1338 = vld [vmem:[%s267] sm:$0xf]
        %v1340 = vunpack.c.l.b16 %v1337
        %v1341 = vpack.c.b16 %v1340, %v1340
        %1342 = vrot.lane.b32.xlu0 %v1341, 104
        %v1343 = vpop.permute.xlu0 %1342
        %v1345 = vunpack.c.l.b16 %v1338
        %v1346 = vpack.c.b16 %v1345, %v1345
        %1347 = vrot.lane.b32.xlu0 %v1346, 104
        %v1348 = vpop.permute.xlu0 %1347
        %v1350 = vsel %vm905, %v1343, 0
        %v1353 = vsel %vm905, %v1348, 0
        %1355 = vmatprep.subr.bf16.mxu0 0
        %1356 = vmatpush1.bf16.xpose.msra.mxu0 %v1353
        %1357 = vmatprep.subr.bf16.mxu0 0
        %1358 = vmatpush1.bf16.xpose.msra.mxu0 0
        %1359 = vmatprep.subr.bf16.mxu0 0
        %1360 = vmatpush1.bf16.xpose.msra.mxu0 0
        %1361 = vmatprep.subr.bf16.mxu0 0
        %1362 = vmatpush1.bf16.xpose.msra.mxu0 0
        %1363 = vmatprep.subr.bf16.mxu0 0
        %1364 = vmatpush1.bf16.xpose.msra.mxu0 0
        %1365 = vmatprep.subr.bf16.mxu0 0
        %1366 = vmatpush1.bf16.xpose.msra.mxu0 0
        %1367 = vmatprep.subr.bf16.mxu0 0
        %1368 = vmatpush1.bf16.xpose.msra.mxu0 0
        %1369 = vmatprep.subr.bf16.mxu0 0
        %1370 = vmatpush1.bf16.xpose.msra.mxu0 0
        %1371 = vmatprep.subr.bf16.mxu0 0
        %1372 = vmatpush1.bf16.xpose.msra.mxu0 0
        %1373 = vmatprep.subr.bf16.mxu0 0
        %1374 = vmatpush1.bf16.xpose.msra.mxu0 0
        %1375 = vmatprep.subr.bf16.mxu0 0
        %1376 = vmatpush1.bf16.xpose.msra.mxu0 0
        %1377 = vmatprep.subr.bf16.mxu0 0
        %1378 = vmatpush1.bf16.xpose.msra.mxu0 0
        %1379 = vmatprep.subr.bf16.mxu0 0
        %1380 = vmatpush1.bf16.xpose.msra.mxu0 0
        %1381 = vmatprep.subr.bf16.mxu0 0
        %1382 = vmatpush1.bf16.xpose.msra.mxu0 0
        %1383 = vmatprep.subr.bf16.mxu0 0
        %1384 = vmatpush1.bf16.xpose.msra.mxu0 0
        %1385 = vmatprep.subr.bf16.mxu0 0
        %1386 = vmatpush1.bf16.xpose.msra.mxu0 0
        %1387 = vmatprep.mubr.bf16.mxu0 0
        %1388 = vmatmul.mubr.bf16.gmra.mrb[0].mxu0 %v1350
        %v1389 = vpop.f32.mrb[0].mxu0
        %v1390 = vadd.f32 %v902, %v1389
        %v1391 = vpop.f32.mrb[0].mxu0
        %v1392 = vpop.f32.mrb[0].mxu0
        %v1393 = vpop.f32.mrb[0].mxu0
        %1394 = vdwg.mxu0
        %s1395 = scalar_lea.vmem [#allocation2], 24
        %v1396 = vld [vmem:[%s1395] sm:$0xff]
        %v1397 = vsel %vm905, %v1390, -inf
        %1398 = vmax.xlane.f32.xlu0 %v1397
        %v1399 = vpop.xlane.xlu0 %1398
        %v1400 = vmax.f32 %v1396, %v1399
        %v1401 = vsub.f32 %v1396, %v1400
        %v1402 = vmul.f32 %v1401, 1.442695
        %v1403 = vpow.pop %v1402
        %1405 = vset.pattern.permute.xlu0 0
        %1406 = vperm.xlu0 %1405, %v1400
        %v1407 = vpop.permute.xlu0 %1406
        %v1409 = vsub.f32 %v1390, %v1407
        %v1410 = vmul.f32 %v1409, 1.442695
        %v1411 = vpow.pop %v1410
        %s1412 = scalar_lea.vmem [#allocation3], 24
        %v1413 = vld [vmem:[%s1412] sm:$0xff]
        %v1414 = vmul.f32 %v1403, %v1413
        %v1415 = vsel %vm905, %v1411, 0.0
        %1416 = vadd.xlane.f32.xlu0 %v1415
        %v1417 = vpop.xlane.xlu0 %1416
        %v1418 = vadd.f32 %v1414, %v1417
        %1419 = vst.msk [vmem:[%s1412] sm:$0xff] %vm974, %v1418
        %v1420 = vld [vmem:[%s278] sm:$0xf]
        %v1421 = vpack.c.bf16 %v1411, %v1411
        %v1423 = vunpack.c.l.b16 %v1420
        %v1424 = vpack.c.b16 %v1423, %v1423
        %1425 = vrot.lane.b32.xlu0 %v1424, 104
        %v1426 = vpop.permute.xlu0 %1425
        %v1428 = vsel %vm905, %v1421, 0
        %v1431 = vsel %vm981, %v1426, 0
        %1433 = vmatprep.subr.bf16.mxu0 0
        %1434 = vmatpush1.bf16.msra.mxu0 %v1431
        %1435 = vmatprep.subr.bf16.mxu0 0
        %1436 = vmatpush1.bf16.msra.mxu0 0
        %1437 = vmatprep.subr.bf16.mxu0 0
        %1438 = vmatpush1.bf16.msra.mxu0 0
        %1439 = vmatprep.subr.bf16.mxu0 0
        %1440 = vmatpush1.bf16.msra.mxu0 0
        %1441 = vmatprep.subr.bf16.mxu0 0
        %1442 = vmatpush1.bf16.msra.mxu0 0
        %1443 = vmatprep.subr.bf16.mxu0 0
        %1444 = vmatpush1.bf16.msra.mxu0 0
        %1445 = vmatprep.subr.bf16.mxu0 0
        %1446 = vmatpush1.bf16.msra.mxu0 0
        %1447 = vmatprep.subr.bf16.mxu0 0
        %1448 = vmatpush1.bf16.msra.mxu0 0
        %1449 = vmatprep.subr.bf16.mxu0 0
        %1450 = vmatpush1.bf16.msra.mxu0 0
        %1451 = vmatprep.subr.bf16.mxu0 0
        %1452 = vmatpush1.bf16.msra.mxu0 0
        %1453 = vmatprep.subr.bf16.mxu0 0
        %1454 = vmatpush1.bf16.msra.mxu0 0
        %1455 = vmatprep.subr.bf16.mxu0 0
        %1456 = vmatpush1.bf16.msra.mxu0 0
        %1457 = vmatprep.subr.bf16.mxu0 0
        %1458 = vmatpush1.bf16.msra.mxu0 0
        %1459 = vmatprep.subr.bf16.mxu0 0
        %1460 = vmatpush1.bf16.msra.mxu0 0
        %1461 = vmatprep.subr.bf16.mxu0 0
        %1462 = vmatpush1.bf16.msra.mxu0 0
        %1463 = vmatprep.subr.bf16.mxu0 0
        %1464 = vmatpush1.bf16.msra.mxu0 0
        %1465 = vmatprep.mubr.bf16.mxu0 0
        %1466 = vmatmul.mubr.bf16.gmra.mrb[0].mxu0 %v1428
        %v1467 = vpop.f32.mrb[0].mxu0
        %v1468 = vadd.f32 0.0, %v1467
        %v1469 = vpop.f32.mrb[0].mxu0
        %v1470 = vpop.f32.mrb[0].mxu0
        %v1471 = vpop.f32.mrb[0].mxu0
        %1472 = vdwg.mxu0
        %v1473 = vld [vmem:[#allocation4] sm:$0xff]
        %1475 = vset.pattern.permute.xlu0 0
        %1476 = vperm.xlu0 %1475, %v1403
        %v1477 = vpop.permute.xlu0 %1476
        %v1479 = vmul.f32 %v1477, %v1473
        %1481 = vrot.lane.b32.xlu0 %v1468, 24
        %v1482 = vpop.permute.xlu0 %1481
        %v1484 = vadd.f32 %v1479, %v1482
        %vm1485 = vcmask 261312
        %1486 = vst.msk [vmem:[#allocation4] sm:$0xff] %vm1485, %v1484
        %1487 = vst.msk [vmem:[%s1395] sm:$0xff] %vm974, %v1400
      $region44: #{block_forward.4} parent=31 // pred_fallthru
        _
      // Predicated region
      $region45: #{block_forward.4} parent=31 // pred_check
        %p1488 = pneg %p289
      $region46: #{block_forward.4} parent=31 // pred_check_branch
        %1490 = sbr.rel (%p1488) target = $region48
      $region47: #{block_forward.4} parent=31 // pred_region
        %v1491 = vld [vmem:[#allocation4] sm:$0xff]
        %v1492 = vld [vmem:[#allocation3] sm:$0xff]
        %v1493 = vrcp.pop %v1492
        %1495 = vset.pattern.permute.xlu0 0
        %1496 = vperm.xlu0 %1495, %v1493
        %v1497 = vpop.permute.xlu0 %1496
        %v1499 = vmul.f32 %v1491, %v1497
        %vm1500 = vcmask 64512
        %1501 = vst.msk [vmem:[#allocation4] sm:$0xff] %vm1500, %v1499
        %v1502 = vld [vmem:[#allocation4] sm:$0xff]
        %s1503 = scalar_lea.vmem [#allocation3], 8
        %v1504 = vld [vmem:[%s1503] sm:$0xff]
        %v1505 = vrcp.pop %v1504
        %1507 = vset.pattern.permute.xlu0 0
        %1508 = vperm.xlu0 %1507, %v1505
        %v1509 = vpop.permute.xlu0 %1508
        %v1511 = vmul.f32 %v1502, %v1509
        %vm1512 = vcmask 130112
        %1513 = vst.msk [vmem:[#allocation4] sm:$0xff] %vm1512, %v1511
        %v1514 = vld [vmem:[#allocation4] sm:$0xff]
        %s1515 = scalar_lea.vmem [#allocation3], 16
        %v1516 = vld [vmem:[%s1515] sm:$0xff]
        %v1517 = vrcp.pop %v1516
        %1519 = vset.pattern.permute.xlu0 0
        %1520 = vperm.xlu0 %1519, %v1517
        %v1521 = vpop.permute.xlu0 %1520
        %v1523 = vmul.f32 %v1514, %v1521
        %vm1524 = vcmask 195712
        %1525 = vst.msk [vmem:[#allocation4] sm:$0xff] %vm1524, %v1523
        %v1526 = vld [vmem:[#allocation4] sm:$0xff]
        %s1527 = scalar_lea.vmem [#allocation3], 24
        %v1528 = vld [vmem:[%s1527] sm:$0xff]
        %v1529 = vrcp.pop %v1528
        %1531 = vset.pattern.permute.xlu0 0
        %1532 = vperm.xlu0 %1531, %v1529
        %v1533 = vpop.permute.xlu0 %1532
        %v1535 = vmul.f32 %v1526, %v1533
        %vm1536 = vcmask 261312
        %1537 = vst.msk [vmem:[#allocation4] sm:$0xff] %vm1536, %v1535
        %v1538 = vld [vmem:[#allocation4] sm:$0xff]
        %v1539 = vpack.c.bf16 %v1538, %v1538
        %vm1540 = vcmask 257024
        %1541 = vst.msk [vmem:[%s287] sm:$0xf] %vm1540, %v1539
      $region48: #{block_forward.4} parent=31 // pred_fallthru
        _
      %p1542 = scmp.lt.s32.totalorder %s19, 1
      %s1543 = scalar_select %p1542, %s19, 1
      %p1544 = scmp.lt.s32.totalorder %s20, 0
      %s1545 = scalar_select %p1544, %s20, 0
      %s1546 = sadd.s32 %s1545, %s1543
      %s1547 = smul.addr %s1546, 4
      %s1548 = scalar_lea.vmem %s3, %s1547
      // Predicated region
      $region49: #{block_forward.4} parent=31 // pred_check
        %p1549 = pneg %p145
      $region50: #{block_forward.4} parent=31 // pred_check_branch
        %1551 = sbr.rel (%p1549) target = $region52
      $region51: #{block_forward.4} parent=31 // pred_region
        _
      $region52: #{block_forward.4} parent=31 // pred_fallthru
        _
    $region32: #{block_forward.4} parent=5 // pred_fallthru
      _
    %p1552 = scmp.le.s32.totalorder 2, %s9
    // Predicated region
    $region53: #{block_forward.4} parent=5 // pred_check
      %p1553 = pneg %p1552
    $region54: #{block_forward.4} parent=5 // pred_check_branch
      %1555 = sbr.rel (%p1553) target = $region56
    $region55: #{block_forward.4} parent=5 // pred_region
      %s1556 = ssub.s32 %s9, 2
      // Predicated region
      $region57: #{block_forward.4} parent=55 // pred_check
        %p1557 = pneg %p151
      $region58: #{block_forward.4} parent=55 // pred_check_branch
        %1559 = sbr.rel (%p1557) target = $region60
      $region59: #{block_forward.4} parent=55 // pred_region
        %p1560 = scmp.lt.s32.totalorder %s22, 1
        %s1561 = scalar_select %p1560, %s22, 1
        %p1562 = scmp.lt.s32.totalorder %s23, 0
        %s1563 = scalar_select %p1562, %s23, 0
        %s1564 = sadd.s32 %s1563, %s1561
        %s1565 = smul.addr %s1564, 4
        %s1566 = scalar_lea.vmem %s3, %s1565
      $region60: #{block_forward.4} parent=55 // pred_fallthru
        _
    $region56: #{block_forward.4} parent=5 // pred_fallthru
      _
  $region6: #{block_forward.4} parent=0 // loop_footer
    %s13 = sadd.s32 1, %s9
  $region7: #{block_forward.4} parent=0 // loop_footer_branch
    %8 = sbr.rel target = $region3
  $region8: #{block_forward.4} parent=0 // loop_exit
    _

</llo_original>
